<compile_context>
chip_gen: v7x
topology: tpu7x:2x2x1
jax: 0.10.0
libtpu: 0.0.40
codegen_flags: <defaults>
</compile_context>

<pallas_src>
import jax
import jax.numpy as jnp
from jax.experimental import pallas as pl
from jax.experimental.pallas import tpu as pltpu

# ---------------- model hyper-params (small, deterministic) ----------------
N = 2              # batch
CIN = 128          # input channels  (NCSN-style ConvMeanPool width)
COUT = 128         # output channels
H = W = 16         # spatial
HO, WO = H // 2, W // 2
K_IM2COL = 9 * CIN


# ---------------------------- Pallas kernel --------------------------------
def conv_mean_pool_kernel(x_ref, w_ref, b_ref, p_ref, o_ref,
                          xpad_ref, col_ref, y_ref):
    """One grid step == one batch sample.

    x_ref   : (1, H, W, CIN)     VMEM  NHWC input sample
    w_ref   : (9*CIN, COUT)      VMEM  conv3x3 weights, im2col row = (dy*3+dx)*CIN + ci
    b_ref   : (1, COUT)          VMEM  conv bias
    p_ref   : (HO*WO, H*W)       VMEM  2x2 mean-pool matrix (each row has four 0.25s)
    o_ref   : (1, HO*WO, COUT)   VMEM  pooled output
    xpad_ref: (H+2, W+2, CIN)    VMEM  zero-padded input scratch
    col_ref : (H*W, 9*CIN)       VMEM  im2col slab
    y_ref   : (H*W, COUT)        VMEM  conv output (pre-pool)
    """
    # Zero only the 1-pixel border; the interior is fully rewritten below.  Done every
    # step (not @pl.when(program_id == 0)) so each core's private scratch is correct
    # when the grid is sharded across TensorCores.
    zrow = jnp.zeros((1, W + 2, CIN), jnp.float32)
    zcol = jnp.zeros((H + 2, 1, CIN), jnp.float32)
    xpad_ref[0:1, :, :] = zrow
    xpad_ref[H + 1:H + 2, :, :] = zrow
    xpad_ref[:, 0:1, :] = zcol
    xpad_ref[:, W + 1:W + 2, :] = zcol
    xpad_ref[1:H + 1, 1:W + 1, :] = x_ref[0]

    # im2col: 9 shifted (H, W, CIN) windows -> (H*W, 9*CIN).  The unaligned sublane
    # shifts are paid once here; the conv itself is then a single big MXU matmul.
    for dy in range(3):
        for dx in range(3):
            t = dy * 3 + dx
            col_ref[:, t * CIN:(t + 1) * CIN] = (
                xpad_ref[dy:dy + H, dx:dx + W, :].reshape(H * W, CIN))

    # conv3x3 + bias as one matmul: (HW, 9*CIN) @ (9*CIN, COUT).
    y_ref[...] = (
        jnp.dot(col_ref[...], w_ref[...], preferred_element_type=jnp.float32)
        + b_ref[...])

    # 2x2 mean pool folded into a second matmul: (HO*WO, HW) @ (HW, COUT).
    # (bias commutes with the pooling since every pooling row sums to 1.)
    o_ref[0] = jnp.dot(p_ref[...], y_ref[...], preferred_element_type=jnp.float32)


def conv_mean_pool_pallas(x_nhwc, w_hwio, bias):
    """x_nhwc: (N,H,W,CIN); w_hwio: (3,3,CIN,COUT); bias: (COUT,) -> (N,HO,WO,COUT)."""
    w_mat = w_hwio.reshape(K_IM2COL, COUT)          # row = (dy*3+dx)*CIN + ci
    b_row = bias.reshape(1, COUT)

    # Pooling matrix: output row r = h2*WO + w2 averages the 4 conv pixels of its block.
    hw = jnp.arange(H * W)
    pooled_row = (hw // W // 2) * WO + (hw % W) // 2                    # (HW,)
    pool_mat = 0.25 * (jnp.arange(HO * WO)[:, None] == pooled_row[None, :]
                       ).astype(jnp.float32)                           # (HO*WO, HW)

    grid_spec = pltpu.PrefetchScalarGridSpec(
        num_scalar_prefetch=0,
        grid=(N,),
        in_specs=[
            pl.BlockSpec((1, H, W, CIN), lambda n: (n, 0, 0, 0)),
            pl.BlockSpec((K_IM2COL, COUT), lambda n: (0, 0)),
            pl.BlockSpec((1, COUT), lambda n: (0, 0)),
            pl.BlockSpec((HO * WO, H * W), lambda n: (0, 0)),
        ],
        out_specs=pl.BlockSpec((1, HO * WO, COUT), lambda n: (n, 0, 0)),
        scratch_shapes=[
            pltpu.VMEM((H + 2, W + 2, CIN), jnp.float32),   # padded input
            pltpu.VMEM((H * W, K_IM2COL), jnp.float32),     # im2col slab
            pltpu.VMEM((H * W, COUT), jnp.float32),         # conv output
        ],
    )
    out = pl.pallas_call(
        conv_mean_pool_kernel,
        out_shape=jax.ShapeDtypeStruct((N, HO * WO, COUT), jnp.float32),
        grid_spec=grid_spec,
        compiler_params=pltpu.CompilerParams(dimension_semantics=("parallel",)),
    )(x_nhwc, w_mat, b_row, pool_mat)
    # (N, HO*WO, COUT) -> (N, HO, WO, COUT) is a free row-major reshape outside the kernel.
    return out.reshape(N, HO, WO, COUT)


# --------------------------- pure-JAX reference -----------------------------
def conv_mean_pool_ref(x_nhwc, w_hwio, bias):
    y = jax.lax.conv_general_dilated(
        x_nhwc, w_hwio, window_strides=(1, 1), padding="SAME",
        dimension_numbers=("NHWC", "HWIO", "NHWC")) + bias[None, None, None, :]
    return 0.25 * (y[:, ::2, ::2, :] + y[:, 1::2, ::2, :]
                   + y[:, ::2, 1::2, :] + y[:, 1::2, 1::2, :])


# -------------------------------- main --------------------------------------
if __name__ == "__main__":
    key = jax.random.PRNGKey(0)
    k_x, k_w, k_b = jax.random.split(key, 3)

    # PyTorch-convention NCHW input, transposed to the kernel's NHWC layout.
    x_nchw = jax.random.normal(k_x, (N, CIN, H, W), jnp.float32)
    x_nhwc = jnp.transpose(x_nchw, (0, 2, 3, 1))

    # Conv2d(CIN, COUT, 3, stride=1, padding=1, bias=True) parameters (HWIO layout).
    w_hwio = jax.random.normal(k_w, (3, 3, CIN, COUT), jnp.float32) / jnp.sqrt(9.0 * CIN)
    bias = 0.1 * jax.random.normal(k_b, (COUT,), jnp.float32)

    # TODO(synk): only the default adjust_padding=False branch is implemented
    # (adjust_padding=True prepends ZeroPad2d((1, 0, 1, 0))).

    out = jax.block_until_ready(conv_mean_pool_pallas(x_nhwc, w_hwio, bias))
    ref = jax.block_until_ready(conv_mean_pool_ref(x_nhwc, w_hwio, bias))

    assert out.shape == (N, HO, WO, COUT)
    err = float(jnp.max(jnp.abs(out - ref)))
    assert err < 1e-3, f"mismatch vs reference: max abs err = {err}"
    print("KERNEL_OK")
</pallas_src>

<mosaic_0001>
module attributes {stable_mosaic.version = 11 : i64} {
  func.func @conv_mean_pool_kernel(%arg0: i32, %arg1: memref<1x16x16x128xf32, #tpu.memory_space<vmem>>, %arg2: memref<1152x128xf32, #tpu.memory_space<vmem>>, %arg3: memref<1x128xf32, #tpu.memory_space<vmem>>, %arg4: memref<64x256xf32, #tpu.memory_space<vmem>>, %arg5: memref<1x64x128xf32, #tpu.memory_space<vmem>>, %arg6: memref<18x18x128xf32, #tpu.memory_space<vmem>>, %arg7: memref<256x1152xf32, #tpu.memory_space<vmem>>, %arg8: memref<256x128xf32, #tpu.memory_space<vmem>>) attributes {dimension_semantics = [#tpu.dimension_semantics<parallel>], iteration_bounds = array<i64: 2>, scalar_prefetch = 0 : i64, scratch_operands = 3 : i64, tpu.core_type = #tpu.core_type<tc>, window_params = [{transform_indices = @transform_0, window_bounds = array<i64: 1, 16, 16, 128>}, {pipeline_mode = #tpu.pipeline_mode<synchronous>, transform_indices = @transform_1, window_bounds = array<i64: 1152, 128>}, {pipeline_mode = #tpu.pipeline_mode<synchronous>, transform_indices = @transform_2, window_bounds = array<i64: 1, 128>}, {pipeline_mode = #tpu.pipeline_mode<synchronous>, transform_indices = @transform_3, window_bounds = array<i64: 64, 256>}, {transform_indices = @transform_4, window_bounds = array<i64: 1, 64, 128>}]} {
    %cst = arith.constant 0.000000e+00 : f32
    %0 = vector.broadcast %cst : f32 to vector<1x18x128xf32>
    %cst_0 = arith.constant 0.000000e+00 : f32
    %1 = vector.broadcast %cst_0 : f32 to vector<18x1x128xf32>
    %c0 = arith.constant 0 : index
    %c0_1 = arith.constant 0 : index
    %c0_2 = arith.constant 0 : index
    %2 = vector.load %arg6[%c0, %c0_1, %c0_2] : memref<18x18x128xf32, #tpu.memory_space<vmem>>, vector<1x18x128xf32>
    tpu.vector_store %arg6[%c0, %c0_1, %c0_2], %0 {strides = array<i32>} : memref<18x18x128xf32, #tpu.memory_space<vmem>>, vector<1x18x128xf32>,
    %c17 = arith.constant 17 : index
    %c0_3 = arith.constant 0 : index
    %c0_4 = arith.constant 0 : index
    %3 = vector.load %arg6[%c17, %c0_3, %c0_4] : memref<18x18x128xf32, #tpu.memory_space<vmem>>, vector<1x18x128xf32>
    tpu.vector_store %arg6[%c17, %c0_3, %c0_4], %0 {strides = array<i32>} : memref<18x18x128xf32, #tpu.memory_space<vmem>>, vector<1x18x128xf32>,
    %c0_5 = arith.constant 0 : index
    %c0_6 = arith.constant 0 : index
    %c0_7 = arith.constant 0 : index
    %4 = vector.load %arg6[%c0_5, %c0_6, %c0_7] : memref<18x18x128xf32, #tpu.memory_space<vmem>>, vector<18x1x128xf32>
    tpu.vector_store %arg6[%c0_5, %c0_6, %c0_7], %1 {strides = array<i32>} : memref<18x18x128xf32, #tpu.memory_space<vmem>>, vector<18x1x128xf32>,
    %c0_8 = arith.constant 0 : index
    %c17_9 = arith.constant 17 : index
    %c0_10 = arith.constant 0 : index
    %5 = vector.load %arg6[%c0_8, %c17_9, %c0_10] : memref<18x18x128xf32, #tpu.memory_space<vmem>>, vector<18x1x128xf32>
    tpu.vector_store %arg6[%c0_8, %c17_9, %c0_10], %1 {strides = array<i32>} : memref<18x18x128xf32, #tpu.memory_space<vmem>>, vector<18x1x128xf32>,
    %c0_11 = arith.constant 0 : index
    %c0_12 = arith.constant 0 : index
    %c0_13 = arith.constant 0 : index
    %c0_14 = arith.constant 0 : index
    %6 = vector.load %arg1[%c0_11, %c0_12, %c0_13, %c0_14] : memref<1x16x16x128xf32, #tpu.memory_space<vmem>>, vector<1x16x16x128xf32>
    %7 = vector.shape_cast %6 : vector<1x16x16x128xf32> to vector<16x16x128xf32>
    %c1 = arith.constant 1 : index
    %c1_15 = arith.constant 1 : index
    %c0_16 = arith.constant 0 : index
    %8 = vector.load %arg6[%c1, %c1_15, %c0_16] : memref<18x18x128xf32, #tpu.memory_space<vmem>>, vector<16x16x128xf32>
    tpu.vector_store %arg6[%c1, %c1_15, %c0_16], %7 {strides = array<i32>} : memref<18x18x128xf32, #tpu.memory_space<vmem>>, vector<16x16x128xf32>,
    %c0_17 = arith.constant 0 : index
    %c0_18 = arith.constant 0 : index
    %c0_19 = arith.constant 0 : index
    %9 = vector.load %arg6[%c0_17, %c0_18, %c0_19] : memref<18x18x128xf32, #tpu.memory_space<vmem>>, vector<16x16x128xf32>
    %10 = vector.shape_cast %9 : vector<16x16x128xf32> to vector<256x128xf32>
    %c0_20 = arith.constant 0 : index
    %c0_21 = arith.constant 0 : index
    %11 = vector.load %arg7[%c0_20, %c0_21] : memref<256x1152xf32, #tpu.memory_space<vmem>>, vector<256x128xf32>
    tpu.vector_store %arg7[%c0_20, %c0_21], %10 {strides = array<i32>} : memref<256x1152xf32, #tpu.memory_space<vmem>>, vector<256x128xf32>,
    %c0_22 = arith.constant 0 : index
    %c1_23 = arith.constant 1 : index
    %c0_24 = arith.constant 0 : index
    %12 = vector.load %arg6[%c0_22, %c1_23, %c0_24] : memref<18x18x128xf32, #tpu.memory_space<vmem>>, vector<16x16x128xf32>
    %13 = vector.shape_cast %12 : vector<16x16x128xf32> to vector<256x128xf32>
    %c0_25 = arith.constant 0 : index
    %c128 = arith.constant 128 : index
    %14 = vector.load %arg7[%c0_25, %c128] : memref<256x1152xf32, #tpu.memory_space<vmem>>, vector<256x128xf32>
    tpu.vector_store %arg7[%c0_25, %c128], %13 {strides = array<i32>} : memref<256x1152xf32, #tpu.memory_space<vmem>>, vector<256x128xf32>,
    %c0_26 = arith.constant 0 : index
    %c2 = arith.constant 2 : index
    %c0_27 = arith.constant 0 : index
    %15 = vector.load %arg6[%c0_26, %c2, %c0_27] : memref<18x18x128xf32, #tpu.memory_space<vmem>>, vector<16x16x128xf32>
    %16 = vector.shape_cast %15 : vector<16x16x128xf32> to vector<256x128xf32>
    %c0_28 = arith.constant 0 : index
    %c256 = arith.constant 256 : index
    %17 = vector.load %arg7[%c0_28, %c256] : memref<256x1152xf32, #tpu.memory_space<vmem>>, vector<256x128xf32>
    tpu.vector_store %arg7[%c0_28, %c256], %16 {strides = array<i32>} : memref<256x1152xf32, #tpu.memory_space<vmem>>, vector<256x128xf32>,
    %c1_29 = arith.constant 1 : index
    %c0_30 = arith.constant 0 : index
    %c0_31 = arith.constant 0 : index
    %18 = vector.load %arg6[%c1_29, %c0_30, %c0_31] : memref<18x18x128xf32, #tpu.memory_space<vmem>>, vector<16x16x128xf32>
    %19 = vector.shape_cast %18 : vector<16x16x128xf32> to vector<256x128xf32>
    %c0_32 = arith.constant 0 : index
    %c384 = arith.constant 384 : index
    %20 = vector.load %arg7[%c0_32, %c384] : memref<256x1152xf32, #tpu.memory_space<vmem>>, vector<256x128xf32>
    tpu.vector_store %arg7[%c0_32, %c384], %19 {strides = array<i32>} : memref<256x1152xf32, #tpu.memory_space<vmem>>, vector<256x128xf32>,
    %c1_33 = arith.constant 1 : index
    %c1_34 = arith.constant 1 : index
    %c0_35 = arith.constant 0 : index
    %21 = vector.load %arg6[%c1_33, %c1_34, %c0_35] : memref<18x18x128xf32, #tpu.memory_space<vmem>>, vector<16x16x128xf32>
    %22 = vector.shape_cast %21 : vector<16x16x128xf32> to vector<256x128xf32>
    %c0_36 = arith.constant 0 : index
    %c512 = arith.constant 512 : index
    %23 = vector.load %arg7[%c0_36, %c512] : memref<256x1152xf32, #tpu.memory_space<vmem>>, vector<256x128xf32>
    tpu.vector_store %arg7[%c0_36, %c512], %22 {strides = array<i32>} : memref<256x1152xf32, #tpu.memory_space<vmem>>, vector<256x128xf32>,
    %c1_37 = arith.constant 1 : index
    %c2_38 = arith.constant 2 : index
    %c0_39 = arith.constant 0 : index
    %24 = vector.load %arg6[%c1_37, %c2_38, %c0_39] : memref<18x18x128xf32, #tpu.memory_space<vmem>>, vector<16x16x128xf32>
    %25 = vector.shape_cast %24 : vector<16x16x128xf32> to vector<256x128xf32>
    %c0_40 = arith.constant 0 : index
    %c640 = arith.constant 640 : index
    %26 = vector.load %arg7[%c0_40, %c640] : memref<256x1152xf32, #tpu.memory_space<vmem>>, vector<256x128xf32>
    tpu.vector_store %arg7[%c0_40, %c640], %25 {strides = array<i32>} : memref<256x1152xf32, #tpu.memory_space<vmem>>, vector<256x128xf32>,
    %c2_41 = arith.constant 2 : index
    %c0_42 = arith.constant 0 : index
    %c0_43 = arith.constant 0 : index
    %27 = vector.load %arg6[%c2_41, %c0_42, %c0_43] : memref<18x18x128xf32, #tpu.memory_space<vmem>>, vector<16x16x128xf32>
    %28 = vector.shape_cast %27 : vector<16x16x128xf32> to vector<256x128xf32>
    %c0_44 = arith.constant 0 : index
    %c768 = arith.constant 768 : index
    %29 = vector.load %arg7[%c0_44, %c768] : memref<256x1152xf32, #tpu.memory_space<vmem>>, vector<256x128xf32>
    tpu.vector_store %arg7[%c0_44, %c768], %28 {strides = array<i32>} : memref<256x1152xf32, #tpu.memory_space<vmem>>, vector<256x128xf32>,
    %c2_45 = arith.constant 2 : index
    %c1_46 = arith.constant 1 : index
    %c0_47 = arith.constant 0 : index
    %30 = vector.load %arg6[%c2_45, %c1_46, %c0_47] : memref<18x18x128xf32, #tpu.memory_space<vmem>>, vector<16x16x128xf32>
    %31 = vector.shape_cast %30 : vector<16x16x128xf32> to vector<256x128xf32>
    %c0_48 = arith.constant 0 : index
    %c896 = arith.constant 896 : index
    %32 = vector.load %arg7[%c0_48, %c896] : memref<256x1152xf32, #tpu.memory_space<vmem>>, vector<256x128xf32>
    tpu.vector_store %arg7[%c0_48, %c896], %31 {strides = array<i32>} : memref<256x1152xf32, #tpu.memory_space<vmem>>, vector<256x128xf32>,
    %c2_49 = arith.constant 2 : index
    %c2_50 = arith.constant 2 : index
    %c0_51 = arith.constant 0 : index
    %33 = vector.load %arg6[%c2_49, %c2_50, %c0_51] : memref<18x18x128xf32, #tpu.memory_space<vmem>>, vector<16x16x128xf32>
    %34 = vector.shape_cast %33 : vector<16x16x128xf32> to vector<256x128xf32>
    %c0_52 = arith.constant 0 : index
    %c1024 = arith.constant 1024 : index
    %35 = vector.load %arg7[%c0_52, %c1024] : memref<256x1152xf32, #tpu.memory_space<vmem>>, vector<256x128xf32>
    tpu.vector_store %arg7[%c0_52, %c1024], %34 {strides = array<i32>} : memref<256x1152xf32, #tpu.memory_space<vmem>>, vector<256x128xf32>,
    %c0_53 = arith.constant 0 : index
    %c0_54 = arith.constant 0 : index
    %36 = vector.load %arg7[%c0_53, %c0_54] : memref<256x1152xf32, #tpu.memory_space<vmem>>, vector<256x1152xf32>
    %c0_55 = arith.constant 0 : index
    %c0_56 = arith.constant 0 : index
    %37 = vector.load %arg2[%c0_55, %c0_56] : memref<1152x128xf32, #tpu.memory_space<vmem>>, vector<1152x128xf32>
    %cst_57 = arith.constant dense<0.000000e+00> : vector<256x128xf32>
    %38 = tpu.matmul %36, %37, %cst_57 {dimension_numbers = #tpu.dot_dimension_numbers<[1], [0], [0], [1], [0, 0, 1, 1], [], []>} : vector<256x1152xf32>, vector<1152x128xf32>, vector<256x128xf32> -> vector<256x128xf32>
    %c0_58 = arith.constant 0 : index
    %c0_59 = arith.constant 0 : index
    %39 = vector.load %arg3[%c0_58, %c0_59] : memref<1x128xf32, #tpu.memory_space<vmem>>, vector<1x128xf32>
    %40 = vector.broadcast %39 : vector<1x128xf32> to vector<256x128xf32>
    %41 = arith.addf %38, %40 : vector<256x128xf32>
    %c0_60 = arith.constant 0 : index
    %c0_61 = arith.constant 0 : index
    %42 = vector.load %arg8[%c0_60, %c0_61] : memref<256x128xf32, #tpu.memory_space<vmem>>, vector<256x128xf32>
    tpu.vector_store %arg8[%c0_60, %c0_61], %41 {strides = array<i32>} : memref<256x128xf32, #tpu.memory_space<vmem>>, vector<256x128xf32>,
    %c0_62 = arith.constant 0 : index
    %c0_63 = arith.constant 0 : index
    %43 = vector.load %arg4[%c0_62, %c0_63] : memref<64x256xf32, #tpu.memory_space<vmem>>, vector<64x256xf32>
    %c0_64 = arith.constant 0 : index
    %c0_65 = arith.constant 0 : index
    %44 = vector.load %arg8[%c0_64, %c0_65] : memref<256x128xf32, #tpu.memory_space<vmem>>, vector<256x128xf32>
    %cst_66 = arith.constant dense<0.000000e+00> : vector<64x128xf32>
    %45 = tpu.matmul %43, %44, %cst_66 {dimension_numbers = #tpu.dot_dimension_numbers<[1], [0], [0], [1], [0, 0, 1, 1], [], []>} : vector<64x256xf32>, vector<256x128xf32>, vector<64x128xf32> -> vector<64x128xf32>
    %c0_67 = arith.constant 0 : index
    %c0_68 = arith.constant 0 : index
    %c0_69 = arith.constant 0 : index
    %46 = vector.load %arg5[%c0_67, %c0_68, %c0_69] : memref<1x64x128xf32, #tpu.memory_space<vmem>>, vector<1x64x128xf32>
    %47 = vector.shape_cast %46 : vector<1x64x128xf32> to vector<64x128xf32>
    %48 = vector.shape_cast %45 : vector<64x128xf32> to vector<1x64x128xf32>
    tpu.vector_store %arg5[%c0_67, %c0_68, %c0_69], %48 {strides = array<i32>} : memref<1x64x128xf32, #tpu.memory_space<vmem>>, vector<1x64x128xf32>,
    return
  }
  func.func @transform_0(%arg0: i32) -> (i32, i32, i32, i32) {
    %c0_i32 = arith.constant 0 : i32
    %c0_i32_0 = arith.constant 0 : i32
    %c0_i32_1 = arith.constant 0 : i32
    %c0_i32_2 = arith.constant 0 : i32
    return %arg0, %c0_i32, %c0_i32_0, %c0_i32_1 : i32, i32, i32, i32
  }
  func.func @transform_1(%arg0: i32) -> (i32, i32) {
    %c0_i32 = arith.constant 0 : i32
    %c0_i32_0 = arith.constant 0 : i32
    %c0_i32_1 = arith.constant 0 : i32
    return %c0_i32, %c0_i32_0 : i32, i32
  }
  func.func @transform_2(%arg0: i32) -> (i32, i32) {
    %c0_i32 = arith.constant 0 : i32
    %c0_i32_0 = arith.constant 0 : i32
    %c0_i32_1 = arith.constant 0 : i32
    return %c0_i32, %c0_i32_0 : i32, i32
  }
  func.func @transform_3(%arg0: i32) -> (i32, i32) {
    %c0_i32 = arith.constant 0 : i32
    %c0_i32_0 = arith.constant 0 : i32
    %c0_i32_1 = arith.constant 0 : i32
    return %c0_i32, %c0_i32_0 : i32, i32
  }
  func.func @transform_4(%arg0: i32) -> (i32, i32, i32) {
    %c0_i32 = arith.constant 0 : i32
    %c0_i32_0 = arith.constant 0 : i32
    %c0_i32_1 = arith.constant 0 : i32
    return %arg0, %c0_i32, %c0_i32_0 : i32, i32, i32
  }
}

</mosaic_0001>

<llo_original>
// kernel: tpu_custom_call.1
$region0: #{tpu_custom_call.1}
  #allocation0 [shape = 'u32[]', space=smem, size = 0x4, offset = 0x4, fixed_abs, tag = 'smem constant byte address 0x4 - core index']
  #allocation1 [shape = 'u32[144,128]{1,0:T(1,128)}', space=vmem, size = 0x12000, scoped, tag = 'internal scratch']
  #allocation2 [shape = 'f32[18,18,128]{2,1,0:T(8,128)}', space=vmem, size = 0x36000, scoped, tag = 'scratch operand']
  #allocation3 [shape = 'f32[256,1152]{1,0:T(8,128)}', space=vmem, size = 0x120000, scoped, tag = 'scratch operand']
  #allocation4 [shape = 'f32[256,128]{1,0:T(8,128)}', space=vmem, size = 0x20000, scoped, tag = 'scratch operand']
  %s0 = inlined_call_operand.hbm [shape: f32[2,16,16,128], index: 0, kind: input, shape index: {}]
  %s1 = inlined_call_operand.hbm [shape: f32[1152,128], index: 1, kind: input, shape index: {}]
  %s2 = inlined_call_operand.vmem [shape: f32[1,128], index: 2, kind: input, shape index: {}]
  %s3 = inlined_call_operand.hbm [shape: f32[64,256], index: 3, kind: input, shape index: {}]
  %s4 = inlined_call_operand.hbm [shape: f32[2,64,128], index: 4, kind: output, shape index: {}]
  %s5 = sld [smem:[#allocation0]]
  $region61: #{tpu_custom_call.1} parent=0
    _
  %s7 = ssub.s32 1, %s5
  %s8 = scalar_select 0, %s7, %s5
  $region1: #{tpu_custom_call.1} parent=0
    #allocation5 [shape = 'u8[262144]{0}', space=vmem, size = 0x40000, scoped, tag = 'input window, operand 0']
    #allocation6 [shape = 's32[2]{0}', space=sflag, size = 0x8, scoped, tag = 'scoped memory for tpu_custom_call.1']
    #allocation7 [shape = 's32[2]{0}', space=sflag, size = 0x8, scoped, tag = 'scoped memory for tpu_custom_call.1']
    #allocation8 [shape = 'u8[589824]{0}', space=vmem, size = 0x90000, scoped, tag = 'input window, operand 1, single buffered']
    #allocation9 [shape = 's32[1]{0}', space=sflag, size = 0x4, scoped, tag = 'scoped memory for tpu_custom_call.1']
    #allocation10 [shape = 'u8[65536]{0}', space=vmem, size = 0x10000, scoped, tag = 'input window, operand 3, single buffered']
    #allocation11 [shape = 'u8[65536]{0}', space=vmem, size = 0x10000, scoped, tag = 'output window, operand 0']
    %9 = vsyncpa [#allocation6], 0
    %s10 = scalar_lea.sflag [#allocation6], 1
    %11 = vsyncpa %s10, 0
    %12 = vsyncpa [#allocation9], 0
    %13 = vsyncpa [#allocation7], 0
    %s14 = scalar_lea.sflag [#allocation7], 1
    %15 = vsyncpa %s14, 0
    loop: start=0, step=1, limit=4
    $region2: #{tpu_custom_call.1} parent=1 // loop_pre_header
      _
    $region3: #{tpu_custom_call.1} parent=1 // loop_header
      %s17 = sphi 0, %s21
      %p18 = scmp.ge.s32.totalorder %s17, 4
      %s27 = sphi 0, %s29
      %s30 = sphi 0, %s27
      %s31 = sphi 0, %s30
      %s47 = sphi 0, %s31
      %s51 = sphi 0, %s51
      %s53 = sphi 0, %s51
      %s54 = sphi 0, %s53
      %s68 = sphi 0, %s54
      %s72 = sphi 0, %s72
      %s74 = sphi 0, %s72
      %s75 = sphi 0, %s74
      %s89 = sphi 0, %s75
      %s93 = sphi 0, %s93
      %s95 = sphi 0, %s93
      %s96 = sphi 0, %s95
      %s110 = sphi 0, %s96
      %s116 = sphi 0, %s118
      %s119 = sphi 0, %s116
      %s120 = sphi 0, %s119
      %s136 = sphi 0, %s120
    $region4: #{tpu_custom_call.1} parent=1 // loop_header_branch
      %20 = sbr.rel (%p18) target = $region8
    $region5: #{tpu_custom_call.1} parent=1 // loop_body
      %s22 = ssub.s32 %s17, 1
      %s23 = ssub.s32 %s17, 2
      %s24 = sadd.s32 %s17, 1
      %s25 = ssub.s32 %s17, %s24
      %p26 = scmp.eq.s32.totalorder %s25, 0
      %s28 = sadd.s32 %s27, 1
      %s29 = scalar_select %p26, %s27, %s28
      %p32 = pneg %p26
      %p33 = scmp.eq.s32.totalorder %s17, 1
      %p34 = por %p32, %p33
      %p35 = scmp.ne.s32.totalorder %s27, %s30
      %p36 = scmp.eq.s32.totalorder %s17, 0
      %p37 = por %p35, %p36
      %p38 = scmp.ne.s32.totalorder %s27, %s30
      %p39 = scmp.eq.s32.totalorder %s22, 1
      %p40 = por %p38, %p39
      %p41 = scmp.ne.s32.totalorder %s30, %s31
      %p42 = scmp.eq.s32.totalorder %s22, 0
      %p43 = por %p41, %p42
      %p44 = scmp.ne.s32.totalorder %s30, %s31
      %p45 = scmp.eq.s32.totalorder %s23, 1
      %p46 = por %p44, %p45
      %p48 = scmp.ne.s32.totalorder %s31, %s47
      %p49 = scmp.eq.s32.totalorder %s23, 0
      %p50 = por %p48, %p49
      %s52 = sadd.s32 %s51, 1
      %p55 = scmp.eq.s32.totalorder %s17, 1
      %p56 = scmp.ne.s32.totalorder %s51, %s53
      %p57 = scmp.eq.s32.totalorder %s17, 0
      %p58 = por %p56, %p57
      %p59 = scmp.ne.s32.totalorder %s51, %s53
      %p60 = scmp.eq.s32.totalorder %s22, 1
      %p61 = por %p59, %p60
      %p62 = scmp.ne.s32.totalorder %s53, %s54
      %p63 = scmp.eq.s32.totalorder %s22, 0
      %p64 = por %p62, %p63
      %p65 = scmp.ne.s32.totalorder %s53, %s54
      %p66 = scmp.eq.s32.totalorder %s23, 1
      %p67 = por %p65, %p66
      %p69 = scmp.ne.s32.totalorder %s54, %s68
      %p70 = scmp.eq.s32.totalorder %s23, 0
      %p71 = por %p69, %p70
      %s73 = sadd.s32 %s72, 1
      %p76 = scmp.eq.s32.totalorder %s17, 1
      %p77 = scmp.ne.s32.totalorder %s72, %s74
      %p78 = scmp.eq.s32.totalorder %s17, 0
      %p79 = por %p77, %p78
      %p80 = scmp.ne.s32.totalorder %s72, %s74
      %p81 = scmp.eq.s32.totalorder %s22, 1
      %p82 = por %p80, %p81
      %p83 = scmp.ne.s32.totalorder %s74, %s75
      %p84 = scmp.eq.s32.totalorder %s22, 0
      %p85 = por %p83, %p84
      %p86 = scmp.ne.s32.totalorder %s74, %s75
      %p87 = scmp.eq.s32.totalorder %s23, 1
      %p88 = por %p86, %p87
      %p90 = scmp.ne.s32.totalorder %s75, %s89
      %p91 = scmp.eq.s32.totalorder %s23, 0
      %p92 = por %p90, %p91
      %s94 = sadd.s32 %s93, 1
      %p97 = scmp.eq.s32.totalorder %s17, 1
      %p98 = scmp.ne.s32.totalorder %s93, %s95
      %p99 = scmp.eq.s32.totalorder %s17, 0
      %p100 = por %p98, %p99
      %p101 = scmp.ne.s32.totalorder %s93, %s95
      %p102 = scmp.eq.s32.totalorder %s22, 1
      %p103 = por %p101, %p102
      %p104 = scmp.ne.s32.totalorder %s95, %s96
      %p105 = scmp.eq.s32.totalorder %s22, 0
      %p106 = por %p104, %p105
      %p107 = scmp.ne.s32.totalorder %s95, %s96
      %p108 = scmp.eq.s32.totalorder %s23, 1
      %p109 = por %p107, %p108
      %p111 = scmp.ne.s32.totalorder %s96, %s110
      %p112 = scmp.eq.s32.totalorder %s23, 0
      %p113 = por %p111, %p112
      %s114 = ssub.s32 %s17, %s24
      %p115 = scmp.eq.s32.totalorder %s114, 0
      %s117 = sadd.s32 %s116, 1
      %s118 = scalar_select %p115, %s116, %s117
      %p121 = pneg %p115
      %p122 = scmp.eq.s32.totalorder %s17, 1
      %p123 = por %p121, %p122
      %p124 = scmp.ne.s32.totalorder %s116, %s119
      %p125 = scmp.eq.s32.totalorder %s17, 0
      %p126 = por %p124, %p125
      %p127 = scmp.ne.s32.totalorder %s116, %s119
      %p128 = scmp.eq.s32.totalorder %s22, 1
      %p129 = por %p127, %p128
      %p130 = scmp.ne.s32.totalorder %s119, %s120
      %p131 = scmp.eq.s32.totalorder %s22, 0
      %p132 = por %p130, %p131
      %p133 = scmp.ne.s32.totalorder %s119, %s120
      %p134 = scmp.eq.s32.totalorder %s23, 1
      %p135 = por %p133, %p134
      %p137 = scmp.ne.s32.totalorder %s120, %s136
      %p138 = scmp.eq.s32.totalorder %s23, 0
      %p139 = por %p137, %p138
      %p140 = scmp.le.s32.totalorder 1, %s17
      %p141 = scmp.lt.s32.totalorder %s17, 3
      %p142 = pnand %p140, %p141
      %p143 = pneg %p142
      // Predicated region
      $region9: #{tpu_custom_call.1} parent=5 // pred_check
        _
      $region10: #{tpu_custom_call.1} parent=5 // pred_check_branch
        %145 = sbr.rel (%p142) target = $region12
      $region11: #{tpu_custom_call.1} parent=5 // pred_region
        %s146 = ssub.s32 %s17, 1
        // Predicated region
        $region13: #{tpu_custom_call.1} parent=11 // pred_check
          %p147 = pneg %p64
        $region14: #{tpu_custom_call.1} parent=11 // pred_check_branch
          %149 = sbr.rel (%p147) target = $region16
        $region15: #{tpu_custom_call.1} parent=11 // pred_region
          %s151 = ssub.s32 18432, 18432
          %152 = vsyncadd [#allocation9], %s151
          %s153 = sshll.u32 [#allocation8], 4
          %s154 = int_to_ptr.vmem [resolvable:$true] %s153
          %159 = dma.hbm_to_vmem [thread:$0]  %s1, 18432, %s154, [#allocation9], 128, 128, 8
        $region16: #{tpu_custom_call.1} parent=11 // pred_fallthru
          _
        // Predicated region
        $region17: #{tpu_custom_call.1} parent=11 // pred_check
          %p160 = pneg %p85
        $region18: #{tpu_custom_call.1} parent=11 // pred_check_branch
          %162 = sbr.rel (%p160) target = $region20
        $region19: #{tpu_custom_call.1} parent=11 // pred_region
          _
        $region20: #{tpu_custom_call.1} parent=11 // pred_fallthru
          _
        // Predicated region
        $region21: #{tpu_custom_call.1} parent=11 // pred_check
          %p163 = pneg %p106
        $region22: #{tpu_custom_call.1} parent=11 // pred_check_branch
          %165 = sbr.rel (%p163) target = $region24
        $region23: #{tpu_custom_call.1} parent=11 // pred_region
          %s167 = ssub.s32 2048, 2048
          %168 = vsyncadd [#allocation9], %s167
          %s169 = sshll.u32 [#allocation10], 4
          %s170 = int_to_ptr.vmem [resolvable:$true] %s169
          %175 = dma.hbm_to_vmem [thread:$0]  %s3, 2048, %s170, [#allocation9], 256, 256, 16
        $region24: #{tpu_custom_call.1} parent=11 // pred_fallthru
          _
      $region12: #{tpu_custom_call.1} parent=5 // pred_fallthru
        _
      %p176 = scmp.lt.s32.totalorder %s17, 2
      // Predicated region
      $region25: #{tpu_custom_call.1} parent=5 // pred_check
        %p177 = pneg %p176
      $region26: #{tpu_custom_call.1} parent=5 // pred_check_branch
        %179 = sbr.rel (%p177) target = $region28
      $region27: #{tpu_custom_call.1} parent=5 // pred_region
        // Predicated region
        $region29: #{tpu_custom_call.1} parent=27 // pred_check
          %p180 = pneg %p37
        $region30: #{tpu_custom_call.1} parent=27 // pred_check_branch
          %182 = sbr.rel (%p180) target = $region32
        $region31: #{tpu_custom_call.1} parent=27 // pred_region
          %s183 = sand.u32 %s27, 1
          %s184 = scalar_lea.sflag [#allocation6], %s183
          %s185 = sand.u32 %s27, 1
          %s186 = smul.addr %s185, 256
          %s187 = scalar_lea.vmem [#allocation5], %s186
          %s189 = ssub.s32 4096, 4096
          %190 = vsyncadd %s184, %s189
          %s191 = smul.addr %s17, 32
          %s192 = smul.addr %s191, 128
          %s193 = scalar_lea.hbm %s0, %s192
          %s194 = sshll.u32 %s187, 4
          %s195 = int_to_ptr.vmem [resolvable:$true] %s194
          %200 = dma.hbm_to_vmem [thread:$0]  %s193, 4096, %s195, %s184, 128, 128, 8
        $region32: #{tpu_custom_call.1} parent=27 // pred_fallthru
          _
      $region28: #{tpu_custom_call.1} parent=5 // pred_fallthru
        _
      %p201 = scmp.le.s32.totalorder 1, %s17
      %p202 = scmp.lt.s32.totalorder %s17, 3
      %p203 = pnand %p201, %p202
      %p204 = pneg %p203
      // Predicated region
      $region33: #{tpu_custom_call.1} parent=5 // pred_check
        _
      $region34: #{tpu_custom_call.1} parent=5 // pred_check_branch
        %206 = sbr.rel (%p203) target = $region36
      $region35: #{tpu_custom_call.1} parent=5 // pred_region
        %s207 = ssub.s32 %s17, 1
        %s208 = sand.u32 %s30, 1
        %s209 = scalar_lea.sflag [#allocation6], %s208
        %s210 = sand.u32 %s30, 1
        %s211 = smul.addr %s210, 256
        %s212 = scalar_lea.vmem [#allocation5], %s211
        // Predicated region
        $region37: #{tpu_custom_call.1} parent=35 // pred_check
          %p213 = pneg %p43
        $region38: #{tpu_custom_call.1} parent=35 // pred_check_branch
          %215 = sbr.rel (%p213) target = $region40
        $region39: #{tpu_custom_call.1} parent=35 // pred_region
          %216 = dma.done %s209, 4096
        $region40: #{tpu_custom_call.1} parent=35 // pred_fallthru
          _
        // Predicated region
        $region41: #{tpu_custom_call.1} parent=35 // pred_check
          %p217 = pneg %p64
        $region42: #{tpu_custom_call.1} parent=35 // pred_check_branch
          %219 = sbr.rel (%p217) target = $region44
        $region43: #{tpu_custom_call.1} parent=35 // pred_region
          %220 = dma.done [#allocation9], 18432
        $region44: #{tpu_custom_call.1} parent=35 // pred_fallthru
          _
        // Predicated region
        $region45: #{tpu_custom_call.1} parent=35 // pred_check
          %p221 = pneg %p106
        $region46: #{tpu_custom_call.1} parent=35 // pred_check_branch
          %223 = sbr.rel (%p221) target = $region48
        $region47: #{tpu_custom_call.1} parent=35 // pred_region
          %224 = dma.done [#allocation9], 2048
        $region48: #{tpu_custom_call.1} parent=35 // pred_fallthru
          _
        %s225 = sand.u32 %s30, 1
        %s226 = scalar_lea.sflag [#allocation6], %s225
        %s227 = sand.u32 %s30, 1
        %s228 = smul.addr %s227, 256
        %s229 = scalar_lea.vmem [#allocation5], %s228
        %p230 = pneg %p43
        %p231 = pneg %p40
        %p232 = pneg %p64
        %p233 = pneg %p61
        %p234 = pneg %p85
        %p235 = pneg %p82
        %p236 = pneg %p106
        %p237 = pneg %p103
        %p238 = pneg %p132
        %p239 = pneg %p129
        %s240 = sand.u32 %s119, 1
        %s241 = scalar_lea.sflag [#allocation7], %s240
        %s242 = sand.u32 %s119, 1
        %s243 = smul.addr %s242, 64
        %s244 = scalar_lea.vmem [#allocation11], %s243
        %245 = vst [vmem:[#allocation2] sm:$0xff] 0.0
        %246 = vst [vmem:[#allocation2 + $0x8] sm:$0xff] 0.0
        %247 = vst [vmem:[#allocation2 + $0x10] sm:$0x3] 0.0
        %s248 = scalar_lea.vmem [#allocation2], 408
        %249 = vst [vmem:[%s248] sm:$0xff] 0.0
        %250 = vst [vmem:[%s248 + $0x8] sm:$0xff] 0.0
        %251 = vst [vmem:[%s248 + $0x10] sm:$0x3] 0.0
        %252 = vst [vmem:[#allocation2] sm:$0x1] 0.0
        %253 = vst [vmem:[#allocation2 + $0x18] sm:$0x1] 0.0
        %254 = vst [vmem:[#allocation2 + $0x30] sm:$0x1] 0.0
        %255 = vst [vmem:[#allocation2 + $0x48] sm:$0x1] 0.0
        %256 = vst [vmem:[#allocation2 + $0x60] sm:$0x1] 0.0
        %257 = vst [vmem:[#allocation2 + $0x78] sm:$0x1] 0.0
        %258 = vst [vmem:[#allocation2 + $0x90] sm:$0x1] 0.0
        %259 = vst [vmem:[#allocation2 + $0xa8] sm:$0x1] 0.0
        %260 = vst [vmem:[#allocation2 + $0xc0] sm:$0x1] 0.0
        %261 = vst [vmem:[#allocation2 + $0xd8] sm:$0x1] 0.0
        %262 = vst [vmem:[#allocation2 + $0xf0] sm:$0x1] 0.0
        %263 = vst [vmem:[#allocation2 + $0x108] sm:$0x1] 0.0
        %264 = vst [vmem:[#allocation2 + $0x120] sm:$0x1] 0.0
        %265 = vst [vmem:[#allocation2 + $0x138] sm:$0x1] 0.0
        %266 = vst [vmem:[#allocation2 + $0x150] sm:$0x1] 0.0
        %267 = vst [vmem:[#allocation2 + $0x168] sm:$0x1] 0.0
        %268 = vst [vmem:[#allocation2 + $0x180] sm:$0x1] 0.0
        %269 = vst [vmem:[#allocation2 + $0x198] sm:$0x1] 0.0
        %270 = vst [vmem:[#allocation2 + $0x11] sm:$0x1] 0.0
        %271 = vst [vmem:[#allocation2 + $0x29] sm:$0x1] 0.0
        %272 = vst [vmem:[#allocation2 + $0x41] sm:$0x1] 0.0
        %273 = vst [vmem:[#allocation2 + $0x59] sm:$0x1] 0.0
        %274 = vst [vmem:[#allocation2 + $0x71] sm:$0x1] 0.0
        %275 = vst [vmem:[#allocation2 + $0x89] sm:$0x1] 0.0
        %276 = vst [vmem:[#allocation2 + $0xa1] sm:$0x1] 0.0
        %277 = vst [vmem:[#allocation2 + $0xb9] sm:$0x1] 0.0
        %278 = vst [vmem:[#allocation2 + $0xd1] sm:$0x1] 0.0
        %279 = vst [vmem:[#allocation2 + $0xe9] sm:$0x1] 0.0
        %280 = vst [vmem:[#allocation2 + $0x101] sm:$0x1] 0.0
        %281 = vst [vmem:[#allocation2 + $0x119] sm:$0x1] 0.0
        %282 = vst [vmem:[#allocation2 + $0x131] sm:$0x1] 0.0
        %283 = vst [vmem:[#allocation2 + $0x149] sm:$0x1] 0.0
        %284 = vst [vmem:[#allocation2 + $0x161] sm:$0x1] 0.0
        %285 = vst [vmem:[#allocation2 + $0x179] sm:$0x1] 0.0
        %286 = vst [vmem:[#allocation2 + $0x191] sm:$0x1] 0.0
        %287 = vst [vmem:[#allocation2 + $0x1a9] sm:$0x1] 0.0
        %v288 = vld [vmem:[%s212] sm:$0xff]
        %v289 = vld [vmem:[%s212 + $0x8] sm:$0xff]
        %v290 = vld [vmem:[%s212 + $0x10] sm:$0xff]
        %v291 = vld [vmem:[%s212 + $0x18] sm:$0xff]
        %v292 = vld [vmem:[%s212 + $0x20] sm:$0xff]
        %v293 = vld [vmem:[%s212 + $0x28] sm:$0xff]
        %v294 = vld [vmem:[%s212 + $0x30] sm:$0xff]
        %v295 = vld [vmem:[%s212 + $0x38] sm:$0xff]
        %v296 = vld [vmem:[%s212 + $0x40] sm:$0xff]
        %v297 = vld [vmem:[%s212 + $0x48] sm:$0xff]
        %v298 = vld [vmem:[%s212 + $0x50] sm:$0xff]
        %v299 = vld [vmem:[%s212 + $0x58] sm:$0xff]
        %v300 = vld [vmem:[%s212 + $0x60] sm:$0xff]
        %v301 = vld [vmem:[%s212 + $0x68] sm:$0xff]
        %v302 = vld [vmem:[%s212 + $0x70] sm:$0xff]
        %v303 = vld [vmem:[%s212 + $0x78] sm:$0xff]
        %v304 = vld [vmem:[%s212 + $0x80] sm:$0xff]
        %v305 = vld [vmem:[%s212 + $0x88] sm:$0xff]
        %v306 = vld [vmem:[%s212 + $0x90] sm:$0xff]
        %v307 = vld [vmem:[%s212 + $0x98] sm:$0xff]
        %v308 = vld [vmem:[%s212 + $0xa0] sm:$0xff]
        %v309 = vld [vmem:[%s212 + $0xa8] sm:$0xff]
        %v310 = vld [vmem:[%s212 + $0xb0] sm:$0xff]
        %v311 = vld [vmem:[%s212 + $0xb8] sm:$0xff]
        %v312 = vld [vmem:[%s212 + $0xc0] sm:$0xff]
        %v313 = vld [vmem:[%s212 + $0xc8] sm:$0xff]
        %v314 = vld [vmem:[%s212 + $0xd0] sm:$0xff]
        %v315 = vld [vmem:[%s212 + $0xd8] sm:$0xff]
        %v316 = vld [vmem:[%s212 + $0xe0] sm:$0xff]
        %v317 = vld [vmem:[%s212 + $0xe8] sm:$0xff]
        %v318 = vld [vmem:[%s212 + $0xf0] sm:$0xff]
        %v319 = vld [vmem:[%s212 + $0xf8] sm:$0xff]
        %s320 = scalar_lea.vmem [#allocation2], 24
        %321 = vst [vmem:[%s320 + $0x1] sm:$0xff] %v288
        %322 = vst [vmem:[%s320 + $0x9] sm:$0xff] %v289
        %323 = vst [vmem:[%s320 + $0x19] sm:$0xff] %v290
        %324 = vst [vmem:[%s320 + $0x21] sm:$0xff] %v291
        %325 = vst [vmem:[%s320 + $0x31] sm:$0xff] %v292
        %326 = vst [vmem:[%s320 + $0x39] sm:$0xff] %v293
        %327 = vst [vmem:[%s320 + $0x49] sm:$0xff] %v294
        %328 = vst [vmem:[%s320 + $0x51] sm:$0xff] %v295
        %329 = vst [vmem:[%s320 + $0x61] sm:$0xff] %v296
        %330 = vst [vmem:[%s320 + $0x69] sm:$0xff] %v297
        %331 = vst [vmem:[%s320 + $0x79] sm:$0xff] %v298
        %332 = vst [vmem:[%s320 + $0x81] sm:$0xff] %v299
        %333 = vst [vmem:[%s320 + $0x91] sm:$0xff] %v300
        %334 = vst [vmem:[%s320 + $0x99] sm:$0xff] %v301
        %335 = vst [vmem:[%s320 + $0xa9] sm:$0xff] %v302
        %336 = vst [vmem:[%s320 + $0xb1] sm:$0xff] %v303
        %337 = vst [vmem:[%s320 + $0xc1] sm:$0xff] %v304
        %338 = vst [vmem:[%s320 + $0xc9] sm:$0xff] %v305
        %339 = vst [vmem:[%s320 + $0xd9] sm:$0xff] %v306
        %340 = vst [vmem:[%s320 + $0xe1] sm:$0xff] %v307
        %341 = vst [vmem:[%s320 + $0xf1] sm:$0xff] %v308
        %342 = vst [vmem:[%s320 + $0xf9] sm:$0xff] %v309
        %343 = vst [vmem:[%s320 + $0x109] sm:$0xff] %v310
        %344 = vst [vmem:[%s320 + $0x111] sm:$0xff] %v311
        %345 = vst [vmem:[%s320 + $0x121] sm:$0xff] %v312
        %346 = vst [vmem:[%s320 + $0x129] sm:$0xff] %v313
        %347 = vst [vmem:[%s320 + $0x139] sm:$0xff] %v314
        %348 = vst [vmem:[%s320 + $0x141] sm:$0xff] %v315
        %349 = vst [vmem:[%s320 + $0x151] sm:$0xff] %v316
        %350 = vst [vmem:[%s320 + $0x159] sm:$0xff] %v317
        %351 = vst [vmem:[%s320 + $0x169] sm:$0xff] %v318
        %352 = vst [vmem:[%s320 + $0x171] sm:$0xff] %v319
        %v353 = vld [vmem:[#allocation2] sm:$0xff]
        %v354 = vld [vmem:[#allocation2 + $0x8] sm:$0xff]
        %v355 = vld [vmem:[#allocation2 + $0x18] sm:$0xff]
        %v356 = vld [vmem:[#allocation2 + $0x20] sm:$0xff]
        %v357 = vld [vmem:[#allocation2 + $0x30] sm:$0xff]
        %v358 = vld [vmem:[#allocation2 + $0x38] sm:$0xff]
        %v359 = vld [vmem:[#allocation2 + $0x48] sm:$0xff]
        %v360 = vld [vmem:[#allocation2 + $0x50] sm:$0xff]
        %v361 = vld [vmem:[#allocation2 + $0x60] sm:$0xff]
        %v362 = vld [vmem:[#allocation2 + $0x68] sm:$0xff]
        %v363 = vld [vmem:[#allocation2 + $0x78] sm:$0xff]
        %v364 = vld [vmem:[#allocation2 + $0x80] sm:$0xff]
        %v365 = vld [vmem:[#allocation2 + $0x90] sm:$0xff]
        %v366 = vld [vmem:[#allocation2 + $0x98] sm:$0xff]
        %v367 = vld [vmem:[#allocation2 + $0xa8] sm:$0xff]
        %v368 = vld [vmem:[#allocation2 + $0xb0] sm:$0xff]
        %v369 = vld [vmem:[#allocation2 + $0xc0] sm:$0xff]
        %v370 = vld [vmem:[#allocation2 + $0xc8] sm:$0xff]
        %v371 = vld [vmem:[#allocation2 + $0xd8] sm:$0xff]
        %v372 = vld [vmem:[#allocation2 + $0xe0] sm:$0xff]
        %v373 = vld [vmem:[#allocation2 + $0xf0] sm:$0xff]
        %v374 = vld [vmem:[#allocation2 + $0xf8] sm:$0xff]
        %v375 = vld [vmem:[#allocation2 + $0x108] sm:$0xff]
        %v376 = vld [vmem:[#allocation2 + $0x110] sm:$0xff]
        %v377 = vld [vmem:[#allocation2 + $0x120] sm:$0xff]
        %v378 = vld [vmem:[#allocation2 + $0x128] sm:$0xff]
        %v379 = vld [vmem:[#allocation2 + $0x138] sm:$0xff]
        %v380 = vld [vmem:[#allocation2 + $0x140] sm:$0xff]
        %v381 = vld [vmem:[#allocation2 + $0x150] sm:$0xff]
        %v382 = vld [vmem:[#allocation2 + $0x158] sm:$0xff]
        %v383 = vld [vmem:[#allocation2 + $0x168] sm:$0xff]
        %v384 = vld [vmem:[#allocation2 + $0x170] sm:$0xff]
        %385 = vst [vmem:[#allocation3] sm:$0xff] %v353
        %386 = vst [vmem:[#allocation3 + $0x48] sm:$0xff] %v354
        %387 = vst [vmem:[#allocation3 + $0x90] sm:$0xff] %v355
        %388 = vst [vmem:[#allocation3 + $0xd8] sm:$0xff] %v356
        %389 = vst [vmem:[#allocation3 + $0x120] sm:$0xff] %v357
        %390 = vst [vmem:[#allocation3 + $0x168] sm:$0xff] %v358
        %391 = vst [vmem:[#allocation3 + $0x1b0] sm:$0xff] %v359
        %392 = vst [vmem:[#allocation3 + $0x1f8] sm:$0xff] %v360
        %393 = vst [vmem:[#allocation3 + $0x240] sm:$0xff] %v361
        %394 = vst [vmem:[#allocation3 + $0x288] sm:$0xff] %v362
        %395 = vst [vmem:[#allocation3 + $0x2d0] sm:$0xff] %v363
        %396 = vst [vmem:[#allocation3 + $0x318] sm:$0xff] %v364
        %397 = vst [vmem:[#allocation3 + $0x360] sm:$0xff] %v365
        %398 = vst [vmem:[#allocation3 + $0x3a8] sm:$0xff] %v366
        %399 = vst [vmem:[#allocation3 + $0x3f0] sm:$0xff] %v367
        %400 = vst [vmem:[#allocation3 + $0x438] sm:$0xff] %v368
        %401 = vst [vmem:[#allocation3 + $0x480] sm:$0xff] %v369
        %402 = vst [vmem:[#allocation3 + $0x4c8] sm:$0xff] %v370
        %403 = vst [vmem:[#allocation3 + $0x510] sm:$0xff] %v371
        %404 = vst [vmem:[#allocation3 + $0x558] sm:$0xff] %v372
        %405 = vst [vmem:[#allocation3 + $0x5a0] sm:$0xff] %v373
        %406 = vst [vmem:[#allocation3 + $0x5e8] sm:$0xff] %v374
        %407 = vst [vmem:[#allocation3 + $0x630] sm:$0xff] %v375
        %408 = vst [vmem:[#allocation3 + $0x678] sm:$0xff] %v376
        %409 = vst [vmem:[#allocation3 + $0x6c0] sm:$0xff] %v377
        %410 = vst [vmem:[#allocation3 + $0x708] sm:$0xff] %v378
        %411 = vst [vmem:[#allocation3 + $0x750] sm:$0xff] %v379
        %412 = vst [vmem:[#allocation3 + $0x798] sm:$0xff] %v380
        %413 = vst [vmem:[#allocation3 + $0x7e0] sm:$0xff] %v381
        %414 = vst [vmem:[#allocation3 + $0x828] sm:$0xff] %v382
        %415 = vst [vmem:[#allocation3 + $0x870] sm:$0xff] %v383
        %416 = vst [vmem:[#allocation3 + $0x8b8] sm:$0xff] %v384
        %v417 = vld [vmem:[#allocation2 + $0x1] sm:$0xff]
        %v418 = vld [vmem:[#allocation2 + $0x9] sm:$0xff]
        %v419 = vld [vmem:[#allocation2 + $0x19] sm:$0xff]
        %v420 = vld [vmem:[#allocation2 + $0x21] sm:$0xff]
        %v421 = vld [vmem:[#allocation2 + $0x31] sm:$0xff]
        %v422 = vld [vmem:[#allocation2 + $0x39] sm:$0xff]
        %v423 = vld [vmem:[#allocation2 + $0x49] sm:$0xff]
        %v424 = vld [vmem:[#allocation2 + $0x51] sm:$0xff]
        %v425 = vld [vmem:[#allocation2 + $0x61] sm:$0xff]
        %v426 = vld [vmem:[#allocation2 + $0x69] sm:$0xff]
        %v427 = vld [vmem:[#allocation2 + $0x79] sm:$0xff]
        %v428 = vld [vmem:[#allocation2 + $0x81] sm:$0xff]
        %v429 = vld [vmem:[#allocation2 + $0x91] sm:$0xff]
        %v430 = vld [vmem:[#allocation2 + $0x99] sm:$0xff]
        %v431 = vld [vmem:[#allocation2 + $0xa9] sm:$0xff]
        %v432 = vld [vmem:[#allocation2 + $0xb1] sm:$0xff]
        %v433 = vld [vmem:[#allocation2 + $0xc1] sm:$0xff]
        %v434 = vld [vmem:[#allocation2 + $0xc9] sm:$0xff]
        %v435 = vld [vmem:[#allocation2 + $0xd9] sm:$0xff]
        %v436 = vld [vmem:[#allocation2 + $0xe1] sm:$0xff]
        %v437 = vld [vmem:[#allocation2 + $0xf1] sm:$0xff]
        %v438 = vld [vmem:[#allocation2 + $0xf9] sm:$0xff]
        %v439 = vld [vmem:[#allocation2 + $0x109] sm:$0xff]
        %v440 = vld [vmem:[#allocation2 + $0x111] sm:$0xff]
        %v441 = vld [vmem:[#allocation2 + $0x121] sm:$0xff]
        %v442 = vld [vmem:[#allocation2 + $0x129] sm:$0xff]
        %v443 = vld [vmem:[#allocation2 + $0x139] sm:$0xff]
        %v444 = vld [vmem:[#allocation2 + $0x141] sm:$0xff]
        %v445 = vld [vmem:[#allocation2 + $0x151] sm:$0xff]
        %v446 = vld [vmem:[#allocation2 + $0x159] sm:$0xff]
        %v447 = vld [vmem:[#allocation2 + $0x169] sm:$0xff]
        %v448 = vld [vmem:[#allocation2 + $0x171] sm:$0xff]
        %449 = vst [vmem:[#allocation3 + $0x8] sm:$0xff] %v417
        %450 = vst [vmem:[#allocation3 + $0x50] sm:$0xff] %v418
        %451 = vst [vmem:[#allocation3 + $0x98] sm:$0xff] %v419
        %452 = vst [vmem:[#allocation3 + $0xe0] sm:$0xff] %v420
        %453 = vst [vmem:[#allocation3 + $0x128] sm:$0xff] %v421
        %454 = vst [vmem:[#allocation3 + $0x170] sm:$0xff] %v422
        %455 = vst [vmem:[#allocation3 + $0x1b8] sm:$0xff] %v423
        %456 = vst [vmem:[#allocation3 + $0x200] sm:$0xff] %v424
        %457 = vst [vmem:[#allocation3 + $0x248] sm:$0xff] %v425
        %458 = vst [vmem:[#allocation3 + $0x290] sm:$0xff] %v426
        %459 = vst [vmem:[#allocation3 + $0x2d8] sm:$0xff] %v427
        %460 = vst [vmem:[#allocation3 + $0x320] sm:$0xff] %v428
        %461 = vst [vmem:[#allocation3 + $0x368] sm:$0xff] %v429
        %462 = vst [vmem:[#allocation3 + $0x3b0] sm:$0xff] %v430
        %463 = vst [vmem:[#allocation3 + $0x3f8] sm:$0xff] %v431
        %464 = vst [vmem:[#allocation3 + $0x440] sm:$0xff] %v432
        %465 = vst [vmem:[#allocation3 + $0x488] sm:$0xff] %v433
        %466 = vst [vmem:[#allocation3 + $0x4d0] sm:$0xff] %v434
        %467 = vst [vmem:[#allocation3 + $0x518] sm:$0xff] %v435
        %468 = vst [vmem:[#allocation3 + $0x560] sm:$0xff] %v436
        %469 = vst [vmem:[#allocation3 + $0x5a8] sm:$0xff] %v437
        %470 = vst [vmem:[#allocation3 + $0x5f0] sm:$0xff] %v438
        %471 = vst [vmem:[#allocation3 + $0x638] sm:$0xff] %v439
        %472 = vst [vmem:[#allocation3 + $0x680] sm:$0xff] %v440
        %473 = vst [vmem:[#allocation3 + $0x6c8] sm:$0xff] %v441
        %474 = vst [vmem:[#allocation3 + $0x710] sm:$0xff] %v442
        %475 = vst [vmem:[#allocation3 + $0x758] sm:$0xff] %v443
        %476 = vst [vmem:[#allocation3 + $0x7a0] sm:$0xff] %v444
        %477 = vst [vmem:[#allocation3 + $0x7e8] sm:$0xff] %v445
        %478 = vst [vmem:[#allocation3 + $0x830] sm:$0xff] %v446
        %479 = vst [vmem:[#allocation3 + $0x878] sm:$0xff] %v447
        %480 = vst [vmem:[#allocation3 + $0x8c0] sm:$0xff] %v448
        %v481 = vld [vmem:[#allocation2 + $0x2] sm:$0xff]
        %v482 = vld [vmem:[#allocation2 + $0xa] sm:$0xff]
        %v483 = vld [vmem:[#allocation2 + $0x1a] sm:$0xff]
        %v484 = vld [vmem:[#allocation2 + $0x22] sm:$0xff]
        %v485 = vld [vmem:[#allocation2 + $0x32] sm:$0xff]
        %v486 = vld [vmem:[#allocation2 + $0x3a] sm:$0xff]
        %v487 = vld [vmem:[#allocation2 + $0x4a] sm:$0xff]
        %v488 = vld [vmem:[#allocation2 + $0x52] sm:$0xff]
        %v489 = vld [vmem:[#allocation2 + $0x62] sm:$0xff]
        %v490 = vld [vmem:[#allocation2 + $0x6a] sm:$0xff]
        %v491 = vld [vmem:[#allocation2 + $0x7a] sm:$0xff]
        %v492 = vld [vmem:[#allocation2 + $0x82] sm:$0xff]
        %v493 = vld [vmem:[#allocation2 + $0x92] sm:$0xff]
        %v494 = vld [vmem:[#allocation2 + $0x9a] sm:$0xff]
        %v495 = vld [vmem:[#allocation2 + $0xaa] sm:$0xff]
        %v496 = vld [vmem:[#allocation2 + $0xb2] sm:$0xff]
        %v497 = vld [vmem:[#allocation2 + $0xc2] sm:$0xff]
        %v498 = vld [vmem:[#allocation2 + $0xca] sm:$0xff]
        %v499 = vld [vmem:[#allocation2 + $0xda] sm:$0xff]
        %v500 = vld [vmem:[#allocation2 + $0xe2] sm:$0xff]
        %v501 = vld [vmem:[#allocation2 + $0xf2] sm:$0xff]
        %v502 = vld [vmem:[#allocation2 + $0xfa] sm:$0xff]
        %v503 = vld [vmem:[#allocation2 + $0x10a] sm:$0xff]
        %v504 = vld [vmem:[#allocation2 + $0x112] sm:$0xff]
        %v505 = vld [vmem:[#allocation2 + $0x122] sm:$0xff]
        %v506 = vld [vmem:[#allocation2 + $0x12a] sm:$0xff]
        %v507 = vld [vmem:[#allocation2 + $0x13a] sm:$0xff]
        %v508 = vld [vmem:[#allocation2 + $0x142] sm:$0xff]
        %v509 = vld [vmem:[#allocation2 + $0x152] sm:$0xff]
        %v510 = vld [vmem:[#allocation2 + $0x15a] sm:$0xff]
        %v511 = vld [vmem:[#allocation2 + $0x16a] sm:$0xff]
        %v512 = vld [vmem:[#allocation2 + $0x172] sm:$0xff]
        %513 = vst [vmem:[#allocation3 + $0x10] sm:$0xff] %v481
        %514 = vst [vmem:[#allocation3 + $0x58] sm:$0xff] %v482
        %515 = vst [vmem:[#allocation3 + $0xa0] sm:$0xff] %v483
        %516 = vst [vmem:[#allocation3 + $0xe8] sm:$0xff] %v484
        %517 = vst [vmem:[#allocation3 + $0x130] sm:$0xff] %v485
        %518 = vst [vmem:[#allocation3 + $0x178] sm:$0xff] %v486
        %519 = vst [vmem:[#allocation3 + $0x1c0] sm:$0xff] %v487
        %520 = vst [vmem:[#allocation3 + $0x208] sm:$0xff] %v488
        %521 = vst [vmem:[#allocation3 + $0x250] sm:$0xff] %v489
        %522 = vst [vmem:[#allocation3 + $0x298] sm:$0xff] %v490
        %523 = vst [vmem:[#allocation3 + $0x2e0] sm:$0xff] %v491
        %524 = vst [vmem:[#allocation3 + $0x328] sm:$0xff] %v492
        %525 = vst [vmem:[#allocation3 + $0x370] sm:$0xff] %v493
        %526 = vst [vmem:[#allocation3 + $0x3b8] sm:$0xff] %v494
        %527 = vst [vmem:[#allocation3 + $0x400] sm:$0xff] %v495
        %528 = vst [vmem:[#allocation3 + $0x448] sm:$0xff] %v496
        %529 = vst [vmem:[#allocation3 + $0x490] sm:$0xff] %v497
        %530 = vst [vmem:[#allocation3 + $0x4d8] sm:$0xff] %v498
        %531 = vst [vmem:[#allocation3 + $0x520] sm:$0xff] %v499
        %532 = vst [vmem:[#allocation3 + $0x568] sm:$0xff] %v500
        %533 = vst [vmem:[#allocation3 + $0x5b0] sm:$0xff] %v501
        %534 = vst [vmem:[#allocation3 + $0x5f8] sm:$0xff] %v502
        %535 = vst [vmem:[#allocation3 + $0x640] sm:$0xff] %v503
        %536 = vst [vmem:[#allocation3 + $0x688] sm:$0xff] %v504
        %537 = vst [vmem:[#allocation3 + $0x6d0] sm:$0xff] %v505
        %538 = vst [vmem:[#allocation3 + $0x718] sm:$0xff] %v506
        %539 = vst [vmem:[#allocation3 + $0x760] sm:$0xff] %v507
        %540 = vst [vmem:[#allocation3 + $0x7a8] sm:$0xff] %v508
        %541 = vst [vmem:[#allocation3 + $0x7f0] sm:$0xff] %v509
        %542 = vst [vmem:[#allocation3 + $0x838] sm:$0xff] %v510
        %543 = vst [vmem:[#allocation3 + $0x880] sm:$0xff] %v511
        %544 = vst [vmem:[#allocation3 + $0x8c8] sm:$0xff] %v512
        %v545 = vld [vmem:[%s320] sm:$0xff]
        %v546 = vld [vmem:[%s320 + $0x8] sm:$0xff]
        %v547 = vld [vmem:[%s320 + $0x18] sm:$0xff]
        %v548 = vld [vmem:[%s320 + $0x20] sm:$0xff]
        %v549 = vld [vmem:[%s320 + $0x30] sm:$0xff]
        %v550 = vld [vmem:[%s320 + $0x38] sm:$0xff]
        %v551 = vld [vmem:[%s320 + $0x48] sm:$0xff]
        %v552 = vld [vmem:[%s320 + $0x50] sm:$0xff]
        %v553 = vld [vmem:[%s320 + $0x60] sm:$0xff]
        %v554 = vld [vmem:[%s320 + $0x68] sm:$0xff]
        %v555 = vld [vmem:[%s320 + $0x78] sm:$0xff]
        %v556 = vld [vmem:[%s320 + $0x80] sm:$0xff]
        %v557 = vld [vmem:[%s320 + $0x90] sm:$0xff]
        %v558 = vld [vmem:[%s320 + $0x98] sm:$0xff]
        %v559 = vld [vmem:[%s320 + $0xa8] sm:$0xff]
        %v560 = vld [vmem:[%s320 + $0xb0] sm:$0xff]
        %v561 = vld [vmem:[%s320 + $0xc0] sm:$0xff]
        %v562 = vld [vmem:[%s320 + $0xc8] sm:$0xff]
        %v563 = vld [vmem:[%s320 + $0xd8] sm:$0xff]
        %v564 = vld [vmem:[%s320 + $0xe0] sm:$0xff]
        %v565 = vld [vmem:[%s320 + $0xf0] sm:$0xff]
        %v566 = vld [vmem:[%s320 + $0xf8] sm:$0xff]
        %v567 = vld [vmem:[%s320 + $0x108] sm:$0xff]
        %v568 = vld [vmem:[%s320 + $0x110] sm:$0xff]
        %v569 = vld [vmem:[%s320 + $0x120] sm:$0xff]
        %v570 = vld [vmem:[%s320 + $0x128] sm:$0xff]
        %v571 = vld [vmem:[%s320 + $0x138] sm:$0xff]
        %v572 = vld [vmem:[%s320 + $0x140] sm:$0xff]
        %v573 = vld [vmem:[%s320 + $0x150] sm:$0xff]
        %v574 = vld [vmem:[%s320 + $0x158] sm:$0xff]
        %v575 = vld [vmem:[%s320 + $0x168] sm:$0xff]
        %v576 = vld [vmem:[%s320 + $0x170] sm:$0xff]
        %577 = vst [vmem:[#allocation3 + $0x18] sm:$0xff] %v545
        %578 = vst [vmem:[#allocation3 + $0x60] sm:$0xff] %v546
        %579 = vst [vmem:[#allocation3 + $0xa8] sm:$0xff] %v547
        %580 = vst [vmem:[#allocation3 + $0xf0] sm:$0xff] %v548
        %581 = vst [vmem:[#allocation3 + $0x138] sm:$0xff] %v549
        %582 = vst [vmem:[#allocation3 + $0x180] sm:$0xff] %v550
        %583 = vst [vmem:[#allocation3 + $0x1c8] sm:$0xff] %v551
        %584 = vst [vmem:[#allocation3 + $0x210] sm:$0xff] %v552
        %585 = vst [vmem:[#allocation3 + $0x258] sm:$0xff] %v553
        %586 = vst [vmem:[#allocation3 + $0x2a0] sm:$0xff] %v554
        %587 = vst [vmem:[#allocation3 + $0x2e8] sm:$0xff] %v555
        %588 = vst [vmem:[#allocation3 + $0x330] sm:$0xff] %v556
        %589 = vst [vmem:[#allocation3 + $0x378] sm:$0xff] %v557
        %590 = vst [vmem:[#allocation3 + $0x3c0] sm:$0xff] %v558
        %591 = vst [vmem:[#allocation3 + $0x408] sm:$0xff] %v559
        %592 = vst [vmem:[#allocation3 + $0x450] sm:$0xff] %v560
        %593 = vst [vmem:[#allocation3 + $0x498] sm:$0xff] %v561
        %594 = vst [vmem:[#allocation3 + $0x4e0] sm:$0xff] %v562
        %595 = vst [vmem:[#allocation3 + $0x528] sm:$0xff] %v563
        %596 = vst [vmem:[#allocation3 + $0x570] sm:$0xff] %v564
        %597 = vst [vmem:[#allocation3 + $0x5b8] sm:$0xff] %v565
        %598 = vst [vmem:[#allocation3 + $0x600] sm:$0xff] %v566
        %599 = vst [vmem:[#allocation3 + $0x648] sm:$0xff] %v567
        %600 = vst [vmem:[#allocation3 + $0x690] sm:$0xff] %v568
        %601 = vst [vmem:[#allocation3 + $0x6d8] sm:$0xff] %v569
        %602 = vst [vmem:[#allocation3 + $0x720] sm:$0xff] %v570
        %603 = vst [vmem:[#allocation3 + $0x768] sm:$0xff] %v571
        %604 = vst [vmem:[#allocation3 + $0x7b0] sm:$0xff] %v572
        %605 = vst [vmem:[#allocation3 + $0x7f8] sm:$0xff] %v573
        %606 = vst [vmem:[#allocation3 + $0x840] sm:$0xff] %v574
        %607 = vst [vmem:[#allocation3 + $0x888] sm:$0xff] %v575
        %608 = vst [vmem:[#allocation3 + $0x8d0] sm:$0xff] %v576
        %v609 = vld [vmem:[%s320 + $0x1] sm:$0xff]
        %v610 = vld [vmem:[%s320 + $0x9] sm:$0xff]
        %v611 = vld [vmem:[%s320 + $0x19] sm:$0xff]
        %v612 = vld [vmem:[%s320 + $0x21] sm:$0xff]
        %v613 = vld [vmem:[%s320 + $0x31] sm:$0xff]
        %v614 = vld [vmem:[%s320 + $0x39] sm:$0xff]
        %v615 = vld [vmem:[%s320 + $0x49] sm:$0xff]
        %v616 = vld [vmem:[%s320 + $0x51] sm:$0xff]
        %v617 = vld [vmem:[%s320 + $0x61] sm:$0xff]
        %v618 = vld [vmem:[%s320 + $0x69] sm:$0xff]
        %v619 = vld [vmem:[%s320 + $0x79] sm:$0xff]
        %v620 = vld [vmem:[%s320 + $0x81] sm:$0xff]
        %v621 = vld [vmem:[%s320 + $0x91] sm:$0xff]
        %v622 = vld [vmem:[%s320 + $0x99] sm:$0xff]
        %v623 = vld [vmem:[%s320 + $0xa9] sm:$0xff]
        %v624 = vld [vmem:[%s320 + $0xb1] sm:$0xff]
        %v625 = vld [vmem:[%s320 + $0xc1] sm:$0xff]
        %v626 = vld [vmem:[%s320 + $0xc9] sm:$0xff]
        %v627 = vld [vmem:[%s320 + $0xd9] sm:$0xff]
        %v628 = vld [vmem:[%s320 + $0xe1] sm:$0xff]
        %v629 = vld [vmem:[%s320 + $0xf1] sm:$0xff]
        %v630 = vld [vmem:[%s320 + $0xf9] sm:$0xff]
        %v631 = vld [vmem:[%s320 + $0x109] sm:$0xff]
        %v632 = vld [vmem:[%s320 + $0x111] sm:$0xff]
        %v633 = vld [vmem:[%s320 + $0x121] sm:$0xff]
        %v634 = vld [vmem:[%s320 + $0x129] sm:$0xff]
        %v635 = vld [vmem:[%s320 + $0x139] sm:$0xff]
        %v636 = vld [vmem:[%s320 + $0x141] sm:$0xff]
        %v637 = vld [vmem:[%s320 + $0x151] sm:$0xff]
        %v638 = vld [vmem:[%s320 + $0x159] sm:$0xff]
        %v639 = vld [vmem:[%s320 + $0x169] sm:$0xff]
        %v640 = vld [vmem:[%s320 + $0x171] sm:$0xff]
        %641 = vst [vmem:[#allocation3 + $0x20] sm:$0xff] %v609
        %642 = vst [vmem:[#allocation3 + $0x68] sm:$0xff] %v610
        %643 = vst [vmem:[#allocation3 + $0xb0] sm:$0xff] %v611
        %644 = vst [vmem:[#allocation3 + $0xf8] sm:$0xff] %v612
        %645 = vst [vmem:[#allocation3 + $0x140] sm:$0xff] %v613
        %646 = vst [vmem:[#allocation3 + $0x188] sm:$0xff] %v614
        %647 = vst [vmem:[#allocation3 + $0x1d0] sm:$0xff] %v615
        %648 = vst [vmem:[#allocation3 + $0x218] sm:$0xff] %v616
        %649 = vst [vmem:[#allocation3 + $0x260] sm:$0xff] %v617
        %650 = vst [vmem:[#allocation3 + $0x2a8] sm:$0xff] %v618
        %651 = vst [vmem:[#allocation3 + $0x2f0] sm:$0xff] %v619
        %652 = vst [vmem:[#allocation3 + $0x338] sm:$0xff] %v620
        %653 = vst [vmem:[#allocation3 + $0x380] sm:$0xff] %v621
        %654 = vst [vmem:[#allocation3 + $0x3c8] sm:$0xff] %v622
        %655 = vst [vmem:[#allocation3 + $0x410] sm:$0xff] %v623
        %656 = vst [vmem:[#allocation3 + $0x458] sm:$0xff] %v624
        %657 = vst [vmem:[#allocation3 + $0x4a0] sm:$0xff] %v625
        %658 = vst [vmem:[#allocation3 + $0x4e8] sm:$0xff] %v626
        %659 = vst [vmem:[#allocation3 + $0x530] sm:$0xff] %v627
        %660 = vst [vmem:[#allocation3 + $0x578] sm:$0xff] %v628
        %661 = vst [vmem:[#allocation3 + $0x5c0] sm:$0xff] %v629
        %662 = vst [vmem:[#allocation3 + $0x608] sm:$0xff] %v630
        %663 = vst [vmem:[#allocation3 + $0x650] sm:$0xff] %v631
        %664 = vst [vmem:[#allocation3 + $0x698] sm:$0xff] %v632
        %665 = vst [vmem:[#allocation3 + $0x6e0] sm:$0xff] %v633
        %666 = vst [vmem:[#allocation3 + $0x728] sm:$0xff] %v634
        %667 = vst [vmem:[#allocation3 + $0x770] sm:$0xff] %v635
        %668 = vst [vmem:[#allocation3 + $0x7b8] sm:$0xff] %v636
        %669 = vst [vmem:[#allocation3 + $0x800] sm:$0xff] %v637
        %670 = vst [vmem:[#allocation3 + $0x848] sm:$0xff] %v638
        %671 = vst [vmem:[#allocation3 + $0x890] sm:$0xff] %v639
        %672 = vst [vmem:[#allocation3 + $0x8d8] sm:$0xff] %v640
        %v673 = vld [vmem:[%s320 + $0x2] sm:$0xff]
        %v674 = vld [vmem:[%s320 + $0xa] sm:$0xff]
        %v675 = vld [vmem:[%s320 + $0x1a] sm:$0xff]
        %v676 = vld [vmem:[%s320 + $0x22] sm:$0xff]
        %v677 = vld [vmem:[%s320 + $0x32] sm:$0xff]
        %v678 = vld [vmem:[%s320 + $0x3a] sm:$0xff]
        %v679 = vld [vmem:[%s320 + $0x4a] sm:$0xff]
        %v680 = vld [vmem:[%s320 + $0x52] sm:$0xff]
        %v681 = vld [vmem:[%s320 + $0x62] sm:$0xff]
        %v682 = vld [vmem:[%s320 + $0x6a] sm:$0xff]
        %v683 = vld [vmem:[%s320 + $0x7a] sm:$0xff]
        %v684 = vld [vmem:[%s320 + $0x82] sm:$0xff]
        %v685 = vld [vmem:[%s320 + $0x92] sm:$0xff]
        %v686 = vld [vmem:[%s320 + $0x9a] sm:$0xff]
        %v687 = vld [vmem:[%s320 + $0xaa] sm:$0xff]
        %v688 = vld [vmem:[%s320 + $0xb2] sm:$0xff]
        %v689 = vld [vmem:[%s320 + $0xc2] sm:$0xff]
        %v690 = vld [vmem:[%s320 + $0xca] sm:$0xff]
        %v691 = vld [vmem:[%s320 + $0xda] sm:$0xff]
        %v692 = vld [vmem:[%s320 + $0xe2] sm:$0xff]
        %v693 = vld [vmem:[%s320 + $0xf2] sm:$0xff]
        %v694 = vld [vmem:[%s320 + $0xfa] sm:$0xff]
        %v695 = vld [vmem:[%s320 + $0x10a] sm:$0xff]
        %v696 = vld [vmem:[%s320 + $0x112] sm:$0xff]
        %v697 = vld [vmem:[%s320 + $0x122] sm:$0xff]
        %v698 = vld [vmem:[%s320 + $0x12a] sm:$0xff]
        %v699 = vld [vmem:[%s320 + $0x13a] sm:$0xff]
        %v700 = vld [vmem:[%s320 + $0x142] sm:$0xff]
        %v701 = vld [vmem:[%s320 + $0x152] sm:$0xff]
        %v702 = vld [vmem:[%s320 + $0x15a] sm:$0xff]
        %v703 = vld [vmem:[%s320 + $0x16a] sm:$0xff]
        %v704 = vld [vmem:[%s320 + $0x172] sm:$0xff]
        %705 = vst [vmem:[#allocation3 + $0x28] sm:$0xff] %v673
        %706 = vst [vmem:[#allocation3 + $0x70] sm:$0xff] %v674
        %707 = vst [vmem:[#allocation3 + $0xb8] sm:$0xff] %v675
        %708 = vst [vmem:[#allocation3 + $0x100] sm:$0xff] %v676
        %709 = vst [vmem:[#allocation3 + $0x148] sm:$0xff] %v677
        %710 = vst [vmem:[#allocation3 + $0x190] sm:$0xff] %v678
        %711 = vst [vmem:[#allocation3 + $0x1d8] sm:$0xff] %v679
        %712 = vst [vmem:[#allocation3 + $0x220] sm:$0xff] %v680
        %713 = vst [vmem:[#allocation3 + $0x268] sm:$0xff] %v681
        %714 = vst [vmem:[#allocation3 + $0x2b0] sm:$0xff] %v682
        %715 = vst [vmem:[#allocation3 + $0x2f8] sm:$0xff] %v683
        %716 = vst [vmem:[#allocation3 + $0x340] sm:$0xff] %v684
        %717 = vst [vmem:[#allocation3 + $0x388] sm:$0xff] %v685
        %718 = vst [vmem:[#allocation3 + $0x3d0] sm:$0xff] %v686
        %719 = vst [vmem:[#allocation3 + $0x418] sm:$0xff] %v687
        %720 = vst [vmem:[#allocation3 + $0x460] sm:$0xff] %v688
        %721 = vst [vmem:[#allocation3 + $0x4a8] sm:$0xff] %v689
        %722 = vst [vmem:[#allocation3 + $0x4f0] sm:$0xff] %v690
        %723 = vst [vmem:[#allocation3 + $0x538] sm:$0xff] %v691
        %724 = vst [vmem:[#allocation3 + $0x580] sm:$0xff] %v692
        %725 = vst [vmem:[#allocation3 + $0x5c8] sm:$0xff] %v693
        %726 = vst [vmem:[#allocation3 + $0x610] sm:$0xff] %v694
        %727 = vst [vmem:[#allocation3 + $0x658] sm:$0xff] %v695
        %728 = vst [vmem:[#allocation3 + $0x6a0] sm:$0xff] %v696
        %729 = vst [vmem:[#allocation3 + $0x6e8] sm:$0xff] %v697
        %730 = vst [vmem:[#allocation3 + $0x730] sm:$0xff] %v698
        %731 = vst [vmem:[#allocation3 + $0x778] sm:$0xff] %v699
        %732 = vst [vmem:[#allocation3 + $0x7c0] sm:$0xff] %v700
        %733 = vst [vmem:[#allocation3 + $0x808] sm:$0xff] %v701
        %734 = vst [vmem:[#allocation3 + $0x850] sm:$0xff] %v702
        %735 = vst [vmem:[#allocation3 + $0x898] sm:$0xff] %v703
        %736 = vst [vmem:[#allocation3 + $0x8e0] sm:$0xff] %v704
        %s737 = scalar_lea.vmem [#allocation2], 48
        %v738 = vld [vmem:[%s737] sm:$0xff]
        %v739 = vld [vmem:[%s737 + $0x8] sm:$0xff]
        %v740 = vld [vmem:[%s737 + $0x18] sm:$0xff]
        %v741 = vld [vmem:[%s737 + $0x20] sm:$0xff]
        %v742 = vld [vmem:[%s737 + $0x30] sm:$0xff]
        %v743 = vld [vmem:[%s737 + $0x38] sm:$0xff]
        %v744 = vld [vmem:[%s737 + $0x48] sm:$0xff]
        %v745 = vld [vmem:[%s737 + $0x50] sm:$0xff]
        %v746 = vld [vmem:[%s737 + $0x60] sm:$0xff]
        %v747 = vld [vmem:[%s737 + $0x68] sm:$0xff]
        %v748 = vld [vmem:[%s737 + $0x78] sm:$0xff]
        %v749 = vld [vmem:[%s737 + $0x80] sm:$0xff]
        %v750 = vld [vmem:[%s737 + $0x90] sm:$0xff]
        %v751 = vld [vmem:[%s737 + $0x98] sm:$0xff]
        %v752 = vld [vmem:[%s737 + $0xa8] sm:$0xff]
        %v753 = vld [vmem:[%s737 + $0xb0] sm:$0xff]
        %v754 = vld [vmem:[%s737 + $0xc0] sm:$0xff]
        %v755 = vld [vmem:[%s737 + $0xc8] sm:$0xff]
        %v756 = vld [vmem:[%s737 + $0xd8] sm:$0xff]
        %v757 = vld [vmem:[%s737 + $0xe0] sm:$0xff]
        %v758 = vld [vmem:[%s737 + $0xf0] sm:$0xff]
        %v759 = vld [vmem:[%s737 + $0xf8] sm:$0xff]
        %v760 = vld [vmem:[%s737 + $0x108] sm:$0xff]
        %v761 = vld [vmem:[%s737 + $0x110] sm:$0xff]
        %v762 = vld [vmem:[%s737 + $0x120] sm:$0xff]
        %v763 = vld [vmem:[%s737 + $0x128] sm:$0xff]
        %v764 = vld [vmem:[%s737 + $0x138] sm:$0xff]
        %v765 = vld [vmem:[%s737 + $0x140] sm:$0xff]
        %v766 = vld [vmem:[%s737 + $0x150] sm:$0xff]
        %v767 = vld [vmem:[%s737 + $0x158] sm:$0xff]
        %v768 = vld [vmem:[%s737 + $0x168] sm:$0xff]
        %v769 = vld [vmem:[%s737 + $0x170] sm:$0xff]
        %770 = vst [vmem:[#allocation3 + $0x30] sm:$0xff] %v738
        %771 = vst [vmem:[#allocation3 + $0x78] sm:$0xff] %v739
        %772 = vst [vmem:[#allocation3 + $0xc0] sm:$0xff] %v740
        %773 = vst [vmem:[#allocation3 + $0x108] sm:$0xff] %v741
        %774 = vst [vmem:[#allocation3 + $0x150] sm:$0xff] %v742
        %775 = vst [vmem:[#allocation3 + $0x198] sm:$0xff] %v743
        %776 = vst [vmem:[#allocation3 + $0x1e0] sm:$0xff] %v744
        %777 = vst [vmem:[#allocation3 + $0x228] sm:$0xff] %v745
        %778 = vst [vmem:[#allocation3 + $0x270] sm:$0xff] %v746
        %779 = vst [vmem:[#allocation3 + $0x2b8] sm:$0xff] %v747
        %780 = vst [vmem:[#allocation3 + $0x300] sm:$0xff] %v748
        %781 = vst [vmem:[#allocation3 + $0x348] sm:$0xff] %v749
        %782 = vst [vmem:[#allocation3 + $0x390] sm:$0xff] %v750
        %783 = vst [vmem:[#allocation3 + $0x3d8] sm:$0xff] %v751
        %784 = vst [vmem:[#allocation3 + $0x420] sm:$0xff] %v752
        %785 = vst [vmem:[#allocation3 + $0x468] sm:$0xff] %v753
        %786 = vst [vmem:[#allocation3 + $0x4b0] sm:$0xff] %v754
        %787 = vst [vmem:[#allocation3 + $0x4f8] sm:$0xff] %v755
        %788 = vst [vmem:[#allocation3 + $0x540] sm:$0xff] %v756
        %789 = vst [vmem:[#allocation3 + $0x588] sm:$0xff] %v757
        %790 = vst [vmem:[#allocation3 + $0x5d0] sm:$0xff] %v758
        %791 = vst [vmem:[#allocation3 + $0x618] sm:$0xff] %v759
        %792 = vst [vmem:[#allocation3 + $0x660] sm:$0xff] %v760
        %793 = vst [vmem:[#allocation3 + $0x6a8] sm:$0xff] %v761
        %794 = vst [vmem:[#allocation3 + $0x6f0] sm:$0xff] %v762
        %795 = vst [vmem:[#allocation3 + $0x738] sm:$0xff] %v763
        %796 = vst [vmem:[#allocation3 + $0x780] sm:$0xff] %v764
        %797 = vst [vmem:[#allocation3 + $0x7c8] sm:$0xff] %v765
        %798 = vst [vmem:[#allocation3 + $0x810] sm:$0xff] %v766
        %799 = vst [vmem:[#allocation3 + $0x858] sm:$0xff] %v767
        %800 = vst [vmem:[#allocation3 + $0x8a0] sm:$0xff] %v768
        %801 = vst [vmem:[#allocation3 + $0x8e8] sm:$0xff] %v769
        %v802 = vld [vmem:[%s737 + $0x1] sm:$0xff]
        %v803 = vld [vmem:[%s737 + $0x9] sm:$0xff]
        %v804 = vld [vmem:[%s737 + $0x19] sm:$0xff]
        %v805 = vld [vmem:[%s737 + $0x21] sm:$0xff]
        %v806 = vld [vmem:[%s737 + $0x31] sm:$0xff]
        %v807 = vld [vmem:[%s737 + $0x39] sm:$0xff]
        %v808 = vld [vmem:[%s737 + $0x49] sm:$0xff]
        %v809 = vld [vmem:[%s737 + $0x51] sm:$0xff]
        %v810 = vld [vmem:[%s737 + $0x61] sm:$0xff]
        %v811 = vld [vmem:[%s737 + $0x69] sm:$0xff]
        %v812 = vld [vmem:[%s737 + $0x79] sm:$0xff]
        %v813 = vld [vmem:[%s737 + $0x81] sm:$0xff]
        %v814 = vld [vmem:[%s737 + $0x91] sm:$0xff]
        %v815 = vld [vmem:[%s737 + $0x99] sm:$0xff]
        %v816 = vld [vmem:[%s737 + $0xa9] sm:$0xff]
        %v817 = vld [vmem:[%s737 + $0xb1] sm:$0xff]
        %v818 = vld [vmem:[%s737 + $0xc1] sm:$0xff]
        %v819 = vld [vmem:[%s737 + $0xc9] sm:$0xff]
        %v820 = vld [vmem:[%s737 + $0xd9] sm:$0xff]
        %v821 = vld [vmem:[%s737 + $0xe1] sm:$0xff]
        %v822 = vld [vmem:[%s737 + $0xf1] sm:$0xff]
        %v823 = vld [vmem:[%s737 + $0xf9] sm:$0xff]
        %v824 = vld [vmem:[%s737 + $0x109] sm:$0xff]
        %v825 = vld [vmem:[%s737 + $0x111] sm:$0xff]
        %v826 = vld [vmem:[%s737 + $0x121] sm:$0xff]
        %v827 = vld [vmem:[%s737 + $0x129] sm:$0xff]
        %v828 = vld [vmem:[%s737 + $0x139] sm:$0xff]
        %v829 = vld [vmem:[%s737 + $0x141] sm:$0xff]
        %v830 = vld [vmem:[%s737 + $0x151] sm:$0xff]
        %v831 = vld [vmem:[%s737 + $0x159] sm:$0xff]
        %v832 = vld [vmem:[%s737 + $0x169] sm:$0xff]
        %v833 = vld [vmem:[%s737 + $0x171] sm:$0xff]
        %834 = vst [vmem:[#allocation3 + $0x38] sm:$0xff] %v802
        %835 = vst [vmem:[#allocation3 + $0x80] sm:$0xff] %v803
        %836 = vst [vmem:[#allocation3 + $0xc8] sm:$0xff] %v804
        %837 = vst [vmem:[#allocation3 + $0x110] sm:$0xff] %v805
        %838 = vst [vmem:[#allocation3 + $0x158] sm:$0xff] %v806
        %839 = vst [vmem:[#allocation3 + $0x1a0] sm:$0xff] %v807
        %840 = vst [vmem:[#allocation3 + $0x1e8] sm:$0xff] %v808
        %841 = vst [vmem:[#allocation3 + $0x230] sm:$0xff] %v809
        %842 = vst [vmem:[#allocation3 + $0x278] sm:$0xff] %v810
        %843 = vst [vmem:[#allocation3 + $0x2c0] sm:$0xff] %v811
        %844 = vst [vmem:[#allocation3 + $0x308] sm:$0xff] %v812
        %845 = vst [vmem:[#allocation3 + $0x350] sm:$0xff] %v813
        %846 = vst [vmem:[#allocation3 + $0x398] sm:$0xff] %v814
        %847 = vst [vmem:[#allocation3 + $0x3e0] sm:$0xff] %v815
        %848 = vst [vmem:[#allocation3 + $0x428] sm:$0xff] %v816
        %849 = vst [vmem:[#allocation3 + $0x470] sm:$0xff] %v817
        %850 = vst [vmem:[#allocation3 + $0x4b8] sm:$0xff] %v818
        %851 = vst [vmem:[#allocation3 + $0x500] sm:$0xff] %v819
        %852 = vst [vmem:[#allocation3 + $0x548] sm:$0xff] %v820
        %853 = vst [vmem:[#allocation3 + $0x590] sm:$0xff] %v821
        %854 = vst [vmem:[#allocation3 + $0x5d8] sm:$0xff] %v822
        %855 = vst [vmem:[#allocation3 + $0x620] sm:$0xff] %v823
        %856 = vst [vmem:[#allocation3 + $0x668] sm:$0xff] %v824
        %857 = vst [vmem:[#allocation3 + $0x6b0] sm:$0xff] %v825
        %858 = vst [vmem:[#allocation3 + $0x6f8] sm:$0xff] %v826
        %859 = vst [vmem:[#allocation3 + $0x740] sm:$0xff] %v827
        %860 = vst [vmem:[#allocation3 + $0x788] sm:$0xff] %v828
        %861 = vst [vmem:[#allocation3 + $0x7d0] sm:$0xff] %v829
        %862 = vst [vmem:[#allocation3 + $0x818] sm:$0xff] %v830
        %863 = vst [vmem:[#allocation3 + $0x860] sm:$0xff] %v831
        %864 = vst [vmem:[#allocation3 + $0x8a8] sm:$0xff] %v832
        %865 = vst [vmem:[#allocation3 + $0x8f0] sm:$0xff] %v833
        %v866 = vld [vmem:[%s737 + $0x2] sm:$0xff]
        %v867 = vld [vmem:[%s737 + $0xa] sm:$0xff]
        %v868 = vld [vmem:[%s737 + $0x1a] sm:$0xff]
        %v869 = vld [vmem:[%s737 + $0x22] sm:$0xff]
        %v870 = vld [vmem:[%s737 + $0x32] sm:$0xff]
        %v871 = vld [vmem:[%s737 + $0x3a] sm:$0xff]
        %v872 = vld [vmem:[%s737 + $0x4a] sm:$0xff]
        %v873 = vld [vmem:[%s737 + $0x52] sm:$0xff]
        %v874 = vld [vmem:[%s737 + $0x62] sm:$0xff]
        %v875 = vld [vmem:[%s737 + $0x6a] sm:$0xff]
        %v876 = vld [vmem:[%s737 + $0x7a] sm:$0xff]
        %v877 = vld [vmem:[%s737 + $0x82] sm:$0xff]
        %v878 = vld [vmem:[%s737 + $0x92] sm:$0xff]
        %v879 = vld [vmem:[%s737 + $0x9a] sm:$0xff]
        %v880 = vld [vmem:[%s737 + $0xaa] sm:$0xff]
        %v881 = vld [vmem:[%s737 + $0xb2] sm:$0xff]
        %v882 = vld [vmem:[%s737 + $0xc2] sm:$0xff]
        %v883 = vld [vmem:[%s737 + $0xca] sm:$0xff]
        %v884 = vld [vmem:[%s737 + $0xda] sm:$0xff]
        %v885 = vld [vmem:[%s737 + $0xe2] sm:$0xff]
        %v886 = vld [vmem:[%s737 + $0xf2] sm:$0xff]
        %v887 = vld [vmem:[%s737 + $0xfa] sm:$0xff]
        %v888 = vld [vmem:[%s737 + $0x10a] sm:$0xff]
        %v889 = vld [vmem:[%s737 + $0x112] sm:$0xff]
        %v890 = vld [vmem:[%s737 + $0x122] sm:$0xff]
        %v891 = vld [vmem:[%s737 + $0x12a] sm:$0xff]
        %v892 = vld [vmem:[%s737 + $0x13a] sm:$0xff]
        %v893 = vld [vmem:[%s737 + $0x142] sm:$0xff]
        %v894 = vld [vmem:[%s737 + $0x152] sm:$0xff]
        %v895 = vld [vmem:[%s737 + $0x15a] sm:$0xff]
        %v896 = vld [vmem:[%s737 + $0x16a] sm:$0xff]
        %v897 = vld [vmem:[%s737 + $0x172] sm:$0xff]
        %898 = vst [vmem:[#allocation3 + $0x40] sm:$0xff] %v866
        %899 = vst [vmem:[#allocation3 + $0x88] sm:$0xff] %v867
        %900 = vst [vmem:[#allocation3 + $0xd0] sm:$0xff] %v868
        %901 = vst [vmem:[#allocation3 + $0x118] sm:$0xff] %v869
        %902 = vst [vmem:[#allocation3 + $0x160] sm:$0xff] %v870
        %903 = vst [vmem:[#allocation3 + $0x1a8] sm:$0xff] %v871
        %904 = vst [vmem:[#allocation3 + $0x1f0] sm:$0xff] %v872
        %905 = vst [vmem:[#allocation3 + $0x238] sm:$0xff] %v873
        %906 = vst [vmem:[#allocation3 + $0x280] sm:$0xff] %v874
        %907 = vst [vmem:[#allocation3 + $0x2c8] sm:$0xff] %v875
        %908 = vst [vmem:[#allocation3 + $0x310] sm:$0xff] %v876
        %909 = vst [vmem:[#allocation3 + $0x358] sm:$0xff] %v877
        %910 = vst [vmem:[#allocation3 + $0x3a0] sm:$0xff] %v878
        %911 = vst [vmem:[#allocation3 + $0x3e8] sm:$0xff] %v879
        %912 = vst [vmem:[#allocation3 + $0x430] sm:$0xff] %v880
        %913 = vst [vmem:[#allocation3 + $0x478] sm:$0xff] %v881
        %914 = vst [vmem:[#allocation3 + $0x4c0] sm:$0xff] %v882
        %915 = vst [vmem:[#allocation3 + $0x508] sm:$0xff] %v883
        %916 = vst [vmem:[#allocation3 + $0x550] sm:$0xff] %v884
        %917 = vst [vmem:[#allocation3 + $0x598] sm:$0xff] %v885
        %918 = vst [vmem:[#allocation3 + $0x5e0] sm:$0xff] %v886
        %919 = vst [vmem:[#allocation3 + $0x628] sm:$0xff] %v887
        %920 = vst [vmem:[#allocation3 + $0x670] sm:$0xff] %v888
        %921 = vst [vmem:[#allocation3 + $0x6b8] sm:$0xff] %v889
        %922 = vst [vmem:[#allocation3 + $0x700] sm:$0xff] %v890
        %923 = vst [vmem:[#allocation3 + $0x748] sm:$0xff] %v891
        %924 = vst [vmem:[#allocation3 + $0x790] sm:$0xff] %v892
        %925 = vst [vmem:[#allocation3 + $0x7d8] sm:$0xff] %v893
        %926 = vst [vmem:[#allocation3 + $0x820] sm:$0xff] %v894
        %927 = vst [vmem:[#allocation3 + $0x868] sm:$0xff] %v895
        %928 = vst [vmem:[#allocation3 + $0x8b0] sm:$0xff] %v896
        %929 = vst [vmem:[#allocation3 + $0x8f8] sm:$0xff] %v897
        %v930 = vld [vmem:[#allocation3] sm:$0xff]
        %v931 = vld [vmem:[#allocation3 + $0x8] sm:$0xff]
        %v932 = vld [vmem:[#allocation3 + $0x10] sm:$0xff]
        %v933 = vld [vmem:[#allocation3 + $0x18] sm:$0xff]
        %v934 = vld [vmem:[#allocation3 + $0x20] sm:$0xff]
        %v935 = vld [vmem:[#allocation3 + $0x28] sm:$0xff]
        %v936 = vld [vmem:[#allocation3 + $0x30] sm:$0xff]
        %v937 = vld [vmem:[#allocation3 + $0x38] sm:$0xff]
        %v938 = vld [vmem:[#allocation3 + $0x40] sm:$0xff]
        %v939 = vld [vmem:[#allocation3 + $0x48] sm:$0xff]
        %v940 = vld [vmem:[#allocation3 + $0x50] sm:$0xff]
        %v941 = vld [vmem:[#allocation3 + $0x58] sm:$0xff]
        %v942 = vld [vmem:[#allocation3 + $0x60] sm:$0xff]
        %v943 = vld [vmem:[#allocation3 + $0x68] sm:$0xff]
        %v944 = vld [vmem:[#allocation3 + $0x70] sm:$0xff]
        %v945 = vld [vmem:[#allocation3 + $0x78] sm:$0xff]
        %v946 = vld [vmem:[#allocation3 + $0x80] sm:$0xff]
        %v947 = vld [vmem:[#allocation3 + $0x88] sm:$0xff]
        %v948 = vld [vmem:[#allocation3 + $0x90] sm:$0xff]
        %v949 = vld [vmem:[#allocation3 + $0x98] sm:$0xff]
        %v950 = vld [vmem:[#allocation3 + $0xa0] sm:$0xff]
        %v951 = vld [vmem:[#allocation3 + $0xa8] sm:$0xff]
        %v952 = vld [vmem:[#allocation3 + $0xb0] sm:$0xff]
        %v953 = vld [vmem:[#allocation3 + $0xb8] sm:$0xff]
        %v954 = vld [vmem:[#allocation3 + $0xc0] sm:$0xff]
        %v955 = vld [vmem:[#allocation3 + $0xc8] sm:$0xff]
        %v956 = vld [vmem:[#allocation3 + $0xd0] sm:$0xff]
        %v957 = vld [vmem:[#allocation3 + $0xd8] sm:$0xff]
        %v958 = vld [vmem:[#allocation3 + $0xe0] sm:$0xff]
        %v959 = vld [vmem:[#allocation3 + $0xe8] sm:$0xff]
        %v960 = vld [vmem:[#allocation3 + $0xf0] sm:$0xff]
        %v961 = vld [vmem:[#allocation3 + $0xf8] sm:$0xff]
        %v962 = vld [vmem:[#allocation3 + $0x100] sm:$0xff]
        %v963 = vld [vmem:[#allocation3 + $0x108] sm:$0xff]
        %v964 = vld [vmem:[#allocation3 + $0x110] sm:$0xff]
        %v965 = vld [vmem:[#allocation3 + $0x118] sm:$0xff]
        %v966 = vld [vmem:[#allocation3 + $0x120] sm:$0xff]
        %v967 = vld [vmem:[#allocation3 + $0x128] sm:$0xff]
        %v968 = vld [vmem:[#allocation3 + $0x130] sm:$0xff]
        %v969 = vld [vmem:[#allocation3 + $0x138] sm:$0xff]
        %v970 = vld [vmem:[#allocation3 + $0x140] sm:$0xff]
        %v971 = vld [vmem:[#allocation3 + $0x148] sm:$0xff]
        %v972 = vld [vmem:[#allocation3 + $0x150] sm:$0xff]
        %v973 = vld [vmem:[#allocation3 + $0x158] sm:$0xff]
        %v974 = vld [vmem:[#allocation3 + $0x160] sm:$0xff]
        %v975 = vld [vmem:[#allocation3 + $0x168] sm:$0xff]
        %v976 = vld [vmem:[#allocation3 + $0x170] sm:$0xff]
        %v977 = vld [vmem:[#allocation3 + $0x178] sm:$0xff]
        %v978 = vld [vmem:[#allocation3 + $0x180] sm:$0xff]
        %v979 = vld [vmem:[#allocation3 + $0x188] sm:$0xff]
        %v980 = vld [vmem:[#allocation3 + $0x190] sm:$0xff]
        %v981 = vld [vmem:[#allocation3 + $0x198] sm:$0xff]
        %v982 = vld [vmem:[#allocation3 + $0x1a0] sm:$0xff]
        %v983 = vld [vmem:[#allocation3 + $0x1a8] sm:$0xff]
        %v984 = vld [vmem:[#allocation3 + $0x1b0] sm:$0xff]
        %v985 = vld [vmem:[#allocation3 + $0x1b8] sm:$0xff]
        %v986 = vld [vmem:[#allocation3 + $0x1c0] sm:$0xff]
        %v987 = vld [vmem:[#allocation3 + $0x1c8] sm:$0xff]
        %v988 = vld [vmem:[#allocation3 + $0x1d0] sm:$0xff]
        %v989 = vld [vmem:[#allocation3 + $0x1d8] sm:$0xff]
        %v990 = vld [vmem:[#allocation3 + $0x1e0] sm:$0xff]
        %v991 = vld [vmem:[#allocation3 + $0x1e8] sm:$0xff]
        %v992 = vld [vmem:[#allocation3 + $0x1f0] sm:$0xff]
        %v993 = vld [vmem:[#allocation3 + $0x1f8] sm:$0xff]
        %v994 = vld [vmem:[#allocation3 + $0x200] sm:$0xff]
        %v995 = vld [vmem:[#allocation3 + $0x208] sm:$0xff]
        %v996 = vld [vmem:[#allocation3 + $0x210] sm:$0xff]
        %v997 = vld [vmem:[#allocation3 + $0x218] sm:$0xff]
        %v998 = vld [vmem:[#allocation3 + $0x220] sm:$0xff]
        %v999 = vld [vmem:[#allocation3 + $0x228] sm:$0xff]
        %v1000 = vld [vmem:[#allocation3 + $0x230] sm:$0xff]
        %v1001 = vld [vmem:[#allocation3 + $0x238] sm:$0xff]
        %v1002 = vld [vmem:[#allocation3 + $0x240] sm:$0xff]
        %v1003 = vld [vmem:[#allocation3 + $0x248] sm:$0xff]
        %v1004 = vld [vmem:[#allocation3 + $0x250] sm:$0xff]
        %v1005 = vld [vmem:[#allocation3 + $0x258] sm:$0xff]
        %v1006 = vld [vmem:[#allocation3 + $0x260] sm:$0xff]
        %v1007 = vld [vmem:[#allocation3 + $0x268] sm:$0xff]
        %v1008 = vld [vmem:[#allocation3 + $0x270] sm:$0xff]
        %v1009 = vld [vmem:[#allocation3 + $0x278] sm:$0xff]
        %v1010 = vld [vmem:[#allocation3 + $0x280] sm:$0xff]
        %v1011 = vld [vmem:[#allocation3 + $0x288] sm:$0xff]
        %v1012 = vld [vmem:[#allocation3 + $0x290] sm:$0xff]
        %v1013 = vld [vmem:[#allocation3 + $0x298] sm:$0xff]
        %v1014 = vld [vmem:[#allocation3 + $0x2a0] sm:$0xff]
        %v1015 = vld [vmem:[#allocation3 + $0x2a8] sm:$0xff]
        %v1016 = vld [vmem:[#allocation3 + $0x2b0] sm:$0xff]
        %v1017 = vld [vmem:[#allocation3 + $0x2b8] sm:$0xff]
        %v1018 = vld [vmem:[#allocation3 + $0x2c0] sm:$0xff]
        %v1019 = vld [vmem:[#allocation3 + $0x2c8] sm:$0xff]
        %v1020 = vld [vmem:[#allocation3 + $0x2d0] sm:$0xff]
        %v1021 = vld [vmem:[#allocation3 + $0x2d8] sm:$0xff]
        %v1022 = vld [vmem:[#allocation3 + $0x2e0] sm:$0xff]
        %v1023 = vld [vmem:[#allocation3 + $0x2e8] sm:$0xff]
        %v1024 = vld [vmem:[#allocation3 + $0x2f0] sm:$0xff]
        %v1025 = vld [vmem:[#allocation3 + $0x2f8] sm:$0xff]
        %v1026 = vld [vmem:[#allocation3 + $0x300] sm:$0xff]
        %v1027 = vld [vmem:[#allocation3 + $0x308] sm:$0xff]
        %v1028 = vld [vmem:[#allocation3 + $0x310] sm:$0xff]
        %v1029 = vld [vmem:[#allocation3 + $0x318] sm:$0xff]
        %v1030 = vld [vmem:[#allocation3 + $0x320] sm:$0xff]
        %v1031 = vld [vmem:[#allocation3 + $0x328] sm:$0xff]
        %v1032 = vld [vmem:[#allocation3 + $0x330] sm:$0xff]
        %v1033 = vld [vmem:[#allocation3 + $0x338] sm:$0xff]
        %v1034 = vld [vmem:[#allocation3 + $0x340] sm:$0xff]
        %v1035 = vld [vmem:[#allocation3 + $0x348] sm:$0xff]
        %v1036 = vld [vmem:[#allocation3 + $0x350] sm:$0xff]
        %v1037 = vld [vmem:[#allocation3 + $0x358] sm:$0xff]
        %v1038 = vld [vmem:[#allocation3 + $0x360] sm:$0xff]
        %v1039 = vld [vmem:[#allocation3 + $0x368] sm:$0xff]
        %v1040 = vld [vmem:[#allocation3 + $0x370] sm:$0xff]
        %v1041 = vld [vmem:[#allocation3 + $0x378] sm:$0xff]
        %v1042 = vld [vmem:[#allocation3 + $0x380] sm:$0xff]
        %v1043 = vld [vmem:[#allocation3 + $0x388] sm:$0xff]
        %v1044 = vld [vmem:[#allocation3 + $0x390] sm:$0xff]
        %v1045 = vld [vmem:[#allocation3 + $0x398] sm:$0xff]
        %v1046 = vld [vmem:[#allocation3 + $0x3a0] sm:$0xff]
        %v1047 = vld [vmem:[#allocation3 + $0x3a8] sm:$0xff]
        %v1048 = vld [vmem:[#allocation3 + $0x3b0] sm:$0xff]
        %v1049 = vld [vmem:[#allocation3 + $0x3b8] sm:$0xff]
        %v1050 = vld [vmem:[#allocation3 + $0x3c0] sm:$0xff]
        %v1051 = vld [vmem:[#allocation3 + $0x3c8] sm:$0xff]
        %v1052 = vld [vmem:[#allocation3 + $0x3d0] sm:$0xff]
        %v1053 = vld [vmem:[#allocation3 + $0x3d8] sm:$0xff]
        %v1054 = vld [vmem:[#allocation3 + $0x3e0] sm:$0xff]
        %v1055 = vld [vmem:[#allocation3 + $0x3e8] sm:$0xff]
        %v1056 = vld [vmem:[#allocation3 + $0x3f0] sm:$0xff]
        %v1057 = vld [vmem:[#allocation3 + $0x3f8] sm:$0xff]
        %v1058 = vld [vmem:[#allocation3 + $0x400] sm:$0xff]
        %v1059 = vld [vmem:[#allocation3 + $0x408] sm:$0xff]
        %v1060 = vld [vmem:[#allocation3 + $0x410] sm:$0xff]
        %v1061 = vld [vmem:[#allocation3 + $0x418] sm:$0xff]
        %v1062 = vld [vmem:[#allocation3 + $0x420] sm:$0xff]
        %v1063 = vld [vmem:[#allocation3 + $0x428] sm:$0xff]
        %v1064 = vld [vmem:[#allocation3 + $0x430] sm:$0xff]
        %v1065 = vld [vmem:[#allocation3 + $0x438] sm:$0xff]
        %v1066 = vld [vmem:[#allocation3 + $0x440] sm:$0xff]
        %v1067 = vld [vmem:[#allocation3 + $0x448] sm:$0xff]
        %v1068 = vld [vmem:[#allocation3 + $0x450] sm:$0xff]
        %v1069 = vld [vmem:[#allocation3 + $0x458] sm:$0xff]
        %v1070 = vld [vmem:[#allocation3 + $0x460] sm:$0xff]
        %v1071 = vld [vmem:[#allocation3 + $0x468] sm:$0xff]
        %v1072 = vld [vmem:[#allocation3 + $0x470] sm:$0xff]
        %v1073 = vld [vmem:[#allocation3 + $0x478] sm:$0xff]
        %v1074 = vld [vmem:[#allocation3 + $0x480] sm:$0xff]
        %v1075 = vld [vmem:[#allocation3 + $0x488] sm:$0xff]
        %v1076 = vld [vmem:[#allocation3 + $0x490] sm:$0xff]
        %v1077 = vld [vmem:[#allocation3 + $0x498] sm:$0xff]
        %v1078 = vld [vmem:[#allocation3 + $0x4a0] sm:$0xff]
        %v1079 = vld [vmem:[#allocation3 + $0x4a8] sm:$0xff]
        %v1080 = vld [vmem:[#allocation3 + $0x4b0] sm:$0xff]
        %v1081 = vld [vmem:[#allocation3 + $0x4b8] sm:$0xff]
        %v1082 = vld [vmem:[#allocation3 + $0x4c0] sm:$0xff]
        %v1083 = vld [vmem:[#allocation3 + $0x4c8] sm:$0xff]
        %v1084 = vld [vmem:[#allocation3 + $0x4d0] sm:$0xff]
        %v1085 = vld [vmem:[#allocation3 + $0x4d8] sm:$0xff]
        %v1086 = vld [vmem:[#allocation3 + $0x4e0] sm:$0xff]
        %v1087 = vld [vmem:[#allocation3 + $0x4e8] sm:$0xff]
        %v1088 = vld [vmem:[#allocation3 + $0x4f0] sm:$0xff]
        %v1089 = vld [vmem:[#allocation3 + $0x4f8] sm:$0xff]
        %v1090 = vld [vmem:[#allocation3 + $0x500] sm:$0xff]
        %v1091 = vld [vmem:[#allocation3 + $0x508] sm:$0xff]
        %v1092 = vld [vmem:[#allocation3 + $0x510] sm:$0xff]
        %v1093 = vld [vmem:[#allocation3 + $0x518] sm:$0xff]
        %v1094 = vld [vmem:[#allocation3 + $0x520] sm:$0xff]
        %v1095 = vld [vmem:[#allocation3 + $0x528] sm:$0xff]
        %v1096 = vld [vmem:[#allocation3 + $0x530] sm:$0xff]
        %v1097 = vld [vmem:[#allocation3 + $0x538] sm:$0xff]
        %v1098 = vld [vmem:[#allocation3 + $0x540] sm:$0xff]
        %v1099 = vld [vmem:[#allocation3 + $0x548] sm:$0xff]
        %v1100 = vld [vmem:[#allocation3 + $0x550] sm:$0xff]
        %v1101 = vld [vmem:[#allocation3 + $0x558] sm:$0xff]
        %v1102 = vld [vmem:[#allocation3 + $0x560] sm:$0xff]
        %v1103 = vld [vmem:[#allocation3 + $0x568] sm:$0xff]
        %v1104 = vld [vmem:[#allocation3 + $0x570] sm:$0xff]
        %v1105 = vld [vmem:[#allocation3 + $0x578] sm:$0xff]
        %v1106 = vld [vmem:[#allocation3 + $0x580] sm:$0xff]
        %v1107 = vld [vmem:[#allocation3 + $0x588] sm:$0xff]
        %v1108 = vld [vmem:[#allocation3 + $0x590] sm:$0xff]
        %v1109 = vld [vmem:[#allocation3 + $0x598] sm:$0xff]
        %v1110 = vld [vmem:[#allocation3 + $0x5a0] sm:$0xff]
        %v1111 = vld [vmem:[#allocation3 + $0x5a8] sm:$0xff]
        %v1112 = vld [vmem:[#allocation3 + $0x5b0] sm:$0xff]
        %v1113 = vld [vmem:[#allocation3 + $0x5b8] sm:$0xff]
        %v1114 = vld [vmem:[#allocation3 + $0x5c0] sm:$0xff]
        %v1115 = vld [vmem:[#allocation3 + $0x5c8] sm:$0xff]
        %v1116 = vld [vmem:[#allocation3 + $0x5d0] sm:$0xff]
        %v1117 = vld [vmem:[#allocation3 + $0x5d8] sm:$0xff]
        %v1118 = vld [vmem:[#allocation3 + $0x5e0] sm:$0xff]
        %v1119 = vld [vmem:[#allocation3 + $0x5e8] sm:$0xff]
        %v1120 = vld [vmem:[#allocation3 + $0x5f0] sm:$0xff]
        %v1121 = vld [vmem:[#allocation3 + $0x5f8] sm:$0xff]
        %v1122 = vld [vmem:[#allocation3 + $0x600] sm:$0xff]
        %v1123 = vld [vmem:[#allocation3 + $0x608] sm:$0xff]
        %v1124 = vld [vmem:[#allocation3 + $0x610] sm:$0xff]
        %v1125 = vld [vmem:[#allocation3 + $0x618] sm:$0xff]
        %v1126 = vld [vmem:[#allocation3 + $0x620] sm:$0xff]
        %v1127 = vld [vmem:[#allocation3 + $0x628] sm:$0xff]
        %v1128 = vld [vmem:[#allocation3 + $0x630] sm:$0xff]
        %v1129 = vld [vmem:[#allocation3 + $0x638] sm:$0xff]
        %v1130 = vld [vmem:[#allocation3 + $0x640] sm:$0xff]
        %v1131 = vld [vmem:[#allocation3 + $0x648] sm:$0xff]
        %v1132 = vld [vmem:[#allocation3 + $0x650] sm:$0xff]
        %v1133 = vld [vmem:[#allocation3 + $0x658] sm:$0xff]
        %v1134 = vld [vmem:[#allocation3 + $0x660] sm:$0xff]
        %v1135 = vld [vmem:[#allocation3 + $0x668] sm:$0xff]
        %v1136 = vld [vmem:[#allocation3 + $0x670] sm:$0xff]
        %v1137 = vld [vmem:[#allocation3 + $0x678] sm:$0xff]
        %v1138 = vld [vmem:[#allocation3 + $0x680] sm:$0xff]
        %v1139 = vld [vmem:[#allocation3 + $0x688] sm:$0xff]
        %v1140 = vld [vmem:[#allocation3 + $0x690] sm:$0xff]
        %v1141 = vld [vmem:[#allocation3 + $0x698] sm:$0xff]
        %v1142 = vld [vmem:[#allocation3 + $0x6a0] sm:$0xff]
        %v1143 = vld [vmem:[#allocation3 + $0x6a8] sm:$0xff]
        %v1144 = vld [vmem:[#allocation3 + $0x6b0] sm:$0xff]
        %v1145 = vld [vmem:[#allocation3 + $0x6b8] sm:$0xff]
        %v1146 = vld [vmem:[#allocation3 + $0x6c0] sm:$0xff]
        %v1147 = vld [vmem:[#allocation3 + $0x6c8] sm:$0xff]
        %v1148 = vld [vmem:[#allocation3 + $0x6d0] sm:$0xff]
        %v1149 = vld [vmem:[#allocation3 + $0x6d8] sm:$0xff]
        %v1150 = vld [vmem:[#allocation3 + $0x6e0] sm:$0xff]
        %v1151 = vld [vmem:[#allocation3 + $0x6e8] sm:$0xff]
        %v1152 = vld [vmem:[#allocation3 + $0x6f0] sm:$0xff]
        %v1153 = vld [vmem:[#allocation3 + $0x6f8] sm:$0xff]
        %v1154 = vld [vmem:[#allocation3 + $0x700] sm:$0xff]
        %v1155 = vld [vmem:[#allocation3 + $0x708] sm:$0xff]
        %v1156 = vld [vmem:[#allocation3 + $0x710] sm:$0xff]
        %v1157 = vld [vmem:[#allocation3 + $0x718] sm:$0xff]
        %v1158 = vld [vmem:[#allocation3 + $0x720] sm:$0xff]
        %v1159 = vld [vmem:[#allocation3 + $0x728] sm:$0xff]
        %v1160 = vld [vmem:[#allocation3 + $0x730] sm:$0xff]
        %v1161 = vld [vmem:[#allocation3 + $0x738] sm:$0xff]
        %v1162 = vld [vmem:[#allocation3 + $0x740] sm:$0xff]
        %v1163 = vld [vmem:[#allocation3 + $0x748] sm:$0xff]
        %v1164 = vld [vmem:[#allocation3 + $0x750] sm:$0xff]
        %v1165 = vld [vmem:[#allocation3 + $0x758] sm:$0xff]
        %v1166 = vld [vmem:[#allocation3 + $0x760] sm:$0xff]
        %v1167 = vld [vmem:[#allocation3 + $0x768] sm:$0xff]
        %v1168 = vld [vmem:[#allocation3 + $0x770] sm:$0xff]
        %v1169 = vld [vmem:[#allocation3 + $0x778] sm:$0xff]
        %v1170 = vld [vmem:[#allocation3 + $0x780] sm:$0xff]
        %v1171 = vld [vmem:[#allocation3 + $0x788] sm:$0xff]
        %v1172 = vld [vmem:[#allocation3 + $0x790] sm:$0xff]
        %v1173 = vld [vmem:[#allocation3 + $0x798] sm:$0xff]
        %v1174 = vld [vmem:[#allocation3 + $0x7a0] sm:$0xff]
        %v1175 = vld [vmem:[#allocation3 + $0x7a8] sm:$0xff]
        %v1176 = vld [vmem:[#allocation3 + $0x7b0] sm:$0xff]
        %v1177 = vld [vmem:[#allocation3 + $0x7b8] sm:$0xff]
        %v1178 = vld [vmem:[#allocation3 + $0x7c0] sm:$0xff]
        %v1179 = vld [vmem:[#allocation3 + $0x7c8] sm:$0xff]
        %v1180 = vld [vmem:[#allocation3 + $0x7d0] sm:$0xff]
        %v1181 = vld [vmem:[#allocation3 + $0x7d8] sm:$0xff]
        %v1182 = vld [vmem:[#allocation3 + $0x7e0] sm:$0xff]
        %v1183 = vld [vmem:[#allocation3 + $0x7e8] sm:$0xff]
        %v1184 = vld [vmem:[#allocation3 + $0x7f0] sm:$0xff]
        %v1185 = vld [vmem:[#allocation3 + $0x7f8] sm:$0xff]
        %v1186 = vld [vmem:[#allocation3 + $0x800] sm:$0xff]
        %v1187 = vld [vmem:[#allocation3 + $0x808] sm:$0xff]
        %v1188 = vld [vmem:[#allocation3 + $0x810] sm:$0xff]
        %v1189 = vld [vmem:[#allocation3 + $0x818] sm:$0xff]
        %v1190 = vld [vmem:[#allocation3 + $0x820] sm:$0xff]
        %v1191 = vld [vmem:[#allocation3 + $0x828] sm:$0xff]
        %v1192 = vld [vmem:[#allocation3 + $0x830] sm:$0xff]
        %v1193 = vld [vmem:[#allocation3 + $0x838] sm:$0xff]
        %v1194 = vld [vmem:[#allocation3 + $0x840] sm:$0xff]
        %v1195 = vld [vmem:[#allocation3 + $0x848] sm:$0xff]
        %v1196 = vld [vmem:[#allocation3 + $0x850] sm:$0xff]
        %v1197 = vld [vmem:[#allocation3 + $0x858] sm:$0xff]
        %v1198 = vld [vmem:[#allocation3 + $0x860] sm:$0xff]
        %v1199 = vld [vmem:[#allocation3 + $0x868] sm:$0xff]
        %v1200 = vld [vmem:[#allocation3 + $0x870] sm:$0xff]
        %v1201 = vld [vmem:[#allocation3 + $0x878] sm:$0xff]
        %v1202 = vld [vmem:[#allocation3 + $0x880] sm:$0xff]
        %v1203 = vld [vmem:[#allocation3 + $0x888] sm:$0xff]
        %v1204 = vld [vmem:[#allocation3 + $0x890] sm:$0xff]
        %v1205 = vld [vmem:[#allocation3 + $0x898] sm:$0xff]
        %v1206 = vld [vmem:[#allocation3 + $0x8a0] sm:$0xff]
        %v1207 = vld [vmem:[#allocation3 + $0x8a8] sm:$0xff]
        %v1208 = vld [vmem:[#allocation3 + $0x8b0] sm:$0xff]
        %v1209 = vld [vmem:[#allocation3 + $0x8b8] sm:$0xff]
        %v1210 = vld [vmem:[#allocation3 + $0x8c0] sm:$0xff]
        %v1211 = vld [vmem:[#allocation3 + $0x8c8] sm:$0xff]
        %v1212 = vld [vmem:[#allocation3 + $0x8d0] sm:$0xff]
        %v1213 = vld [vmem:[#allocation3 + $0x8d8] sm:$0xff]
        %v1214 = vld [vmem:[#allocation3 + $0x8e0] sm:$0xff]
        %v1215 = vld [vmem:[#allocation3 + $0x8e8] sm:$0xff]
        %v1216 = vld [vmem:[#allocation3 + $0x8f0] sm:$0xff]
        %v1217 = vld [vmem:[#allocation3 + $0x8f8] sm:$0xff]
        %v1218 = vld [vmem:[#allocation8] sm:$0xff]
        %v1219 = vld [vmem:[#allocation8 + $0x8] sm:$0xff]
        %v1220 = vld [vmem:[#allocation8 + $0x10] sm:$0xff]
        %v1221 = vld [vmem:[#allocation8 + $0x18] sm:$0xff]
        %v1222 = vld [vmem:[#allocation8 + $0x20] sm:$0xff]
        %v1223 = vld [vmem:[#allocation8 + $0x28] sm:$0xff]
        %v1224 = vld [vmem:[#allocation8 + $0x30] sm:$0xff]
        %v1225 = vld [vmem:[#allocation8 + $0x38] sm:$0xff]
        %v1226 = vld [vmem:[#allocation8 + $0x40] sm:$0xff]
        %v1227 = vld [vmem:[#allocation8 + $0x48] sm:$0xff]
        %v1228 = vld [vmem:[#allocation8 + $0x50] sm:$0xff]
        %v1229 = vld [vmem:[#allocation8 + $0x58] sm:$0xff]
        %v1230 = vld [vmem:[#allocation8 + $0x60] sm:$0xff]
        %v1231 = vld [vmem:[#allocation8 + $0x68] sm:$0xff]
        %v1232 = vld [vmem:[#allocation8 + $0x70] sm:$0xff]
        %v1233 = vld [vmem:[#allocation8 + $0x78] sm:$0xff]
        %v1234 = vld [vmem:[#allocation8 + $0x80] sm:$0xff]
        %v1235 = vld [vmem:[#allocation8 + $0x88] sm:$0xff]
        %v1236 = vld [vmem:[#allocation8 + $0x90] sm:$0xff]
        %v1237 = vld [vmem:[#allocation8 + $0x98] sm:$0xff]
        %v1238 = vld [vmem:[#allocation8 + $0xa0] sm:$0xff]
        %v1239 = vld [vmem:[#allocation8 + $0xa8] sm:$0xff]
        %v1240 = vld [vmem:[#allocation8 + $0xb0] sm:$0xff]
        %v1241 = vld [vmem:[#allocation8 + $0xb8] sm:$0xff]
        %v1242 = vld [vmem:[#allocation8 + $0xc0] sm:$0xff]
        %v1243 = vld [vmem:[#allocation8 + $0xc8] sm:$0xff]
        %v1244 = vld [vmem:[#allocation8 + $0xd0] sm:$0xff]
        %v1245 = vld [vmem:[#allocation8 + $0xd8] sm:$0xff]
        %v1246 = vld [vmem:[#allocation8 + $0xe0] sm:$0xff]
        %v1247 = vld [vmem:[#allocation8 + $0xe8] sm:$0xff]
        %v1248 = vld [vmem:[#allocation8 + $0xf0] sm:$0xff]
        %v1249 = vld [vmem:[#allocation8 + $0xf8] sm:$0xff]
        %v1250 = vld [vmem:[#allocation8 + $0x100] sm:$0xff]
        %v1251 = vld [vmem:[#allocation8 + $0x108] sm:$0xff]
        %v1252 = vld [vmem:[#allocation8 + $0x110] sm:$0xff]
        %v1253 = vld [vmem:[#allocation8 + $0x118] sm:$0xff]
        %v1254 = vld [vmem:[#allocation8 + $0x120] sm:$0xff]
        %v1255 = vld [vmem:[#allocation8 + $0x128] sm:$0xff]
        %v1256 = vld [vmem:[#allocation8 + $0x130] sm:$0xff]
        %v1257 = vld [vmem:[#allocation8 + $0x138] sm:$0xff]
        %v1258 = vld [vmem:[#allocation8 + $0x140] sm:$0xff]
        %v1259 = vld [vmem:[#allocation8 + $0x148] sm:$0xff]
        %v1260 = vld [vmem:[#allocation8 + $0x150] sm:$0xff]
        %v1261 = vld [vmem:[#allocation8 + $0x158] sm:$0xff]
        %v1262 = vld [vmem:[#allocation8 + $0x160] sm:$0xff]
        %v1263 = vld [vmem:[#allocation8 + $0x168] sm:$0xff]
        %v1264 = vld [vmem:[#allocation8 + $0x170] sm:$0xff]
        %v1265 = vld [vmem:[#allocation8 + $0x178] sm:$0xff]
        %v1266 = vld [vmem:[#allocation8 + $0x180] sm:$0xff]
        %v1267 = vld [vmem:[#allocation8 + $0x188] sm:$0xff]
        %v1268 = vld [vmem:[#allocation8 + $0x190] sm:$0xff]
        %v1269 = vld [vmem:[#allocation8 + $0x198] sm:$0xff]
        %v1270 = vld [vmem:[#allocation8 + $0x1a0] sm:$0xff]
        %v1271 = vld [vmem:[#allocation8 + $0x1a8] sm:$0xff]
        %v1272 = vld [vmem:[#allocation8 + $0x1b0] sm:$0xff]
        %v1273 = vld [vmem:[#allocation8 + $0x1b8] sm:$0xff]
        %v1274 = vld [vmem:[#allocation8 + $0x1c0] sm:$0xff]
        %v1275 = vld [vmem:[#allocation8 + $0x1c8] sm:$0xff]
        %v1276 = vld [vmem:[#allocation8 + $0x1d0] sm:$0xff]
        %v1277 = vld [vmem:[#allocation8 + $0x1d8] sm:$0xff]
        %v1278 = vld [vmem:[#allocation8 + $0x1e0] sm:$0xff]
        %v1279 = vld [vmem:[#allocation8 + $0x1e8] sm:$0xff]
        %v1280 = vld [vmem:[#allocation8 + $0x1f0] sm:$0xff]
        %v1281 = vld [vmem:[#allocation8 + $0x1f8] sm:$0xff]
        %v1282 = vld [vmem:[#allocation8 + $0x200] sm:$0xff]
        %v1283 = vld [vmem:[#allocation8 + $0x208] sm:$0xff]
        %v1284 = vld [vmem:[#allocation8 + $0x210] sm:$0xff]
        %v1285 = vld [vmem:[#allocation8 + $0x218] sm:$0xff]
        %v1286 = vld [vmem:[#allocation8 + $0x220] sm:$0xff]
        %v1287 = vld [vmem:[#allocation8 + $0x228] sm:$0xff]
        %v1288 = vld [vmem:[#allocation8 + $0x230] sm:$0xff]
        %v1289 = vld [vmem:[#allocation8 + $0x238] sm:$0xff]
        %v1290 = vld [vmem:[#allocation8 + $0x240] sm:$0xff]
        %v1291 = vld [vmem:[#allocation8 + $0x248] sm:$0xff]
        %v1292 = vld [vmem:[#allocation8 + $0x250] sm:$0xff]
        %v1293 = vld [vmem:[#allocation8 + $0x258] sm:$0xff]
        %v1294 = vld [vmem:[#allocation8 + $0x260] sm:$0xff]
        %v1295 = vld [vmem:[#allocation8 + $0x268] sm:$0xff]
        %v1296 = vld [vmem:[#allocation8 + $0x270] sm:$0xff]
        %v1297 = vld [vmem:[#allocation8 + $0x278] sm:$0xff]
        %v1298 = vld [vmem:[#allocation8 + $0x280] sm:$0xff]
        %v1299 = vld [vmem:[#allocation8 + $0x288] sm:$0xff]
        %v1300 = vld [vmem:[#allocation8 + $0x290] sm:$0xff]
        %v1301 = vld [vmem:[#allocation8 + $0x298] sm:$0xff]
        %v1302 = vld [vmem:[#allocation8 + $0x2a0] sm:$0xff]
        %v1303 = vld [vmem:[#allocation8 + $0x2a8] sm:$0xff]
        %v1304 = vld [vmem:[#allocation8 + $0x2b0] sm:$0xff]
        %v1305 = vld [vmem:[#allocation8 + $0x2b8] sm:$0xff]
        %v1306 = vld [vmem:[#allocation8 + $0x2c0] sm:$0xff]
        %v1307 = vld [vmem:[#allocation8 + $0x2c8] sm:$0xff]
        %v1308 = vld [vmem:[#allocation8 + $0x2d0] sm:$0xff]
        %v1309 = vld [vmem:[#allocation8 + $0x2d8] sm:$0xff]
        %v1310 = vld [vmem:[#allocation8 + $0x2e0] sm:$0xff]
        %v1311 = vld [vmem:[#allocation8 + $0x2e8] sm:$0xff]
        %v1312 = vld [vmem:[#allocation8 + $0x2f0] sm:$0xff]
        %v1313 = vld [vmem:[#allocation8 + $0x2f8] sm:$0xff]
        %v1314 = vld [vmem:[#allocation8 + $0x300] sm:$0xff]
        %v1315 = vld [vmem:[#allocation8 + $0x308] sm:$0xff]
        %v1316 = vld [vmem:[#allocation8 + $0x310] sm:$0xff]
        %v1317 = vld [vmem:[#allocation8 + $0x318] sm:$0xff]
        %v1318 = vld [vmem:[#allocation8 + $0x320] sm:$0xff]
        %v1319 = vld [vmem:[#allocation8 + $0x328] sm:$0xff]
        %v1320 = vld [vmem:[#allocation8 + $0x330] sm:$0xff]
        %v1321 = vld [vmem:[#allocation8 + $0x338] sm:$0xff]
        %v1322 = vld [vmem:[#allocation8 + $0x340] sm:$0xff]
        %v1323 = vld [vmem:[#allocation8 + $0x348] sm:$0xff]
        %v1324 = vld [vmem:[#allocation8 + $0x350] sm:$0xff]
        %v1325 = vld [vmem:[#allocation8 + $0x358] sm:$0xff]
        %v1326 = vld [vmem:[#allocation8 + $0x360] sm:$0xff]
        %v1327 = vld [vmem:[#allocation8 + $0x368] sm:$0xff]
        %v1328 = vld [vmem:[#allocation8 + $0x370] sm:$0xff]
        %v1329 = vld [vmem:[#allocation8 + $0x378] sm:$0xff]
        %v1330 = vld [vmem:[#allocation8 + $0x380] sm:$0xff]
        %v1331 = vld [vmem:[#allocation8 + $0x388] sm:$0xff]
        %v1332 = vld [vmem:[#allocation8 + $0x390] sm:$0xff]
        %v1333 = vld [vmem:[#allocation8 + $0x398] sm:$0xff]
        %v1334 = vld [vmem:[#allocation8 + $0x3a0] sm:$0xff]
        %v1335 = vld [vmem:[#allocation8 + $0x3a8] sm:$0xff]
        %v1336 = vld [vmem:[#allocation8 + $0x3b0] sm:$0xff]
        %v1337 = vld [vmem:[#allocation8 + $0x3b8] sm:$0xff]
        %v1338 = vld [vmem:[#allocation8 + $0x3c0] sm:$0xff]
        %v1339 = vld [vmem:[#allocation8 + $0x3c8] sm:$0xff]
        %v1340 = vld [vmem:[#allocation8 + $0x3d0] sm:$0xff]
        %v1341 = vld [vmem:[#allocation8 + $0x3d8] sm:$0xff]
        %v1342 = vld [vmem:[#allocation8 + $0x3e0] sm:$0xff]
        %v1343 = vld [vmem:[#allocation8 + $0x3e8] sm:$0xff]
        %v1344 = vld [vmem:[#allocation8 + $0x3f0] sm:$0xff]
        %v1345 = vld [vmem:[#allocation8 + $0x3f8] sm:$0xff]
        %v1346 = vld [vmem:[#allocation8 + $0x400] sm:$0xff]
        %v1347 = vld [vmem:[#allocation8 + $0x408] sm:$0xff]
        %v1348 = vld [vmem:[#allocation8 + $0x410] sm:$0xff]
        %v1349 = vld [vmem:[#allocation8 + $0x418] sm:$0xff]
        %v1350 = vld [vmem:[#allocation8 + $0x420] sm:$0xff]
        %v1351 = vld [vmem:[#allocation8 + $0x428] sm:$0xff]
        %v1352 = vld [vmem:[#allocation8 + $0x430] sm:$0xff]
        %v1353 = vld [vmem:[#allocation8 + $0x438] sm:$0xff]
        %v1354 = vld [vmem:[#allocation8 + $0x440] sm:$0xff]
        %v1355 = vld [vmem:[#allocation8 + $0x448] sm:$0xff]
        %v1356 = vld [vmem:[#allocation8 + $0x450] sm:$0xff]
        %v1357 = vld [vmem:[#allocation8 + $0x458] sm:$0xff]
        %v1358 = vld [vmem:[#allocation8 + $0x460] sm:$0xff]
        %v1359 = vld [vmem:[#allocation8 + $0x468] sm:$0xff]
        %v1360 = vld [vmem:[#allocation8 + $0x470] sm:$0xff]
        %v1361 = vld [vmem:[#allocation8 + $0x478] sm:$0xff]
        %v1362 = vld [vmem:[%s2] sm:$0x1]
        %v1364 = vlaneseq
        %v1365 = vshrl.u32 %v1364, 7
        %v1366 = vsub.s32 0, %v1365
        %v1367 = vrot.slane %v1362, %v1366
        %1369 = vmatprep.subr.mxu0 0.0
        %1370 = vmatpush1.msra.mxu0 %v1218
        %1371 = vmatprep.subr.mxu0 0.0
        %1372 = vmatpush1.msra.mxu0 %v1219
        %1373 = vmatprep.subr.mxu0 0.0
        %1374 = vmatpush1.msra.mxu0 %v1220
        %1375 = vmatprep.subr.mxu0 0.0
        %1376 = vmatpush1.msra.mxu0 %v1221
        %1377 = vmatprep.subr.mxu0 0.0
        %1378 = vmatpush1.msra.mxu0 %v1222
        %1379 = vmatprep.subr.mxu0 0.0
        %1380 = vmatpush1.msra.mxu0 %v1223
        %1381 = vmatprep.subr.mxu0 0.0
        %1382 = vmatpush1.msra.mxu0 %v1224
        %1383 = vmatprep.subr.mxu0 0.0
        %1384 = vmatpush1.msra.mxu0 %v1225
        %1385 = vmatprep.subr.mxu0 0.0
        %1386 = vmatpush1.msra.mxu0 %v1226
        %1387 = vmatprep.subr.mxu0 0.0
        %1388 = vmatpush1.msra.mxu0 %v1227
        %1389 = vmatprep.subr.mxu0 0.0
        %1390 = vmatpush1.msra.mxu0 %v1228
        %1391 = vmatprep.subr.mxu0 0.0
        %1392 = vmatpush1.msra.mxu0 %v1229
        %1393 = vmatprep.subr.mxu0 0.0
        %1394 = vmatpush1.msra.mxu0 %v1230
        %1395 = vmatprep.subr.mxu0 0.0
        %1396 = vmatpush1.msra.mxu0 %v1231
        %1397 = vmatprep.subr.mxu0 0.0
        %1398 = vmatpush1.msra.mxu0 %v1232
        %1399 = vmatprep.subr.mxu0 0.0
        %1400 = vmatpush1.msra.mxu0 %v1233
        %1401 = vmatprep.subr.mxu0 0.0
        %1402 = vmatpush1.msra.mxu0 %v1234
        %1403 = vmatprep.subr.mxu0 0.0
        %1404 = vmatpush1.msra.mxu0 %v1235
        %1405 = vmatprep.subr.mxu0 0.0
        %1406 = vmatpush1.msra.mxu0 %v1236
        %1407 = vmatprep.subr.mxu0 0.0
        %1408 = vmatpush1.msra.mxu0 %v1237
        %1409 = vmatprep.subr.mxu0 0.0
        %1410 = vmatpush1.msra.mxu0 %v1238
        %1411 = vmatprep.subr.mxu0 0.0
        %1412 = vmatpush1.msra.mxu0 %v1239
        %1413 = vmatprep.subr.mxu0 0.0
        %1414 = vmatpush1.msra.mxu0 %v1240
        %1415 = vmatprep.subr.mxu0 0.0
        %1416 = vmatpush1.msra.mxu0 %v1241
        %1417 = vmatprep.subr.mxu0 0.0
        %1418 = vmatpush1.msra.mxu0 %v1242
        %1419 = vmatprep.subr.mxu0 0.0
        %1420 = vmatpush1.msra.mxu0 %v1243
        %1421 = vmatprep.subr.mxu0 0.0
        %1422 = vmatpush1.msra.mxu0 %v1244
        %1423 = vmatprep.subr.mxu0 0.0
        %1424 = vmatpush1.msra.mxu0 %v1245
        %1425 = vmatprep.subr.mxu0 0.0
        %1426 = vmatpush1.msra.mxu0 %v1246
        %1427 = vmatprep.subr.mxu0 0.0
        %1428 = vmatpush1.msra.mxu0 %v1247
        %1429 = vmatprep.subr.mxu0 0.0
        %1430 = vmatpush1.msra.mxu0 %v1248
        %1431 = vmatprep.subr.mxu0 0.0
        %1432 = vmatpush1.msra.mxu0 %v1249
        %1433 = vmatprep.mubr.f32.mxu0 %v931
        %1434 = vmatmul.mubr.f32.gmra.mrb[0].mxu0 %v930
        %v1435 = vpop.f32.mrb[0].mxu0
        %v1436 = vadd.f32 %v1367, %v1435
        %v1437 = vpop.f32.mrb[0].mxu0
        %1438 = vmatprep.mubr.f32.mxu0 %v940
        %1439 = vmatmul.mubr.f32.gmra.mrb[0].mxu0 %v939
        %v1440 = vpop.f32.mrb[0].mxu0
        %v1441 = vadd.f32 %v1367, %v1440
        %v1442 = vpop.f32.mrb[0].mxu0
        %1443 = vmatprep.mubr.f32.mxu0 %v949
        %1444 = vmatmul.mubr.f32.gmra.mrb[0].mxu0 %v948
        %v1445 = vpop.f32.mrb[0].mxu0
        %v1446 = vadd.f32 %v1367, %v1445
        %v1447 = vpop.f32.mrb[0].mxu0
        %1448 = vmatprep.mubr.f32.mxu0 %v958
        %1449 = vmatmul.mubr.f32.gmra.mrb[0].mxu0 %v957
        %v1450 = vpop.f32.mrb[0].mxu0
        %v1451 = vadd.f32 %v1367, %v1450
        %v1452 = vpop.f32.mrb[0].mxu0
        %1453 = vmatprep.mubr.f32.mxu0 %v967
        %1454 = vmatmul.mubr.f32.gmra.mrb[0].mxu0 %v966
        %v1455 = vpop.f32.mrb[0].mxu0
        %v1456 = vadd.f32 %v1367, %v1455
        %v1457 = vpop.f32.mrb[0].mxu0
        %1458 = vmatprep.mubr.f32.mxu0 %v976
        %1459 = vmatmul.mubr.f32.gmra.mrb[0].mxu0 %v975
        %v1460 = vpop.f32.mrb[0].mxu0
        %v1461 = vadd.f32 %v1367, %v1460
        %v1462 = vpop.f32.mrb[0].mxu0
        %1463 = vmatprep.mubr.f32.mxu0 %v985
        %1464 = vmatmul.mubr.f32.gmra.mrb[0].mxu0 %v984
        %v1465 = vpop.f32.mrb[0].mxu0
        %v1466 = vadd.f32 %v1367, %v1465
        %v1467 = vpop.f32.mrb[0].mxu0
        %1468 = vmatprep.mubr.f32.mxu0 %v994
        %1469 = vmatmul.mubr.f32.gmra.mrb[0].mxu0 %v993
        %v1470 = vpop.f32.mrb[0].mxu0
        %v1471 = vadd.f32 %v1367, %v1470
        %v1472 = vpop.f32.mrb[0].mxu0
        %1473 = vmatprep.mubr.f32.mxu0 %v1003
        %1474 = vmatmul.mubr.f32.gmra.mrb[0].mxu0 %v1002
        %v1475 = vpop.f32.mrb[0].mxu0
        %v1476 = vadd.f32 %v1367, %v1475
        %v1477 = vpop.f32.mrb[0].mxu0
        %1478 = vmatprep.mubr.f32.mxu0 %v1012
        %1479 = vmatmul.mubr.f32.gmra.mrb[0].mxu0 %v1011
        %v1480 = vpop.f32.mrb[0].mxu0
        %v1481 = vadd.f32 %v1367, %v1480
        %v1482 = vpop.f32.mrb[0].mxu0
        %1483 = vmatprep.mubr.f32.mxu0 %v1021
        %1484 = vmatmul.mubr.f32.gmra.mrb[0].mxu0 %v1020
        %v1485 = vpop.f32.mrb[0].mxu0
        %v1486 = vadd.f32 %v1367, %v1485
        %v1487 = vpop.f32.mrb[0].mxu0
        %1488 = vmatprep.mubr.f32.mxu0 %v1030
        %1489 = vmatmul.mubr.f32.gmra.mrb[0].mxu0 %v1029
        %v1490 = vpop.f32.mrb[0].mxu0
        %v1491 = vadd.f32 %v1367, %v1490
        %v1492 = vpop.f32.mrb[0].mxu0
        %1493 = vmatprep.mubr.f32.mxu0 %v1039
        %1494 = vmatmul.mubr.f32.gmra.mrb[0].mxu0 %v1038
        %v1495 = vpop.f32.mrb[0].mxu0
        %v1496 = vadd.f32 %v1367, %v1495
        %v1497 = vpop.f32.mrb[0].mxu0
        %1498 = vmatprep.mubr.f32.mxu0 %v1048
        %1499 = vmatmul.mubr.f32.gmra.mrb[0].mxu0 %v1047
        %v1500 = vpop.f32.mrb[0].mxu0
        %v1501 = vadd.f32 %v1367, %v1500
        %v1502 = vpop.f32.mrb[0].mxu0
        %1503 = vmatprep.mubr.f32.mxu0 %v1057
        %1504 = vmatmul.mubr.f32.gmra.mrb[0].mxu0 %v1056
        %v1505 = vpop.f32.mrb[0].mxu0
        %v1506 = vadd.f32 %v1367, %v1505
        %v1507 = vpop.f32.mrb[0].mxu0
        %1508 = vmatprep.mubr.f32.mxu0 %v1066
        %1509 = vmatmul.mubr.f32.gmra.mrb[0].mxu0 %v1065
        %v1510 = vpop.f32.mrb[0].mxu0
        %v1511 = vadd.f32 %v1367, %v1510
        %v1512 = vpop.f32.mrb[0].mxu0
        %1513 = vmatprep.mubr.f32.mxu0 %v1075
        %1514 = vmatmul.mubr.f32.gmra.mrb[0].mxu0 %v1074
        %v1515 = vpop.f32.mrb[0].mxu0
        %v1516 = vadd.f32 %v1367, %v1515
        %v1517 = vpop.f32.mrb[0].mxu0
        %1518 = vmatprep.mubr.f32.mxu0 %v1084
        %1519 = vmatmul.mubr.f32.gmra.mrb[0].mxu0 %v1083
        %v1520 = vpop.f32.mrb[0].mxu0
        %v1521 = vadd.f32 %v1367, %v1520
        %v1522 = vpop.f32.mrb[0].mxu0
        %1523 = vmatprep.mubr.f32.mxu0 %v1093
        %1524 = vmatmul.mubr.f32.gmra.mrb[0].mxu0 %v1092
        %v1525 = vpop.f32.mrb[0].mxu0
        %v1526 = vadd.f32 %v1367, %v1525
        %v1527 = vpop.f32.mrb[0].mxu0
        %1528 = vmatprep.mubr.f32.mxu0 %v1102
        %1529 = vmatmul.mubr.f32.gmra.mrb[0].mxu0 %v1101
        %v1530 = vpop.f32.mrb[0].mxu0
        %v1531 = vadd.f32 %v1367, %v1530
        %v1532 = vpop.f32.mrb[0].mxu0
        %1533 = vmatprep.mubr.f32.mxu0 %v1111
        %1534 = vmatmul.mubr.f32.gmra.mrb[0].mxu0 %v1110
        %v1535 = vpop.f32.mrb[0].mxu0
        %v1536 = vadd.f32 %v1367, %v1535
        %v1537 = vpop.f32.mrb[0].mxu0
        %1538 = vmatprep.mubr.f32.mxu0 %v1120
        %1539 = vmatmul.mubr.f32.gmra.mrb[0].mxu0 %v1119
        %v1540 = vpop.f32.mrb[0].mxu0
        %v1541 = vadd.f32 %v1367, %v1540
        %v1542 = vpop.f32.mrb[0].mxu0
        %1543 = vmatprep.mubr.f32.mxu0 %v1129
        %1544 = vmatmul.mubr.f32.gmra.mrb[0].mxu0 %v1128
        %v1545 = vpop.f32.mrb[0].mxu0
        %v1546 = vadd.f32 %v1367, %v1545
        %v1547 = vpop.f32.mrb[0].mxu0
        %1548 = vmatprep.mubr.f32.mxu0 %v1138
        %1549 = vmatmul.mubr.f32.gmra.mrb[0].mxu0 %v1137
        %v1550 = vpop.f32.mrb[0].mxu0
        %v1551 = vadd.f32 %v1367, %v1550
        %v1552 = vpop.f32.mrb[0].mxu0
        %1553 = vmatprep.mubr.f32.mxu0 %v1147
        %1554 = vmatmul.mubr.f32.gmra.mrb[0].mxu0 %v1146
        %v1555 = vpop.f32.mrb[0].mxu0
        %v1556 = vadd.f32 %v1367, %v1555
        %v1557 = vpop.f32.mrb[0].mxu0
        %1558 = vmatprep.mubr.f32.mxu0 %v1156
        %1559 = vmatmul.mubr.f32.gmra.mrb[0].mxu0 %v1155
        %v1560 = vpop.f32.mrb[0].mxu0
        %v1561 = vadd.f32 %v1367, %v1560
        %v1562 = vpop.f32.mrb[0].mxu0
        %1563 = vmatprep.mubr.f32.mxu0 %v1165
        %1564 = vmatmul.mubr.f32.gmra.mrb[0].mxu0 %v1164
        %v1565 = vpop.f32.mrb[0].mxu0
        %v1566 = vadd.f32 %v1367, %v1565
        %v1567 = vpop.f32.mrb[0].mxu0
        %1568 = vmatprep.mubr.f32.mxu0 %v1174
        %1569 = vmatmul.mubr.f32.gmra.mrb[0].mxu0 %v1173
        %v1570 = vpop.f32.mrb[0].mxu0
        %v1571 = vadd.f32 %v1367, %v1570
        %v1572 = vpop.f32.mrb[0].mxu0
        %1573 = vmatprep.mubr.f32.mxu0 %v1183
        %1574 = vmatmul.mubr.f32.gmra.mrb[0].mxu0 %v1182
        %v1575 = vpop.f32.mrb[0].mxu0
        %v1576 = vadd.f32 %v1367, %v1575
        %v1577 = vpop.f32.mrb[0].mxu0
        %1578 = vmatprep.mubr.f32.mxu0 %v1192
        %1579 = vmatmul.mubr.f32.gmra.mrb[0].mxu0 %v1191
        %v1580 = vpop.f32.mrb[0].mxu0
        %v1581 = vadd.f32 %v1367, %v1580
        %v1582 = vpop.f32.mrb[0].mxu0
        %1583 = vmatprep.mubr.f32.mxu0 %v1201
        %1584 = vmatmul.mubr.f32.gmra.mrb[0].mxu0 %v1200
        %v1585 = vpop.f32.mrb[0].mxu0
        %v1586 = vadd.f32 %v1367, %v1585
        %v1587 = vpop.f32.mrb[0].mxu0
        %1588 = vmatprep.mubr.f32.mxu0 %v1210
        %1589 = vmatmul.mubr.f32.gmra.mrb[0].mxu0 %v1209
        %v1590 = vpop.f32.mrb[0].mxu0
        %v1591 = vadd.f32 %v1367, %v1590
        %v1592 = vpop.f32.mrb[0].mxu0
        %1593 = vdwg.mxu0
        %1594 = vmatprep.subr.mxu0 0.0
        %1595 = vmatpush1.msra.mxu0 %v1250
        %1596 = vmatprep.subr.mxu0 0.0
        %1597 = vmatpush1.msra.mxu0 %v1251
        %1598 = vmatprep.subr.mxu0 0.0
        %1599 = vmatpush1.msra.mxu0 %v1252
        %1600 = vmatprep.subr.mxu0 0.0
        %1601 = vmatpush1.msra.mxu0 %v1253
        %1602 = vmatprep.subr.mxu0 0.0
        %1603 = vmatpush1.msra.mxu0 %v1254
        %1604 = vmatprep.subr.mxu0 0.0
        %1605 = vmatpush1.msra.mxu0 %v1255
        %1606 = vmatprep.subr.mxu0 0.0
        %1607 = vmatpush1.msra.mxu0 %v1256
        %1608 = vmatprep.subr.mxu0 0.0
        %1609 = vmatpush1.msra.mxu0 %v1257
        %1610 = vmatprep.subr.mxu0 0.0
        %1611 = vmatpush1.msra.mxu0 %v1258
        %1612 = vmatprep.subr.mxu0 0.0
        %1613 = vmatpush1.msra.mxu0 %v1259
        %1614 = vmatprep.subr.mxu0 0.0
        %1615 = vmatpush1.msra.mxu0 %v1260
        %1616 = vmatprep.subr.mxu0 0.0
        %1617 = vmatpush1.msra.mxu0 %v1261
        %1618 = vmatprep.subr.mxu0 0.0
        %1619 = vmatpush1.msra.mxu0 %v1262
        %1620 = vmatprep.subr.mxu0 0.0
        %1621 = vmatpush1.msra.mxu0 %v1263
        %1622 = vmatprep.subr.mxu0 0.0
        %1623 = vmatpush1.msra.mxu0 %v1264
        %1624 = vmatprep.subr.mxu0 0.0
        %1625 = vmatpush1.msra.mxu0 %v1265
        %1626 = vmatprep.subr.mxu0 0.0
        %1627 = vmatpush1.msra.mxu0 %v1266
        %1628 = vmatprep.subr.mxu0 0.0
        %1629 = vmatpush1.msra.mxu0 %v1267
        %1630 = vmatprep.subr.mxu0 0.0
        %1631 = vmatpush1.msra.mxu0 %v1268
        %1632 = vmatprep.subr.mxu0 0.0
        %1633 = vmatpush1.msra.mxu0 %v1269
        %1634 = vmatprep.subr.mxu0 0.0
        %1635 = vmatpush1.msra.mxu0 %v1270
        %1636 = vmatprep.subr.mxu0 0.0
        %1637 = vmatpush1.msra.mxu0 %v1271
        %1638 = vmatprep.subr.mxu0 0.0
        %1639 = vmatpush1.msra.mxu0 %v1272
        %1640 = vmatprep.subr.mxu0 0.0
        %1641 = vmatpush1.msra.mxu0 %v1273
        %1642 = vmatprep.subr.mxu0 0.0
        %1643 = vmatpush1.msra.mxu0 %v1274
        %1644 = vmatprep.subr.mxu0 0.0
        %1645 = vmatpush1.msra.mxu0 %v1275
        %1646 = vmatprep.subr.mxu0 0.0
        %1647 = vmatpush1.msra.mxu0 %v1276
        %1648 = vmatprep.subr.mxu0 0.0
        %1649 = vmatpush1.msra.mxu0 %v1277
        %1650 = vmatprep.subr.mxu0 0.0
        %1651 = vmatpush1.msra.mxu0 %v1278
        %1652 = vmatprep.subr.mxu0 0.0
        %1653 = vmatpush1.msra.mxu0 %v1279
        %1654 = vmatprep.subr.mxu0 0.0
        %1655 = vmatpush1.msra.mxu0 %v1280
        %1656 = vmatprep.subr.mxu0 0.0
        %1657 = vmatpush1.msra.mxu0 %v1281
        %1658 = vmatprep.mubr.f32.mxu0 %v933
        %1659 = vmatmul.mubr.f32.gmra.mrb[0].mxu0 %v932
        %v1660 = vpop.f32.mrb[0].mxu0
        %v1661 = vadd.f32 %v1436, %v1660
        %v1662 = vpop.f32.mrb[0].mxu0
        %1663 = vmatprep.mubr.f32.mxu0 %v942
        %1664 = vmatmul.mubr.f32.gmra.mrb[0].mxu0 %v941
        %v1665 = vpop.f32.mrb[0].mxu0
        %v1666 = vadd.f32 %v1441, %v1665
        %v1667 = vpop.f32.mrb[0].mxu0
        %1668 = vmatprep.mubr.f32.mxu0 %v951
        %1669 = vmatmul.mubr.f32.gmra.mrb[0].mxu0 %v950
        %v1670 = vpop.f32.mrb[0].mxu0
        %v1671 = vadd.f32 %v1446, %v1670
        %v1672 = vpop.f32.mrb[0].mxu0
        %1673 = vmatprep.mubr.f32.mxu0 %v960
        %1674 = vmatmul.mubr.f32.gmra.mrb[0].mxu0 %v959
        %v1675 = vpop.f32.mrb[0].mxu0
        %v1676 = vadd.f32 %v1451, %v1675
        %v1677 = vpop.f32.mrb[0].mxu0
        %1678 = vmatprep.mubr.f32.mxu0 %v969
        %1679 = vmatmul.mubr.f32.gmra.mrb[0].mxu0 %v968
        %v1680 = vpop.f32.mrb[0].mxu0
        %v1681 = vadd.f32 %v1456, %v1680
        %v1682 = vpop.f32.mrb[0].mxu0
        %1683 = vmatprep.mubr.f32.mxu0 %v978
        %1684 = vmatmul.mubr.f32.gmra.mrb[0].mxu0 %v977
        %v1685 = vpop.f32.mrb[0].mxu0
        %v1686 = vadd.f32 %v1461, %v1685
        %v1687 = vpop.f32.mrb[0].mxu0
        %1688 = vmatprep.mubr.f32.mxu0 %v987
        %1689 = vmatmul.mubr.f32.gmra.mrb[0].mxu0 %v986
        %v1690 = vpop.f32.mrb[0].mxu0
        %v1691 = vadd.f32 %v1466, %v1690
        %v1692 = vpop.f32.mrb[0].mxu0
        %1693 = vmatprep.mubr.f32.mxu0 %v996
        %1694 = vmatmul.mubr.f32.gmra.mrb[0].mxu0 %v995
        %v1695 = vpop.f32.mrb[0].mxu0
        %v1696 = vadd.f32 %v1471, %v1695
        %v1697 = vpop.f32.mrb[0].mxu0
        %1698 = vmatprep.mubr.f32.mxu0 %v1005
        %1699 = vmatmul.mubr.f32.gmra.mrb[0].mxu0 %v1004
        %v1700 = vpop.f32.mrb[0].mxu0
        %v1701 = vadd.f32 %v1476, %v1700
        %v1702 = vpop.f32.mrb[0].mxu0
        %1703 = vmatprep.mubr.f32.mxu0 %v1014
        %1704 = vmatmul.mubr.f32.gmra.mrb[0].mxu0 %v1013
        %v1705 = vpop.f32.mrb[0].mxu0
        %v1706 = vadd.f32 %v1481, %v1705
        %v1707 = vpop.f32.mrb[0].mxu0
        %1708 = vmatprep.mubr.f32.mxu0 %v1023
        %1709 = vmatmul.mubr.f32.gmra.mrb[0].mxu0 %v1022
        %v1710 = vpop.f32.mrb[0].mxu0
        %v1711 = vadd.f32 %v1486, %v1710
        %v1712 = vpop.f32.mrb[0].mxu0
        %1713 = vmatprep.mubr.f32.mxu0 %v1032
        %1714 = vmatmul.mubr.f32.gmra.mrb[0].mxu0 %v1031
        %v1715 = vpop.f32.mrb[0].mxu0
        %v1716 = vadd.f32 %v1491, %v1715
        %v1717 = vpop.f32.mrb[0].mxu0
        %1718 = vmatprep.mubr.f32.mxu0 %v1041
        %1719 = vmatmul.mubr.f32.gmra.mrb[0].mxu0 %v1040
        %v1720 = vpop.f32.mrb[0].mxu0
        %v1721 = vadd.f32 %v1496, %v1720
        %v1722 = vpop.f32.mrb[0].mxu0
        %1723 = vmatprep.mubr.f32.mxu0 %v1050
        %1724 = vmatmul.mubr.f32.gmra.mrb[0].mxu0 %v1049
        %v1725 = vpop.f32.mrb[0].mxu0
        %v1726 = vadd.f32 %v1501, %v1725
        %v1727 = vpop.f32.mrb[0].mxu0
        %1728 = vmatprep.mubr.f32.mxu0 %v1059
        %1729 = vmatmul.mubr.f32.gmra.mrb[0].mxu0 %v1058
        %v1730 = vpop.f32.mrb[0].mxu0
        %v1731 = vadd.f32 %v1506, %v1730
        %v1732 = vpop.f32.mrb[0].mxu0
        %1733 = vmatprep.mubr.f32.mxu0 %v1068
        %1734 = vmatmul.mubr.f32.gmra.mrb[0].mxu0 %v1067
        %v1735 = vpop.f32.mrb[0].mxu0
        %v1736 = vadd.f32 %v1511, %v1735
        %v1737 = vpop.f32.mrb[0].mxu0
        %1738 = vmatprep.mubr.f32.mxu0 %v1077
        %1739 = vmatmul.mubr.f32.gmra.mrb[0].mxu0 %v1076
        %v1740 = vpop.f32.mrb[0].mxu0
        %v1741 = vadd.f32 %v1516, %v1740
        %v1742 = vpop.f32.mrb[0].mxu0
        %1743 = vmatprep.mubr.f32.mxu0 %v1086
        %1744 = vmatmul.mubr.f32.gmra.mrb[0].mxu0 %v1085
        %v1745 = vpop.f32.mrb[0].mxu0
        %v1746 = vadd.f32 %v1521, %v1745
        %v1747 = vpop.f32.mrb[0].mxu0
        %1748 = vmatprep.mubr.f32.mxu0 %v1095
        %1749 = vmatmul.mubr.f32.gmra.mrb[0].mxu0 %v1094
        %v1750 = vpop.f32.mrb[0].mxu0
        %v1751 = vadd.f32 %v1526, %v1750
        %v1752 = vpop.f32.mrb[0].mxu0
        %1753 = vmatprep.mubr.f32.mxu0 %v1104
        %1754 = vmatmul.mubr.f32.gmra.mrb[0].mxu0 %v1103
        %v1755 = vpop.f32.mrb[0].mxu0
        %v1756 = vadd.f32 %v1531, %v1755
        %v1757 = vpop.f32.mrb[0].mxu0
        %1758 = vmatprep.mubr.f32.mxu0 %v1113
        %1759 = vmatmul.mubr.f32.gmra.mrb[0].mxu0 %v1112
        %v1760 = vpop.f32.mrb[0].mxu0
        %v1761 = vadd.f32 %v1536, %v1760
        %v1762 = vpop.f32.mrb[0].mxu0
        %1763 = vmatprep.mubr.f32.mxu0 %v1122
        %1764 = vmatmul.mubr.f32.gmra.mrb[0].mxu0 %v1121
        %v1765 = vpop.f32.mrb[0].mxu0
        %v1766 = vadd.f32 %v1541, %v1765
        %v1767 = vpop.f32.mrb[0].mxu0
        %1768 = vmatprep.mubr.f32.mxu0 %v1131
        %1769 = vmatmul.mubr.f32.gmra.mrb[0].mxu0 %v1130
        %v1770 = vpop.f32.mrb[0].mxu0
        %v1771 = vadd.f32 %v1546, %v1770
        %v1772 = vpop.f32.mrb[0].mxu0
        %1773 = vmatprep.mubr.f32.mxu0 %v1140
        %1774 = vmatmul.mubr.f32.gmra.mrb[0].mxu0 %v1139
        %v1775 = vpop.f32.mrb[0].mxu0
        %v1776 = vadd.f32 %v1551, %v1775
        %v1777 = vpop.f32.mrb[0].mxu0
        %1778 = vmatprep.mubr.f32.mxu0 %v1149
        %1779 = vmatmul.mubr.f32.gmra.mrb[0].mxu0 %v1148
        %v1780 = vpop.f32.mrb[0].mxu0
        %v1781 = vadd.f32 %v1556, %v1780
        %v1782 = vpop.f32.mrb[0].mxu0
        %1783 = vmatprep.mubr.f32.mxu0 %v1158
        %1784 = vmatmul.mubr.f32.gmra.mrb[0].mxu0 %v1157
        %v1785 = vpop.f32.mrb[0].mxu0
        %v1786 = vadd.f32 %v1561, %v1785
        %v1787 = vpop.f32.mrb[0].mxu0
        %1788 = vmatprep.mubr.f32.mxu0 %v1167
        %1789 = vmatmul.mubr.f32.gmra.mrb[0].mxu0 %v1166
        %v1790 = vpop.f32.mrb[0].mxu0
        %v1791 = vadd.f32 %v1566, %v1790
        %v1792 = vpop.f32.mrb[0].mxu0
        %1793 = vmatprep.mubr.f32.mxu0 %v1176
        %1794 = vmatmul.mubr.f32.gmra.mrb[0].mxu0 %v1175
        %v1795 = vpop.f32.mrb[0].mxu0
        %v1796 = vadd.f32 %v1571, %v1795
        %v1797 = vpop.f32.mrb[0].mxu0
        %1798 = vmatprep.mubr.f32.mxu0 %v1185
        %1799 = vmatmul.mubr.f32.gmra.mrb[0].mxu0 %v1184
        %v1800 = vpop.f32.mrb[0].mxu0
        %v1801 = vadd.f32 %v1576, %v1800
        %v1802 = vpop.f32.mrb[0].mxu0
        %1803 = vmatprep.mubr.f32.mxu0 %v1194
        %1804 = vmatmul.mubr.f32.gmra.mrb[0].mxu0 %v1193
        %v1805 = vpop.f32.mrb[0].mxu0
        %v1806 = vadd.f32 %v1581, %v1805
        %v1807 = vpop.f32.mrb[0].mxu0
        %1808 = vmatprep.mubr.f32.mxu0 %v1203
        %1809 = vmatmul.mubr.f32.gmra.mrb[0].mxu0 %v1202
        %v1810 = vpop.f32.mrb[0].mxu0
        %v1811 = vadd.f32 %v1586, %v1810
        %v1812 = vpop.f32.mrb[0].mxu0
        %1813 = vmatprep.mubr.f32.mxu0 %v1212
        %1814 = vmatmul.mubr.f32.gmra.mrb[0].mxu0 %v1211
        %v1815 = vpop.f32.mrb[0].mxu0
        %v1816 = vadd.f32 %v1591, %v1815
        %v1817 = vpop.f32.mrb[0].mxu0
        %1818 = vdwg.mxu0
        %1819 = vmatprep.subr.mxu0 0.0
        %1820 = vmatpush1.msra.mxu0 %v1282
        %1821 = vmatprep.subr.mxu0 0.0
        %1822 = vmatpush1.msra.mxu0 %v1283
        %1823 = vmatprep.subr.mxu0 0.0
        %1824 = vmatpush1.msra.mxu0 %v1284
        %1825 = vmatprep.subr.mxu0 0.0
        %1826 = vmatpush1.msra.mxu0 %v1285
        %1827 = vmatprep.subr.mxu0 0.0
        %1828 = vmatpush1.msra.mxu0 %v1286
        %1829 = vmatprep.subr.mxu0 0.0
        %1830 = vmatpush1.msra.mxu0 %v1287
        %1831 = vmatprep.subr.mxu0 0.0
        %1832 = vmatpush1.msra.mxu0 %v1288
        %1833 = vmatprep.subr.mxu0 0.0
        %1834 = vmatpush1.msra.mxu0 %v1289
        %1835 = vmatprep.subr.mxu0 0.0
        %1836 = vmatpush1.msra.mxu0 %v1290
        %1837 = vmatprep.subr.mxu0 0.0
        %1838 = vmatpush1.msra.mxu0 %v1291
        %1839 = vmatprep.subr.mxu0 0.0
        %1840 = vmatpush1.msra.mxu0 %v1292
        %1841 = vmatprep.subr.mxu0 0.0
        %1842 = vmatpush1.msra.mxu0 %v1293
        %1843 = vmatprep.subr.mxu0 0.0
        %1844 = vmatpush1.msra.mxu0 %v1294
        %1845 = vmatprep.subr.mxu0 0.0
        %1846 = vmatpush1.msra.mxu0 %v1295
        %1847 = vmatprep.subr.mxu0 0.0
        %1848 = vmatpush1.msra.mxu0 %v1296
        %1849 = vmatprep.subr.mxu0 0.0
        %1850 = vmatpush1.msra.mxu0 %v1297
        %1851 = vmatprep.subr.mxu0 0.0
        %1852 = vmatpush1.msra.mxu0 %v1298
        %1853 = vmatprep.subr.mxu0 0.0
        %1854 = vmatpush1.msra.mxu0 %v1299
        %1855 = vmatprep.subr.mxu0 0.0
        %1856 = vmatpush1.msra.mxu0 %v1300
        %1857 = vmatprep.subr.mxu0 0.0
        %1858 = vmatpush1.msra.mxu0 %v1301
        %1859 = vmatprep.subr.mxu0 0.0
        %1860 = vmatpush1.msra.mxu0 %v1302
        %1861 = vmatprep.subr.mxu0 0.0
        %1862 = vmatpush1.msra.mxu0 %v1303
        %1863 = vmatprep.subr.mxu0 0.0
        %1864 = vmatpush1.msra.mxu0 %v1304
        %1865 = vmatprep.subr.mxu0 0.0
        %1866 = vmatpush1.msra.mxu0 %v1305
        %1867 = vmatprep.subr.mxu0 0.0
        %1868 = vmatpush1.msra.mxu0 %v1306
        %1869 = vmatprep.subr.mxu0 0.0
        %1870 = vmatpush1.msra.mxu0 %v1307
        %1871 = vmatprep.subr.mxu0 0.0
        %1872 = vmatpush1.msra.mxu0 %v1308
        %1873 = vmatprep.subr.mxu0 0.0
        %1874 = vmatpush1.msra.mxu0 %v1309
        %1875 = vmatprep.subr.mxu0 0.0
        %1876 = vmatpush1.msra.mxu0 %v1310
        %1877 = vmatprep.subr.mxu0 0.0
        %1878 = vmatpush1.msra.mxu0 %v1311
        %1879 = vmatprep.subr.mxu0 0.0
        %1880 = vmatpush1.msra.mxu0 %v1312
        %1881 = vmatprep.subr.mxu0 0.0
        %1882 = vmatpush1.msra.mxu0 %v1313
        %1883 = vmatprep.mubr.f32.mxu0 %v935
        %1884 = vmatmul.mubr.f32.gmra.mrb[0].mxu0 %v934
        %v1885 = vpop.f32.mrb[0].mxu0
        %v1886 = vadd.f32 %v1661, %v1885
        %v1887 = vpop.f32.mrb[0].mxu0
        %1888 = vmatprep.mubr.f32.mxu0 %v944
        %1889 = vmatmul.mubr.f32.gmra.mrb[0].mxu0 %v943
        %v1890 = vpop.f32.mrb[0].mxu0
        %v1891 = vadd.f32 %v1666, %v1890
        %v1892 = vpop.f32.mrb[0].mxu0
        %1893 = vmatprep.mubr.f32.mxu0 %v953
        %1894 = vmatmul.mubr.f32.gmra.mrb[0].mxu0 %v952
        %v1895 = vpop.f32.mrb[0].mxu0
        %v1896 = vadd.f32 %v1671, %v1895
        %v1897 = vpop.f32.mrb[0].mxu0
        %1898 = vmatprep.mubr.f32.mxu0 %v962
        %1899 = vmatmul.mubr.f32.gmra.mrb[0].mxu0 %v961
        %v1900 = vpop.f32.mrb[0].mxu0
        %v1901 = vadd.f32 %v1676, %v1900
        %v1902 = vpop.f32.mrb[0].mxu0
        %1903 = vmatprep.mubr.f32.mxu0 %v971
        %1904 = vmatmul.mubr.f32.gmra.mrb[0].mxu0 %v970
        %v1905 = vpop.f32.mrb[0].mxu0
        %v1906 = vadd.f32 %v1681, %v1905
        %v1907 = vpop.f32.mrb[0].mxu0
        %1908 = vmatprep.mubr.f32.mxu0 %v980
        %1909 = vmatmul.mubr.f32.gmra.mrb[0].mxu0 %v979
        %v1910 = vpop.f32.mrb[0].mxu0
        %v1911 = vadd.f32 %v1686, %v1910
        %v1912 = vpop.f32.mrb[0].mxu0
        %1913 = vmatprep.mubr.f32.mxu0 %v989
        %1914 = vmatmul.mubr.f32.gmra.mrb[0].mxu0 %v988
        %v1915 = vpop.f32.mrb[0].mxu0
        %v1916 = vadd.f32 %v1691, %v1915
        %v1917 = vpop.f32.mrb[0].mxu0
        %1918 = vmatprep.mubr.f32.mxu0 %v998
        %1919 = vmatmul.mubr.f32.gmra.mrb[0].mxu0 %v997
        %v1920 = vpop.f32.mrb[0].mxu0
        %v1921 = vadd.f32 %v1696, %v1920
        %v1922 = vpop.f32.mrb[0].mxu0
        %1923 = vmatprep.mubr.f32.mxu0 %v1007
        %1924 = vmatmul.mubr.f32.gmra.mrb[0].mxu0 %v1006
        %v1925 = vpop.f32.mrb[0].mxu0
        %v1926 = vadd.f32 %v1701, %v1925
        %v1927 = vpop.f32.mrb[0].mxu0
        %1928 = vmatprep.mubr.f32.mxu0 %v1016
        %1929 = vmatmul.mubr.f32.gmra.mrb[0].mxu0 %v1015
        %v1930 = vpop.f32.mrb[0].mxu0
        %v1931 = vadd.f32 %v1706, %v1930
        %v1932 = vpop.f32.mrb[0].mxu0
        %1933 = vmatprep.mubr.f32.mxu0 %v1025
        %1934 = vmatmul.mubr.f32.gmra.mrb[0].mxu0 %v1024
        %v1935 = vpop.f32.mrb[0].mxu0
        %v1936 = vadd.f32 %v1711, %v1935
        %v1937 = vpop.f32.mrb[0].mxu0
        %1938 = vmatprep.mubr.f32.mxu0 %v1034
        %1939 = vmatmul.mubr.f32.gmra.mrb[0].mxu0 %v1033
        %v1940 = vpop.f32.mrb[0].mxu0
        %v1941 = vadd.f32 %v1716, %v1940
        %v1942 = vpop.f32.mrb[0].mxu0
        %1943 = vmatprep.mubr.f32.mxu0 %v1043
        %1944 = vmatmul.mubr.f32.gmra.mrb[0].mxu0 %v1042
        %v1945 = vpop.f32.mrb[0].mxu0
        %v1946 = vadd.f32 %v1721, %v1945
        %v1947 = vpop.f32.mrb[0].mxu0
        %1948 = vmatprep.mubr.f32.mxu0 %v1052
        %1949 = vmatmul.mubr.f32.gmra.mrb[0].mxu0 %v1051
        %v1950 = vpop.f32.mrb[0].mxu0
        %v1951 = vadd.f32 %v1726, %v1950
        %v1952 = vpop.f32.mrb[0].mxu0
        %1953 = vmatprep.mubr.f32.mxu0 %v1061
        %1954 = vmatmul.mubr.f32.gmra.mrb[0].mxu0 %v1060
        %v1955 = vpop.f32.mrb[0].mxu0
        %v1956 = vadd.f32 %v1731, %v1955
        %v1957 = vpop.f32.mrb[0].mxu0
        %1958 = vmatprep.mubr.f32.mxu0 %v1070
        %1959 = vmatmul.mubr.f32.gmra.mrb[0].mxu0 %v1069
        %v1960 = vpop.f32.mrb[0].mxu0
        %v1961 = vadd.f32 %v1736, %v1960
        %v1962 = vpop.f32.mrb[0].mxu0
        %1963 = vmatprep.mubr.f32.mxu0 %v1079
        %1964 = vmatmul.mubr.f32.gmra.mrb[0].mxu0 %v1078
        %v1965 = vpop.f32.mrb[0].mxu0
        %v1966 = vadd.f32 %v1741, %v1965
        %v1967 = vpop.f32.mrb[0].mxu0
        %1968 = vmatprep.mubr.f32.mxu0 %v1088
        %1969 = vmatmul.mubr.f32.gmra.mrb[0].mxu0 %v1087
        %v1970 = vpop.f32.mrb[0].mxu0
        %v1971 = vadd.f32 %v1746, %v1970
        %v1972 = vpop.f32.mrb[0].mxu0
        %1973 = vmatprep.mubr.f32.mxu0 %v1097
        %1974 = vmatmul.mubr.f32.gmra.mrb[0].mxu0 %v1096
        %v1975 = vpop.f32.mrb[0].mxu0
        %v1976 = vadd.f32 %v1751, %v1975
        %v1977 = vpop.f32.mrb[0].mxu0
        %1978 = vmatprep.mubr.f32.mxu0 %v1106
        %1979 = vmatmul.mubr.f32.gmra.mrb[0].mxu0 %v1105
        %v1980 = vpop.f32.mrb[0].mxu0
        %v1981 = vadd.f32 %v1756, %v1980
        %v1982 = vpop.f32.mrb[0].mxu0
        %1983 = vmatprep.mubr.f32.mxu0 %v1115
        %1984 = vmatmul.mubr.f32.gmra.mrb[0].mxu0 %v1114
        %v1985 = vpop.f32.mrb[0].mxu0
        %v1986 = vadd.f32 %v1761, %v1985
        %v1987 = vpop.f32.mrb[0].mxu0
        %1988 = vmatprep.mubr.f32.mxu0 %v1124
        %1989 = vmatmul.mubr.f32.gmra.mrb[0].mxu0 %v1123
        %v1990 = vpop.f32.mrb[0].mxu0
        %v1991 = vadd.f32 %v1766, %v1990
        %v1992 = vpop.f32.mrb[0].mxu0
        %1993 = vmatprep.mubr.f32.mxu0 %v1133
        %1994 = vmatmul.mubr.f32.gmra.mrb[0].mxu0 %v1132
        %v1995 = vpop.f32.mrb[0].mxu0
        %v1996 = vadd.f32 %v1771, %v1995
        %v1997 = vpop.f32.mrb[0].mxu0
        %1998 = vmatprep.mubr.f32.mxu0 %v1142
        %1999 = vmatmul.mubr.f32.gmra.mrb[0].mxu0 %v1141
        %v2000 = vpop.f32.mrb[0].mxu0
        %v2001 = vadd.f32 %v1776, %v2000
        %v2002 = vpop.f32.mrb[0].mxu0
        %2003 = vmatprep.mubr.f32.mxu0 %v1151
        %2004 = vmatmul.mubr.f32.gmra.mrb[0].mxu0 %v1150
        %v2005 = vpop.f32.mrb[0].mxu0
        %v2006 = vadd.f32 %v1781, %v2005
        %v2007 = vpop.f32.mrb[0].mxu0
        %2008 = vmatprep.mubr.f32.mxu0 %v1160
        %2009 = vmatmul.mubr.f32.gmra.mrb[0].mxu0 %v1159
        %v2010 = vpop.f32.mrb[0].mxu0
        %v2011 = vadd.f32 %v1786, %v2010
        %v2012 = vpop.f32.mrb[0].mxu0
        %2013 = vmatprep.mubr.f32.mxu0 %v1169
        %2014 = vmatmul.mubr.f32.gmra.mrb[0].mxu0 %v1168
        %v2015 = vpop.f32.mrb[0].mxu0
        %v2016 = vadd.f32 %v1791, %v2015
        %v2017 = vpop.f32.mrb[0].mxu0
        %2018 = vmatprep.mubr.f32.mxu0 %v1178
        %2019 = vmatmul.mubr.f32.gmra.mrb[0].mxu0 %v1177
        %v2020 = vpop.f32.mrb[0].mxu0
        %v2021 = vadd.f32 %v1796, %v2020
        %v2022 = vpop.f32.mrb[0].mxu0
        %2023 = vmatprep.mubr.f32.mxu0 %v1187
        %2024 = vmatmul.mubr.f32.gmra.mrb[0].mxu0 %v1186
        %v2025 = vpop.f32.mrb[0].mxu0
        %v2026 = vadd.f32 %v1801, %v2025
        %v2027 = vpop.f32.mrb[0].mxu0
        %2028 = vmatprep.mubr.f32.mxu0 %v1196
        %2029 = vmatmul.mubr.f32.gmra.mrb[0].mxu0 %v1195
        %v2030 = vpop.f32.mrb[0].mxu0
        %v2031 = vadd.f32 %v1806, %v2030
        %v2032 = vpop.f32.mrb[0].mxu0
        %2033 = vmatprep.mubr.f32.mxu0 %v1205
        %2034 = vmatmul.mubr.f32.gmra.mrb[0].mxu0 %v1204
        %v2035 = vpop.f32.mrb[0].mxu0
        %v2036 = vadd.f32 %v1811, %v2035
        %v2037 = vpop.f32.mrb[0].mxu0
        %2038 = vmatprep.mubr.f32.mxu0 %v1214
        %2039 = vmatmul.mubr.f32.gmra.mrb[0].mxu0 %v1213
        %v2040 = vpop.f32.mrb[0].mxu0
        %v2041 = vadd.f32 %v1816, %v2040
        %v2042 = vpop.f32.mrb[0].mxu0
        %2043 = vdwg.mxu0
        %2044 = vmatprep.subr.mxu0 0.0
        %2045 = vmatpush1.msra.mxu0 %v1314
        %2046 = vmatprep.subr.mxu0 0.0
        %2047 = vmatpush1.msra.mxu0 %v1315
        %2048 = vmatprep.subr.mxu0 0.0
        %2049 = vmatpush1.msra.mxu0 %v1316
        %2050 = vmatprep.subr.mxu0 0.0
        %2051 = vmatpush1.msra.mxu0 %v1317
        %2052 = vmatprep.subr.mxu0 0.0
        %2053 = vmatpush1.msra.mxu0 %v1318
        %2054 = vmatprep.subr.mxu0 0.0
        %2055 = vmatpush1.msra.mxu0 %v1319
        %2056 = vmatprep.subr.mxu0 0.0
        %2057 = vmatpush1.msra.mxu0 %v1320
        %2058 = vmatprep.subr.mxu0 0.0
        %2059 = vmatpush1.msra.mxu0 %v1321
        %2060 = vmatprep.subr.mxu0 0.0
        %2061 = vmatpush1.msra.mxu0 %v1322
        %2062 = vmatprep.subr.mxu0 0.0
        %2063 = vmatpush1.msra.mxu0 %v1323
        %2064 = vmatprep.subr.mxu0 0.0
        %2065 = vmatpush1.msra.mxu0 %v1324
        %2066 = vmatprep.subr.mxu0 0.0
        %2067 = vmatpush1.msra.mxu0 %v1325
        %2068 = vmatprep.subr.mxu0 0.0
        %2069 = vmatpush1.msra.mxu0 %v1326
        %2070 = vmatprep.subr.mxu0 0.0
        %2071 = vmatpush1.msra.mxu0 %v1327
        %2072 = vmatprep.subr.mxu0 0.0
        %2073 = vmatpush1.msra.mxu0 %v1328
        %2074 = vmatprep.subr.mxu0 0.0
        %2075 = vmatpush1.msra.mxu0 %v1329
        %2076 = vmatprep.subr.mxu0 0.0
        %2077 = vmatpush1.msra.mxu0 %v1330
        %2078 = vmatprep.subr.mxu0 0.0
        %2079 = vmatpush1.msra.mxu0 %v1331
        %2080 = vmatprep.subr.mxu0 0.0
        %2081 = vmatpush1.msra.mxu0 %v1332
        %2082 = vmatprep.subr.mxu0 0.0
        %2083 = vmatpush1.msra.mxu0 %v1333
        %2084 = vmatprep.subr.mxu0 0.0
        %2085 = vmatpush1.msra.mxu0 %v1334
        %2086 = vmatprep.subr.mxu0 0.0
        %2087 = vmatpush1.msra.mxu0 %v1335
        %2088 = vmatprep.subr.mxu0 0.0
        %2089 = vmatpush1.msra.mxu0 %v1336
        %2090 = vmatprep.subr.mxu0 0.0
        %2091 = vmatpush1.msra.mxu0 %v1337
        %2092 = vmatprep.subr.mxu0 0.0
        %2093 = vmatpush1.msra.mxu0 %v1338
        %2094 = vmatprep.subr.mxu0 0.0
        %2095 = vmatpush1.msra.mxu0 %v1339
        %2096 = vmatprep.subr.mxu0 0.0
        %2097 = vmatpush1.msra.mxu0 %v1340
        %2098 = vmatprep.subr.mxu0 0.0
        %2099 = vmatpush1.msra.mxu0 %v1341
        %2100 = vmatprep.subr.mxu0 0.0
        %2101 = vmatpush1.msra.mxu0 %v1342
        %2102 = vmatprep.subr.mxu0 0.0
        %2103 = vmatpush1.msra.mxu0 %v1343
        %2104 = vmatprep.subr.mxu0 0.0
        %2105 = vmatpush1.msra.mxu0 %v1344
        %2106 = vmatprep.subr.mxu0 0.0
        %2107 = vmatpush1.msra.mxu0 %v1345
        %2108 = vmatprep.mubr.f32.mxu0 %v937
        %2109 = vmatmul.mubr.f32.gmra.mrb[0].mxu0 %v936
        %v2110 = vpop.f32.mrb[0].mxu0
        %v2111 = vadd.f32 %v1886, %v2110
        %v2112 = vpop.f32.mrb[0].mxu0
        %2113 = vmatprep.mubr.f32.mxu0 %v946
        %2114 = vmatmul.mubr.f32.gmra.mrb[0].mxu0 %v945
        %v2115 = vpop.f32.mrb[0].mxu0
        %v2116 = vadd.f32 %v1891, %v2115
        %v2117 = vpop.f32.mrb[0].mxu0
        %2118 = vmatprep.mubr.f32.mxu0 %v955
        %2119 = vmatmul.mubr.f32.gmra.mrb[0].mxu0 %v954
        %v2120 = vpop.f32.mrb[0].mxu0
        %v2121 = vadd.f32 %v1896, %v2120
        %v2122 = vpop.f32.mrb[0].mxu0
        %2123 = vmatprep.mubr.f32.mxu0 %v964
        %2124 = vmatmul.mubr.f32.gmra.mrb[0].mxu0 %v963
        %v2125 = vpop.f32.mrb[0].mxu0
        %v2126 = vadd.f32 %v1901, %v2125
        %v2127 = vpop.f32.mrb[0].mxu0
        %2128 = vmatprep.mubr.f32.mxu0 %v973
        %2129 = vmatmul.mubr.f32.gmra.mrb[0].mxu0 %v972
        %v2130 = vpop.f32.mrb[0].mxu0
        %v2131 = vadd.f32 %v1906, %v2130
        %v2132 = vpop.f32.mrb[0].mxu0
        %2133 = vmatprep.mubr.f32.mxu0 %v982
        %2134 = vmatmul.mubr.f32.gmra.mrb[0].mxu0 %v981
        %v2135 = vpop.f32.mrb[0].mxu0
        %v2136 = vadd.f32 %v1911, %v2135
        %v2137 = vpop.f32.mrb[0].mxu0
        %2138 = vmatprep.mubr.f32.mxu0 %v991
        %2139 = vmatmul.mubr.f32.gmra.mrb[0].mxu0 %v990
        %v2140 = vpop.f32.mrb[0].mxu0
        %v2141 = vadd.f32 %v1916, %v2140
        %v2142 = vpop.f32.mrb[0].mxu0
        %2143 = vmatprep.mubr.f32.mxu0 %v1000
        %2144 = vmatmul.mubr.f32.gmra.mrb[0].mxu0 %v999
        %v2145 = vpop.f32.mrb[0].mxu0
        %v2146 = vadd.f32 %v1921, %v2145
        %v2147 = vpop.f32.mrb[0].mxu0
        %2148 = vmatprep.mubr.f32.mxu0 %v1009
        %2149 = vmatmul.mubr.f32.gmra.mrb[0].mxu0 %v1008
        %v2150 = vpop.f32.mrb[0].mxu0
        %v2151 = vadd.f32 %v1926, %v2150
        %v2152 = vpop.f32.mrb[0].mxu0
        %2153 = vmatprep.mubr.f32.mxu0 %v1018
        %2154 = vmatmul.mubr.f32.gmra.mrb[0].mxu0 %v1017
        %v2155 = vpop.f32.mrb[0].mxu0
        %v2156 = vadd.f32 %v1931, %v2155
        %v2157 = vpop.f32.mrb[0].mxu0
        %2158 = vmatprep.mubr.f32.mxu0 %v1027
        %2159 = vmatmul.mubr.f32.gmra.mrb[0].mxu0 %v1026
        %v2160 = vpop.f32.mrb[0].mxu0
        %v2161 = vadd.f32 %v1936, %v2160
        %v2162 = vpop.f32.mrb[0].mxu0
        %2163 = vmatprep.mubr.f32.mxu0 %v1036
        %2164 = vmatmul.mubr.f32.gmra.mrb[0].mxu0 %v1035
        %v2165 = vpop.f32.mrb[0].mxu0
        %v2166 = vadd.f32 %v1941, %v2165
        %v2167 = vpop.f32.mrb[0].mxu0
        %2168 = vmatprep.mubr.f32.mxu0 %v1045
        %2169 = vmatmul.mubr.f32.gmra.mrb[0].mxu0 %v1044
        %v2170 = vpop.f32.mrb[0].mxu0
        %v2171 = vadd.f32 %v1946, %v2170
        %v2172 = vpop.f32.mrb[0].mxu0
        %2173 = vmatprep.mubr.f32.mxu0 %v1054
        %2174 = vmatmul.mubr.f32.gmra.mrb[0].mxu0 %v1053
        %v2175 = vpop.f32.mrb[0].mxu0
        %v2176 = vadd.f32 %v1951, %v2175
        %v2177 = vpop.f32.mrb[0].mxu0
        %2178 = vmatprep.mubr.f32.mxu0 %v1063
        %2179 = vmatmul.mubr.f32.gmra.mrb[0].mxu0 %v1062
        %v2180 = vpop.f32.mrb[0].mxu0
        %v2181 = vadd.f32 %v1956, %v2180
        %v2182 = vpop.f32.mrb[0].mxu0
        %2183 = vmatprep.mubr.f32.mxu0 %v1072
        %2184 = vmatmul.mubr.f32.gmra.mrb[0].mxu0 %v1071
        %v2185 = vpop.f32.mrb[0].mxu0
        %v2186 = vadd.f32 %v1961, %v2185
        %v2187 = vpop.f32.mrb[0].mxu0
        %2188 = vmatprep.mubr.f32.mxu0 %v1081
        %2189 = vmatmul.mubr.f32.gmra.mrb[0].mxu0 %v1080
        %v2190 = vpop.f32.mrb[0].mxu0
        %v2191 = vadd.f32 %v1966, %v2190
        %v2192 = vpop.f32.mrb[0].mxu0
        %2193 = vmatprep.mubr.f32.mxu0 %v1090
        %2194 = vmatmul.mubr.f32.gmra.mrb[0].mxu0 %v1089
        %v2195 = vpop.f32.mrb[0].mxu0
        %v2196 = vadd.f32 %v1971, %v2195
        %v2197 = vpop.f32.mrb[0].mxu0
        %2198 = vmatprep.mubr.f32.mxu0 %v1099
        %2199 = vmatmul.mubr.f32.gmra.mrb[0].mxu0 %v1098
        %v2200 = vpop.f32.mrb[0].mxu0
        %v2201 = vadd.f32 %v1976, %v2200
        %v2202 = vpop.f32.mrb[0].mxu0
        %2203 = vmatprep.mubr.f32.mxu0 %v1108
        %2204 = vmatmul.mubr.f32.gmra.mrb[0].mxu0 %v1107
        %v2205 = vpop.f32.mrb[0].mxu0
        %v2206 = vadd.f32 %v1981, %v2205
        %v2207 = vpop.f32.mrb[0].mxu0
        %2208 = vmatprep.mubr.f32.mxu0 %v1117
        %2209 = vmatmul.mubr.f32.gmra.mrb[0].mxu0 %v1116
        %v2210 = vpop.f32.mrb[0].mxu0
        %v2211 = vadd.f32 %v1986, %v2210
        %v2212 = vpop.f32.mrb[0].mxu0
        %2213 = vmatprep.mubr.f32.mxu0 %v1126
        %2214 = vmatmul.mubr.f32.gmra.mrb[0].mxu0 %v1125
        %v2215 = vpop.f32.mrb[0].mxu0
        %v2216 = vadd.f32 %v1991, %v2215
        %v2217 = vpop.f32.mrb[0].mxu0
        %2218 = vmatprep.mubr.f32.mxu0 %v1135
        %2219 = vmatmul.mubr.f32.gmra.mrb[0].mxu0 %v1134
        %v2220 = vpop.f32.mrb[0].mxu0
        %v2221 = vadd.f32 %v1996, %v2220
        %v2222 = vpop.f32.mrb[0].mxu0
        %2223 = vmatprep.mubr.f32.mxu0 %v1144
        %2224 = vmatmul.mubr.f32.gmra.mrb[0].mxu0 %v1143
        %v2225 = vpop.f32.mrb[0].mxu0
        %v2226 = vadd.f32 %v2001, %v2225
        %v2227 = vpop.f32.mrb[0].mxu0
        %2228 = vmatprep.mubr.f32.mxu0 %v1153
        %2229 = vmatmul.mubr.f32.gmra.mrb[0].mxu0 %v1152
        %v2230 = vpop.f32.mrb[0].mxu0
        %v2231 = vadd.f32 %v2006, %v2230
        %v2232 = vpop.f32.mrb[0].mxu0
        %2233 = vmatprep.mubr.f32.mxu0 %v1162
        %2234 = vmatmul.mubr.f32.gmra.mrb[0].mxu0 %v1161
        %v2235 = vpop.f32.mrb[0].mxu0
        %v2236 = vadd.f32 %v2011, %v2235
        %v2237 = vpop.f32.mrb[0].mxu0
        %2238 = vmatprep.mubr.f32.mxu0 %v1171
        %2239 = vmatmul.mubr.f32.gmra.mrb[0].mxu0 %v1170
        %v2240 = vpop.f32.mrb[0].mxu0
        %v2241 = vadd.f32 %v2016, %v2240
        %v2242 = vpop.f32.mrb[0].mxu0
        %2243 = vmatprep.mubr.f32.mxu0 %v1180
        %2244 = vmatmul.mubr.f32.gmra.mrb[0].mxu0 %v1179
        %v2245 = vpop.f32.mrb[0].mxu0
        %v2246 = vadd.f32 %v2021, %v2245
        %v2247 = vpop.f32.mrb[0].mxu0
        %2248 = vmatprep.mubr.f32.mxu0 %v1189
        %2249 = vmatmul.mubr.f32.gmra.mrb[0].mxu0 %v1188
        %v2250 = vpop.f32.mrb[0].mxu0
        %v2251 = vadd.f32 %v2026, %v2250
        %v2252 = vpop.f32.mrb[0].mxu0
        %2253 = vmatprep.mubr.f32.mxu0 %v1198
        %2254 = vmatmul.mubr.f32.gmra.mrb[0].mxu0 %v1197
        %v2255 = vpop.f32.mrb[0].mxu0
        %v2256 = vadd.f32 %v2031, %v2255
        %v2257 = vpop.f32.mrb[0].mxu0
        %2258 = vmatprep.mubr.f32.mxu0 %v1207
        %2259 = vmatmul.mubr.f32.gmra.mrb[0].mxu0 %v1206
        %v2260 = vpop.f32.mrb[0].mxu0
        %v2261 = vadd.f32 %v2036, %v2260
        %v2262 = vpop.f32.mrb[0].mxu0
        %2263 = vmatprep.mubr.f32.mxu0 %v1216
        %2264 = vmatmul.mubr.f32.gmra.mrb[0].mxu0 %v1215
        %v2265 = vpop.f32.mrb[0].mxu0
        %v2266 = vadd.f32 %v2041, %v2265
        %v2267 = vpop.f32.mrb[0].mxu0
        %2268 = vdwg.mxu0
        %2269 = vmatprep.subr.mxu0 0.0
        %2270 = vmatpush1.msra.mxu0 %v1346
        %2271 = vmatprep.subr.mxu0 0.0
        %2272 = vmatpush1.msra.mxu0 %v1347
        %2273 = vmatprep.subr.mxu0 0.0
        %2274 = vmatpush1.msra.mxu0 %v1348
        %2275 = vmatprep.subr.mxu0 0.0
        %2276 = vmatpush1.msra.mxu0 %v1349
        %2277 = vmatprep.subr.mxu0 0.0
        %2278 = vmatpush1.msra.mxu0 %v1350
        %2279 = vmatprep.subr.mxu0 0.0
        %2280 = vmatpush1.msra.mxu0 %v1351
        %2281 = vmatprep.subr.mxu0 0.0
        %2282 = vmatpush1.msra.mxu0 %v1352
        %2283 = vmatprep.subr.mxu0 0.0
        %2284 = vmatpush1.msra.mxu0 %v1353
        %2285 = vmatprep.subr.mxu0 0.0
        %2286 = vmatpush1.msra.mxu0 %v1354
        %2287 = vmatprep.subr.mxu0 0.0
        %2288 = vmatpush1.msra.mxu0 %v1355
        %2289 = vmatprep.subr.mxu0 0.0
        %2290 = vmatpush1.msra.mxu0 %v1356
        %2291 = vmatprep.subr.mxu0 0.0
        %2292 = vmatpush1.msra.mxu0 %v1357
        %2293 = vmatprep.subr.mxu0 0.0
        %2294 = vmatpush1.msra.mxu0 %v1358
        %2295 = vmatprep.subr.mxu0 0.0
        %2296 = vmatpush1.msra.mxu0 %v1359
        %2297 = vmatprep.subr.mxu0 0.0
        %2298 = vmatpush1.msra.mxu0 %v1360
        %2299 = vmatprep.subr.mxu0 0.0
        %2300 = vmatpush1.msra.mxu0 %v1361
        %2301 = vmatprep.subr.mxu0 0.0
        %2302 = vmatpush1.msra.mxu0 0.0
        %2303 = vmatprep.subr.mxu0 0.0
        %2304 = vmatpush1.msra.mxu0 0.0
        %2305 = vmatprep.subr.mxu0 0.0
        %2306 = vmatpush1.msra.mxu0 0.0
        %2307 = vmatprep.subr.mxu0 0.0
        %2308 = vmatpush1.msra.mxu0 0.0
        %2309 = vmatprep.subr.mxu0 0.0
        %2310 = vmatpush1.msra.mxu0 0.0
        %2311 = vmatprep.subr.mxu0 0.0
        %2312 = vmatpush1.msra.mxu0 0.0
        %2313 = vmatprep.subr.mxu0 0.0
        %2314 = vmatpush1.msra.mxu0 0.0
        %2315 = vmatprep.subr.mxu0 0.0
        %2316 = vmatpush1.msra.mxu0 0.0
        %2317 = vmatprep.subr.mxu0 0.0
        %2318 = vmatpush1.msra.mxu0 0.0
        %2319 = vmatprep.subr.mxu0 0.0
        %2320 = vmatpush1.msra.mxu0 0.0
        %2321 = vmatprep.subr.mxu0 0.0
        %2322 = vmatpush1.msra.mxu0 0.0
        %2323 = vmatprep.subr.mxu0 0.0
        %2324 = vmatpush1.msra.mxu0 0.0
        %2325 = vmatprep.subr.mxu0 0.0
        %2326 = vmatpush1.msra.mxu0 0.0
        %2327 = vmatprep.subr.mxu0 0.0
        %2328 = vmatpush1.msra.mxu0 0.0
        %2329 = vmatprep.subr.mxu0 0.0
        %2330 = vmatpush1.msra.mxu0 0.0
        %2331 = vmatprep.subr.mxu0 0.0
        %2332 = vmatpush1.msra.mxu0 0.0
        %2333 = vmatprep.mubr.f32.mxu0 0.0
        %2334 = vmatmul.mubr.f32.gmra.mrb[0].mxu0 %v938
        %v2335 = vpop.f32.mrb[0].mxu0
        %v2336 = vadd.f32 %v2111, %v2335
        %v2337 = vpop.f32.mrb[0].mxu0
        %2338 = vmatprep.mubr.f32.mxu0 0.0
        %2339 = vmatmul.mubr.f32.gmra.mrb[0].mxu0 %v947
        %v2340 = vpop.f32.mrb[0].mxu0
        %v2341 = vadd.f32 %v2116, %v2340
        %v2342 = vpop.f32.mrb[0].mxu0
        %2343 = vmatprep.mubr.f32.mxu0 0.0
        %2344 = vmatmul.mubr.f32.gmra.mrb[0].mxu0 %v956
        %v2345 = vpop.f32.mrb[0].mxu0
        %v2346 = vadd.f32 %v2121, %v2345
        %v2347 = vpop.f32.mrb[0].mxu0
        %2348 = vmatprep.mubr.f32.mxu0 0.0
        %2349 = vmatmul.mubr.f32.gmra.mrb[0].mxu0 %v965
        %v2350 = vpop.f32.mrb[0].mxu0
        %v2351 = vadd.f32 %v2126, %v2350
        %v2352 = vpop.f32.mrb[0].mxu0
        %2353 = vmatprep.mubr.f32.mxu0 0.0
        %2354 = vmatmul.mubr.f32.gmra.mrb[0].mxu0 %v974
        %v2355 = vpop.f32.mrb[0].mxu0
        %v2356 = vadd.f32 %v2131, %v2355
        %v2357 = vpop.f32.mrb[0].mxu0
        %2358 = vmatprep.mubr.f32.mxu0 0.0
        %2359 = vmatmul.mubr.f32.gmra.mrb[0].mxu0 %v983
        %v2360 = vpop.f32.mrb[0].mxu0
        %v2361 = vadd.f32 %v2136, %v2360
        %v2362 = vpop.f32.mrb[0].mxu0
        %2363 = vmatprep.mubr.f32.mxu0 0.0
        %2364 = vmatmul.mubr.f32.gmra.mrb[0].mxu0 %v992
        %v2365 = vpop.f32.mrb[0].mxu0
        %v2366 = vadd.f32 %v2141, %v2365
        %v2367 = vpop.f32.mrb[0].mxu0
        %2368 = vmatprep.mubr.f32.mxu0 0.0
        %2369 = vmatmul.mubr.f32.gmra.mrb[0].mxu0 %v1001
        %v2370 = vpop.f32.mrb[0].mxu0
        %v2371 = vadd.f32 %v2146, %v2370
        %v2372 = vpop.f32.mrb[0].mxu0
        %2373 = vmatprep.mubr.f32.mxu0 0.0
        %2374 = vmatmul.mubr.f32.gmra.mrb[0].mxu0 %v1010
        %v2375 = vpop.f32.mrb[0].mxu0
        %v2376 = vadd.f32 %v2151, %v2375
        %v2377 = vpop.f32.mrb[0].mxu0
        %2378 = vmatprep.mubr.f32.mxu0 0.0
        %2379 = vmatmul.mubr.f32.gmra.mrb[0].mxu0 %v1019
        %v2380 = vpop.f32.mrb[0].mxu0
        %v2381 = vadd.f32 %v2156, %v2380
        %v2382 = vpop.f32.mrb[0].mxu0
        %2383 = vmatprep.mubr.f32.mxu0 0.0
        %2384 = vmatmul.mubr.f32.gmra.mrb[0].mxu0 %v1028
        %v2385 = vpop.f32.mrb[0].mxu0
        %v2386 = vadd.f32 %v2161, %v2385
        %v2387 = vpop.f32.mrb[0].mxu0
        %2388 = vmatprep.mubr.f32.mxu0 0.0
        %2389 = vmatmul.mubr.f32.gmra.mrb[0].mxu0 %v1037
        %v2390 = vpop.f32.mrb[0].mxu0
        %v2391 = vadd.f32 %v2166, %v2390
        %v2392 = vpop.f32.mrb[0].mxu0
        %2393 = vmatprep.mubr.f32.mxu0 0.0
        %2394 = vmatmul.mubr.f32.gmra.mrb[0].mxu0 %v1046
        %v2395 = vpop.f32.mrb[0].mxu0
        %v2396 = vadd.f32 %v2171, %v2395
        %v2397 = vpop.f32.mrb[0].mxu0
        %2398 = vmatprep.mubr.f32.mxu0 0.0
        %2399 = vmatmul.mubr.f32.gmra.mrb[0].mxu0 %v1055
        %v2400 = vpop.f32.mrb[0].mxu0
        %v2401 = vadd.f32 %v2176, %v2400
        %v2402 = vpop.f32.mrb[0].mxu0
        %2403 = vmatprep.mubr.f32.mxu0 0.0
        %2404 = vmatmul.mubr.f32.gmra.mrb[0].mxu0 %v1064
        %v2405 = vpop.f32.mrb[0].mxu0
        %v2406 = vadd.f32 %v2181, %v2405
        %v2407 = vpop.f32.mrb[0].mxu0
        %2408 = vmatprep.mubr.f32.mxu0 0.0
        %2409 = vmatmul.mubr.f32.gmra.mrb[0].mxu0 %v1073
        %v2410 = vpop.f32.mrb[0].mxu0
        %v2411 = vadd.f32 %v2186, %v2410
        %v2412 = vpop.f32.mrb[0].mxu0
        %2413 = vmatprep.mubr.f32.mxu0 0.0
        %2414 = vmatmul.mubr.f32.gmra.mrb[0].mxu0 %v1082
        %v2415 = vpop.f32.mrb[0].mxu0
        %v2416 = vadd.f32 %v2191, %v2415
        %v2417 = vpop.f32.mrb[0].mxu0
        %2418 = vmatprep.mubr.f32.mxu0 0.0
        %2419 = vmatmul.mubr.f32.gmra.mrb[0].mxu0 %v1091
        %v2420 = vpop.f32.mrb[0].mxu0
        %v2421 = vadd.f32 %v2196, %v2420
        %v2422 = vpop.f32.mrb[0].mxu0
        %2423 = vmatprep.mubr.f32.mxu0 0.0
        %2424 = vmatmul.mubr.f32.gmra.mrb[0].mxu0 %v1100
        %v2425 = vpop.f32.mrb[0].mxu0
        %v2426 = vadd.f32 %v2201, %v2425
        %v2427 = vpop.f32.mrb[0].mxu0
        %2428 = vmatprep.mubr.f32.mxu0 0.0
        %2429 = vmatmul.mubr.f32.gmra.mrb[0].mxu0 %v1109
        %v2430 = vpop.f32.mrb[0].mxu0
        %v2431 = vadd.f32 %v2206, %v2430
        %v2432 = vpop.f32.mrb[0].mxu0
        %2433 = vmatprep.mubr.f32.mxu0 0.0
        %2434 = vmatmul.mubr.f32.gmra.mrb[0].mxu0 %v1118
        %v2435 = vpop.f32.mrb[0].mxu0
        %v2436 = vadd.f32 %v2211, %v2435
        %v2437 = vpop.f32.mrb[0].mxu0
        %2438 = vmatprep.mubr.f32.mxu0 0.0
        %2439 = vmatmul.mubr.f32.gmra.mrb[0].mxu0 %v1127
        %v2440 = vpop.f32.mrb[0].mxu0
        %v2441 = vadd.f32 %v2216, %v2440
        %v2442 = vpop.f32.mrb[0].mxu0
        %2443 = vmatprep.mubr.f32.mxu0 0.0
        %2444 = vmatmul.mubr.f32.gmra.mrb[0].mxu0 %v1136
        %v2445 = vpop.f32.mrb[0].mxu0
        %v2446 = vadd.f32 %v2221, %v2445
        %v2447 = vpop.f32.mrb[0].mxu0
        %2448 = vmatprep.mubr.f32.mxu0 0.0
        %2449 = vmatmul.mubr.f32.gmra.mrb[0].mxu0 %v1145
        %v2450 = vpop.f32.mrb[0].mxu0
        %v2451 = vadd.f32 %v2226, %v2450
        %v2452 = vpop.f32.mrb[0].mxu0
        %2453 = vmatprep.mubr.f32.mxu0 0.0
        %2454 = vmatmul.mubr.f32.gmra.mrb[0].mxu0 %v1154
        %v2455 = vpop.f32.mrb[0].mxu0
        %v2456 = vadd.f32 %v2231, %v2455
        %v2457 = vpop.f32.mrb[0].mxu0
        %2458 = vmatprep.mubr.f32.mxu0 0.0
        %2459 = vmatmul.mubr.f32.gmra.mrb[0].mxu0 %v1163
        %v2460 = vpop.f32.mrb[0].mxu0
        %v2461 = vadd.f32 %v2236, %v2460
        %v2462 = vpop.f32.mrb[0].mxu0
        %2463 = vmatprep.mubr.f32.mxu0 0.0
        %2464 = vmatmul.mubr.f32.gmra.mrb[0].mxu0 %v1172
        %v2465 = vpop.f32.mrb[0].mxu0
        %v2466 = vadd.f32 %v2241, %v2465
        %v2467 = vpop.f32.mrb[0].mxu0
        %2468 = vmatprep.mubr.f32.mxu0 0.0
        %2469 = vmatmul.mubr.f32.gmra.mrb[0].mxu0 %v1181
        %v2470 = vpop.f32.mrb[0].mxu0
        %v2471 = vadd.f32 %v2246, %v2470
        %v2472 = vpop.f32.mrb[0].mxu0
        %2473 = vmatprep.mubr.f32.mxu0 0.0
        %2474 = vmatmul.mubr.f32.gmra.mrb[0].mxu0 %v1190
        %v2475 = vpop.f32.mrb[0].mxu0
        %v2476 = vadd.f32 %v2251, %v2475
        %v2477 = vpop.f32.mrb[0].mxu0
        %2478 = vmatprep.mubr.f32.mxu0 0.0
        %2479 = vmatmul.mubr.f32.gmra.mrb[0].mxu0 %v1199
        %v2480 = vpop.f32.mrb[0].mxu0
        %v2481 = vadd.f32 %v2256, %v2480
        %v2482 = vpop.f32.mrb[0].mxu0
        %2483 = vmatprep.mubr.f32.mxu0 0.0
        %2484 = vmatmul.mubr.f32.gmra.mrb[0].mxu0 %v1208
        %v2485 = vpop.f32.mrb[0].mxu0
        %v2486 = vadd.f32 %v2261, %v2485
        %v2487 = vpop.f32.mrb[0].mxu0
        %2488 = vmatprep.mubr.f32.mxu0 0.0
        %2489 = vmatmul.mubr.f32.gmra.mrb[0].mxu0 %v1217
        %v2490 = vpop.f32.mrb[0].mxu0
        %v2491 = vadd.f32 %v2266, %v2490
        %v2492 = vpop.f32.mrb[0].mxu0
        %2493 = vdwg.mxu0
        %2494 = vst [vmem:[#allocation4] sm:$0xff] %v2336
        %2495 = vst [vmem:[#allocation4 + $0x8] sm:$0xff] %v2341
        %2496 = vst [vmem:[#allocation4 + $0x10] sm:$0xff] %v2346
        %2497 = vst [vmem:[#allocation4 + $0x18] sm:$0xff] %v2351
        %2498 = vst [vmem:[#allocation4 + $0x20] sm:$0xff] %v2356
        %2499 = vst [vmem:[#allocation4 + $0x28] sm:$0xff] %v2361
        %2500 = vst [vmem:[#allocation4 + $0x30] sm:$0xff] %v2366
        %2501 = vst [vmem:[#allocation4 + $0x38] sm:$0xff] %v2371
        %2502 = vst [vmem:[#allocation4 + $0x40] sm:$0xff] %v2376
        %2503 = vst [vmem:[#allocation4 + $0x48] sm:$0xff] %v2381
        %2504 = vst [vmem:[#allocation4 + $0x50] sm:$0xff] %v2386
        %2505 = vst [vmem:[#allocation4 + $0x58] sm:$0xff] %v2391
        %2506 = vst [vmem:[#allocation4 + $0x60] sm:$0xff] %v2396
        %2507 = vst [vmem:[#allocation4 + $0x68] sm:$0xff] %v2401
        %2508 = vst [vmem:[#allocation4 + $0x70] sm:$0xff] %v2406
        %2509 = vst [vmem:[#allocation4 + $0x78] sm:$0xff] %v2411
        %2510 = vst [vmem:[#allocation4 + $0x80] sm:$0xff] %v2416
        %2511 = vst [vmem:[#allocation4 + $0x88] sm:$0xff] %v2421
        %2512 = vst [vmem:[#allocation4 + $0x90] sm:$0xff] %v2426
        %2513 = vst [vmem:[#allocation4 + $0x98] sm:$0xff] %v2431
        %2514 = vst [vmem:[#allocation4 + $0xa0] sm:$0xff] %v2436
        %2515 = vst [vmem:[#allocation4 + $0xa8] sm:$0xff] %v2441
        %2516 = vst [vmem:[#allocation4 + $0xb0] sm:$0xff] %v2446
        %2517 = vst [vmem:[#allocation4 + $0xb8] sm:$0xff] %v2451
        %2518 = vst [vmem:[#allocation4 + $0xc0] sm:$0xff] %v2456
        %2519 = vst [vmem:[#allocation4 + $0xc8] sm:$0xff] %v2461
        %2520 = vst [vmem:[#allocation4 + $0xd0] sm:$0xff] %v2466
        %2521 = vst [vmem:[#allocation4 + $0xd8] sm:$0xff] %v2471
        %2522 = vst [vmem:[#allocation4 + $0xe0] sm:$0xff] %v2476
        %2523 = vst [vmem:[#allocation4 + $0xe8] sm:$0xff] %v2481
        %2524 = vst [vmem:[#allocation4 + $0xf0] sm:$0xff] %v2486
        %2525 = vst [vmem:[#allocation4 + $0xf8] sm:$0xff] %v2491
        %v2526 = vld [vmem:[#allocation10] sm:$0xff]
        %v2527 = vld [vmem:[#allocation10 + $0x8] sm:$0xff]
        %v2528 = vld [vmem:[#allocation10 + $0x10] sm:$0xff]
        %v2529 = vld [vmem:[#allocation10 + $0x18] sm:$0xff]
        %v2530 = vld [vmem:[#allocation10 + $0x20] sm:$0xff]
        %v2531 = vld [vmem:[#allocation10 + $0x28] sm:$0xff]
        %v2532 = vld [vmem:[#allocation10 + $0x30] sm:$0xff]
        %v2533 = vld [vmem:[#allocation10 + $0x38] sm:$0xff]
        %v2534 = vld [vmem:[#allocation10 + $0x40] sm:$0xff]
        %v2535 = vld [vmem:[#allocation10 + $0x48] sm:$0xff]
        %v2536 = vld [vmem:[#allocation10 + $0x50] sm:$0xff]
        %v2537 = vld [vmem:[#allocation10 + $0x58] sm:$0xff]
        %v2538 = vld [vmem:[#allocation10 + $0x60] sm:$0xff]
        %v2539 = vld [vmem:[#allocation10 + $0x68] sm:$0xff]
        %v2540 = vld [vmem:[#allocation10 + $0x70] sm:$0xff]
        %v2541 = vld [vmem:[#allocation10 + $0x78] sm:$0xff]
        %v2542 = vld [vmem:[#allocation4] sm:$0xff]
        %v2543 = vld [vmem:[#allocation4 + $0x8] sm:$0xff]
        %v2544 = vld [vmem:[#allocation4 + $0x10] sm:$0xff]
        %v2545 = vld [vmem:[#allocation4 + $0x18] sm:$0xff]
        %v2546 = vld [vmem:[#allocation4 + $0x20] sm:$0xff]
        %v2547 = vld [vmem:[#allocation4 + $0x28] sm:$0xff]
        %v2548 = vld [vmem:[#allocation4 + $0x30] sm:$0xff]
        %v2549 = vld [vmem:[#allocation4 + $0x38] sm:$0xff]
        %v2550 = vld [vmem:[#allocation4 + $0x40] sm:$0xff]
        %v2551 = vld [vmem:[#allocation4 + $0x48] sm:$0xff]
        %v2552 = vld [vmem:[#allocation4 + $0x50] sm:$0xff]
        %v2553 = vld [vmem:[#allocation4 + $0x58] sm:$0xff]
        %v2554 = vld [vmem:[#allocation4 + $0x60] sm:$0xff]
        %v2555 = vld [vmem:[#allocation4 + $0x68] sm:$0xff]
        %v2556 = vld [vmem:[#allocation4 + $0x70] sm:$0xff]
        %v2557 = vld [vmem:[#allocation4 + $0x78] sm:$0xff]
        %v2558 = vld [vmem:[#allocation4 + $0x80] sm:$0xff]
        %v2559 = vld [vmem:[#allocation4 + $0x88] sm:$0xff]
        %v2560 = vld [vmem:[#allocation4 + $0x90] sm:$0xff]
        %v2561 = vld [vmem:[#allocation4 + $0x98] sm:$0xff]
        %v2562 = vld [vmem:[#allocation4 + $0xa0] sm:$0xff]
        %v2563 = vld [vmem:[#allocation4 + $0xa8] sm:$0xff]
        %v2564 = vld [vmem:[#allocation4 + $0xb0] sm:$0xff]
        %v2565 = vld [vmem:[#allocation4 + $0xb8] sm:$0xff]
        %v2566 = vld [vmem:[#allocation4 + $0xc0] sm:$0xff]
        %v2567 = vld [vmem:[#allocation4 + $0xc8] sm:$0xff]
        %v2568 = vld [vmem:[#allocation4 + $0xd0] sm:$0xff]
        %v2569 = vld [vmem:[#allocation4 + $0xd8] sm:$0xff]
        %v2570 = vld [vmem:[#allocation4 + $0xe0] sm:$0xff]
        %v2571 = vld [vmem:[#allocation4 + $0xe8] sm:$0xff]
        %v2572 = vld [vmem:[#allocation4 + $0xf0] sm:$0xff]
        %v2573 = vld [vmem:[#allocation4 + $0xf8] sm:$0xff]
        %2574 = vmatprep.subr.mxu0 0.0
        %2575 = vmatpush1.msra.mxu0 %v2542
        %2576 = vmatprep.subr.mxu0 0.0
        %2577 = vmatpush1.msra.mxu0 %v2543
        %2578 = vmatprep.subr.mxu0 0.0
        %2579 = vmatpush1.msra.mxu0 %v2544
        %2580 = vmatprep.subr.mxu0 0.0
        %2581 = vmatpush1.msra.mxu0 %v2545
        %2582 = vmatprep.subr.mxu0 0.0
        %2583 = vmatpush1.msra.mxu0 %v2546
        %2584 = vmatprep.subr.mxu0 0.0
        %2585 = vmatpush1.msra.mxu0 %v2547
        %2586 = vmatprep.subr.mxu0 0.0
        %2587 = vmatpush1.msra.mxu0 %v2548
        %2588 = vmatprep.subr.mxu0 0.0
        %2589 = vmatpush1.msra.mxu0 %v2549
        %2590 = vmatprep.subr.mxu0 0.0
        %2591 = vmatpush1.msra.mxu0 %v2550
        %2592 = vmatprep.subr.mxu0 0.0
        %2593 = vmatpush1.msra.mxu0 %v2551
        %2594 = vmatprep.subr.mxu0 0.0
        %2595 = vmatpush1.msra.mxu0 %v2552
        %2596 = vmatprep.subr.mxu0 0.0
        %2597 = vmatpush1.msra.mxu0 %v2553
        %2598 = vmatprep.subr.mxu0 0.0
        %2599 = vmatpush1.msra.mxu0 %v2554
        %2600 = vmatprep.subr.mxu0 0.0
        %2601 = vmatpush1.msra.mxu0 %v2555
        %2602 = vmatprep.subr.mxu0 0.0
        %2603 = vmatpush1.msra.mxu0 %v2556
        %2604 = vmatprep.subr.mxu0 0.0
        %2605 = vmatpush1.msra.mxu0 %v2557
        %2606 = vmatprep.subr.mxu0 0.0
        %2607 = vmatpush1.msra.mxu0 %v2558
        %2608 = vmatprep.subr.mxu0 0.0
        %2609 = vmatpush1.msra.mxu0 %v2559
        %2610 = vmatprep.subr.mxu0 0.0
        %2611 = vmatpush1.msra.mxu0 %v2560
        %2612 = vmatprep.subr.mxu0 0.0
        %2613 = vmatpush1.msra.mxu0 %v2561
        %2614 = vmatprep.subr.mxu0 0.0
        %2615 = vmatpush1.msra.mxu0 %v2562
        %2616 = vmatprep.subr.mxu0 0.0
        %2617 = vmatpush1.msra.mxu0 %v2563
        %2618 = vmatprep.subr.mxu0 0.0
        %2619 = vmatpush1.msra.mxu0 %v2564
        %2620 = vmatprep.subr.mxu0 0.0
        %2621 = vmatpush1.msra.mxu0 %v2565
        %2622 = vmatprep.subr.mxu0 0.0
        %2623 = vmatpush1.msra.mxu0 %v2566
        %2624 = vmatprep.subr.mxu0 0.0
        %2625 = vmatpush1.msra.mxu0 %v2567
        %2626 = vmatprep.subr.mxu0 0.0
        %2627 = vmatpush1.msra.mxu0 %v2568
        %2628 = vmatprep.subr.mxu0 0.0
        %2629 = vmatpush1.msra.mxu0 %v2569
        %2630 = vmatprep.subr.mxu0 0.0
        %2631 = vmatpush1.msra.mxu0 %v2570
        %2632 = vmatprep.subr.mxu0 0.0
        %2633 = vmatpush1.msra.mxu0 %v2571
        %2634 = vmatprep.subr.mxu0 0.0
        %2635 = vmatpush1.msra.mxu0 %v2572
        %2636 = vmatprep.subr.mxu0 0.0
        %2637 = vmatpush1.msra.mxu0 %v2573
        %2638 = vmatprep.mubr.f32.mxu0 %v2527
        %2639 = vmatmul.mubr.f32.gmra.mrb[0].mxu0 %v2526
        %v2640 = vpop.f32.mrb[0].mxu0
        %v2641 = vadd.f32 0.0, %v2640
        %v2642 = vpop.f32.mrb[0].mxu0
        %2643 = vmatprep.mubr.f32.mxu0 %v2529
        %2644 = vmatmul.mubr.f32.gmra.mrb[0].mxu0 %v2528
        %v2645 = vpop.f32.mrb[0].mxu0
        %v2646 = vadd.f32 0.0, %v2645
        %v2647 = vpop.f32.mrb[0].mxu0
        %2648 = vmatprep.mubr.f32.mxu0 %v2531
        %2649 = vmatmul.mubr.f32.gmra.mrb[0].mxu0 %v2530
        %v2650 = vpop.f32.mrb[0].mxu0
        %v2651 = vadd.f32 0.0, %v2650
        %v2652 = vpop.f32.mrb[0].mxu0
        %2653 = vmatprep.mubr.f32.mxu0 %v2533
        %2654 = vmatmul.mubr.f32.gmra.mrb[0].mxu0 %v2532
        %v2655 = vpop.f32.mrb[0].mxu0
        %v2656 = vadd.f32 0.0, %v2655
        %v2657 = vpop.f32.mrb[0].mxu0
        %2658 = vmatprep.mubr.f32.mxu0 %v2535
        %2659 = vmatmul.mubr.f32.gmra.mrb[0].mxu0 %v2534
        %v2660 = vpop.f32.mrb[0].mxu0
        %v2661 = vadd.f32 0.0, %v2660
        %v2662 = vpop.f32.mrb[0].mxu0
        %2663 = vmatprep.mubr.f32.mxu0 %v2537
        %2664 = vmatmul.mubr.f32.gmra.mrb[0].mxu0 %v2536
        %v2665 = vpop.f32.mrb[0].mxu0
        %v2666 = vadd.f32 0.0, %v2665
        %v2667 = vpop.f32.mrb[0].mxu0
        %2668 = vmatprep.mubr.f32.mxu0 %v2539
        %2669 = vmatmul.mubr.f32.gmra.mrb[0].mxu0 %v2538
        %v2670 = vpop.f32.mrb[0].mxu0
        %v2671 = vadd.f32 0.0, %v2670
        %v2672 = vpop.f32.mrb[0].mxu0
        %2673 = vmatprep.mubr.f32.mxu0 %v2541
        %2674 = vmatmul.mubr.f32.gmra.mrb[0].mxu0 %v2540
        %v2675 = vpop.f32.mrb[0].mxu0
        %v2676 = vadd.f32 0.0, %v2675
        %v2677 = vpop.f32.mrb[0].mxu0
        %2678 = vdwg.mxu0
        %2679 = vst [vmem:[%s244] sm:$0xff] %v2641
        %2680 = vst [vmem:[%s244 + $0x8] sm:$0xff] %v2646
        %2681 = vst [vmem:[%s244 + $0x10] sm:$0xff] %v2651
        %2682 = vst [vmem:[%s244 + $0x18] sm:$0xff] %v2656
        %2683 = vst [vmem:[%s244 + $0x20] sm:$0xff] %v2661
        %2684 = vst [vmem:[%s244 + $0x28] sm:$0xff] %v2666
        %2685 = vst [vmem:[%s244 + $0x30] sm:$0xff] %v2671
        %2686 = vst [vmem:[%s244 + $0x38] sm:$0xff] %v2676
        %s2687 = sand.u32 %s119, 1
        %s2688 = scalar_lea.sflag [#allocation7], %s2687
        %s2689 = sand.u32 %s119, 1
        %s2690 = smul.addr %s2689, 64
        %s2691 = scalar_lea.vmem [#allocation11], %s2690
        // Predicated region
        $region49: #{tpu_custom_call.1} parent=35 // pred_check
          %p2692 = pneg %p129
        $region50: #{tpu_custom_call.1} parent=35 // pred_check_branch
          %2694 = sbr.rel (%p2692) target = $region52
        $region51: #{tpu_custom_call.1} parent=35 // pred_region
          %s2696 = ssub.s32 1024, 1024
          %2697 = vsyncadd %s2688, %s2696
          %s2698 = smul.addr %s22, 8
          %s2699 = smul.addr %s2698, 128
          %s2700 = scalar_lea.hbm %s4, %s2699
          %s2701 = sshll.u32 %s2691, 4
          %s2702 = int_to_ptr.vmem [resolvable:$true] %s2701
          %2707 = dma.vmem_to_hbm [thread:$0]  %s2702, 1024, %s2700, %s2688, 128, 128, 8
        $region52: #{tpu_custom_call.1} parent=35 // pred_fallthru
          _
      $region36: #{tpu_custom_call.1} parent=5 // pred_fallthru
        _
      %p2708 = scmp.le.s32.totalorder 2, %s17
      // Predicated region
      $region53: #{tpu_custom_call.1} parent=5 // pred_check
        %p2709 = pneg %p2708
      $region54: #{tpu_custom_call.1} parent=5 // pred_check_branch
        %2711 = sbr.rel (%p2709) target = $region56
      $region55: #{tpu_custom_call.1} parent=5 // pred_region
        %s2712 = ssub.s32 %s17, 2
        // Predicated region
        $region57: #{tpu_custom_call.1} parent=55 // pred_check
          %p2713 = pneg %p135
        $region58: #{tpu_custom_call.1} parent=55 // pred_check_branch
          %2715 = sbr.rel (%p2713) target = $region60
        $region59: #{tpu_custom_call.1} parent=55 // pred_region
          %s2716 = sand.u32 %s120, 1
          %s2717 = scalar_lea.sflag [#allocation7], %s2716
          %s2718 = sand.u32 %s120, 1
          %s2719 = smul.addr %s2718, 64
          %s2720 = scalar_lea.vmem [#allocation11], %s2719
          %2721 = dma.done %s2717, 1024
        $region60: #{tpu_custom_call.1} parent=55 // pred_fallthru
          _
      $region56: #{tpu_custom_call.1} parent=5 // pred_fallthru
        _
    $region6: #{tpu_custom_call.1} parent=1 // loop_footer
      %s21 = sadd.s32 1, %s17
    $region7: #{tpu_custom_call.1} parent=1 // loop_footer_branch
      %16 = sbr.rel target = $region3
    $region8: #{tpu_custom_call.1} parent=1 // loop_exit
      _
    %2722 = vsyncpa [#allocation6], 1
    %s2723 = scalar_lea.sflag [#allocation6], 1
    %2724 = vsyncpa %s2723, 1
    %2725 = vsyncpa [#allocation9], 1
    %2726 = vsyncpa [#allocation7], 1
    %s2727 = scalar_lea.sflag [#allocation7], 1
    %2728 = vsyncpa %s2727, 1

</llo_original>
